<compile_context>
chip_gen: v6e
topology: v6e:2x2x1
jax: 0.10.0
libtpu: 0.0.40
codegen_flags: <defaults>
</compile_context>

<pallas_src>
import functools

import jax
import jax.numpy as jnp
from jax.experimental import pallas as pl
from jax.experimental.pallas import tpu as pltpu

ORIG_SIZE = 256.0   # orig_size used in compute_offscreen_loss / projection
EPS = 1e-9
SIGMA = 2.0         # pixel sigma of the point-splat soft-silhouette proxy
FAR_AWAY = 1e4      # where padded vertices are pushed (pixel units)
FAR_PIXEL = 1e6     # where padded pixels are pushed (pixel units)


# ----------------------------------------------------------------------------
# plain-JAX glue: 6D rotation -> rotation matrix (tiny, 6 numbers)
# ----------------------------------------------------------------------------
def rot6d_to_matrix(rot6d):
    """Standard 6D -> SO(3) (Zhou et al.)."""
    a1 = rot6d[..., 0]
    a2 = rot6d[..., 1]
    b1 = a1 / jnp.maximum(jnp.linalg.norm(a1, axis=-1, keepdims=True), 1e-12)
    b2 = a2 - jnp.sum(b1 * a2, axis=-1, keepdims=True) * b1
    b2 = b2 / jnp.maximum(jnp.linalg.norm(b2, axis=-1, keepdims=True), 1e-12)
    b3 = jnp.cross(b1, b2)
    return jnp.stack([b1, b2, b3], axis=-1)  # (..., 3, 3)


def _sum_all(x):
    # reduce a 2-D tile to shape (1, 1)
    return jnp.sum(jnp.sum(x, axis=1, keepdims=True), axis=0, keepdims=True)


# ----------------------------------------------------------------------------
# Kernel 1: per-view projection + offscreen loss (lane-dense vertex rows)
# ----------------------------------------------------------------------------
def _proj_kernel(cam_ref, verts_ref, uv_ref, loss_off_ref, *, H, W):
    v = pl.program_id(0)
    R = [cam_ref[v, i] for i in range(9)]          # composed R_eff, row-major
    T = [cam_ref[v, 9 + i] for i in range(3)]      # composed T_eff
    K = [cam_ref[v, 12 + i] for i in range(6)]     # Ks[v] rows 0,1 (row 2 unused)

    vx = verts_ref[0:1, :]                         # (1, Vp) lane-dense
    vy = verts_ref[1:2, :]
    vz = verts_ref[2:3, :]
    m = verts_ref[3:4, :]                          # 1.0 = real vertex

    # camera transform (world transform composed in): cam = verts @ R_eff + T_eff
    cx = vx * R[0] + vy * R[3] + vz * R[6] + T[0]
    cy = vx * R[1] + vy * R[4] + vz * R[7] + T[1]
    cz = vx * R[2] + vy * R[5] + vz * R[8] + T[2]

    inv_z = pl.reciprocal(cz + EPS, approx=True)   # EUP slot, frees VALU
    x_ = cx * inv_z
    y_ = cy * inv_z
    # distortion coefficients are hard-coded zeros in the reference module, so
    # the radial / tangential terms vanish exactly (x__ == x_, y__ == y_).
    u_raw = x_ * K[0] + y_ * K[1] + K[2]           # pixel coords @ orig_size
    v_raw = x_ * K[3] + y_ * K[4] + K[5]

    # ---- offscreen loss (exact port of compute_offscreen_loss) ----
    v_flip = ORIG_SIZE - v_raw
    u_n = (u_raw - ORIG_SIZE / 2.0) * (2.0 / ORIG_SIZE)
    v_n = (v_flip - ORIG_SIZE / 2.0) * (2.0 / ORIG_SIZE)
    off = (jnp.maximum(u_n - 1.0, 0.0) + jnp.maximum(v_n - 1.0, 0.0)
           + jnp.maximum(-1.0 - u_n, 0.0) + jnp.maximum(-1.0 - v_n, 0.0)
           + jnp.maximum(-cz, 0.0) + jnp.maximum(cz - 200.0, 0.0)) * m
    loss_off_ref[0] = _sum_all(off)

    # ---- splat pixel coordinates; padding mask folded into u (O(Vp) work) ----
    u_pix = u_raw * (W / ORIG_SIZE)
    v_pix = v_flip * (H / ORIG_SIZE)
    uv_ref[0, 0:1, :] = jnp.where(m > 0.5, u_pix, -FAR_AWAY)  # padded -> far away
    uv_ref[0, 1:2, :] = v_pix


def project_and_offscreen_pallas(verts_cm, cam_params, H, W):
    nv = cam_params.shape[0]
    Vp = verts_cm.shape[1]
    grid_spec = pltpu.PrefetchScalarGridSpec(
        num_scalar_prefetch=1,                     # cam_params -> SMEM
        grid=(nv,),
        in_specs=[pl.BlockSpec((8, Vp), lambda v, cam: (0, 0))],
        out_specs=[
            pl.BlockSpec((1, 2, Vp), lambda v, cam: (v, 0, 0)),
            pl.BlockSpec((1, 1, 1), lambda v, cam: (v, 0, 0)),
        ],
    )
    return pl.pallas_call(
        functools.partial(_proj_kernel, H=H, W=W),
        out_shape=(
            jax.ShapeDtypeStruct((nv, 2, Vp), jnp.float32),   # [u_pix, v_pix]
            jax.ShapeDtypeStruct((nv, 1, 1), jnp.float32),    # offscreen loss
        ),
        grid_spec=grid_spec,
        compiler_params=pltpu.CompilerParams(
            dimension_semantics=("parallel",)),
    )(cam_params, verts_cm)


# ----------------------------------------------------------------------------
# Kernel 2: per-view point-splat soft-silhouette + silhouette MSE-sum loss
# TODO(synk): the external differentiable mesh rasterizer (self.renderers,
# mode='silhouettes') has no clean Pallas equivalent; replaced with a
# point-splat soft-silhouette over the projected vertices.
# ----------------------------------------------------------------------------
def _splat_kernel(uv_ref, colrow_ref, pix_ref, img_ref, loss_ref,
                  *, Vp, VC, HWp, unroll):
    col = colrow_ref[0:1, :]                       # (1, HWp), resident across views
    row = colrow_ref[1:2, :]

    def body(c, d2min):
        off = pl.multiple_of(c * VC, VC)
        uv_c = uv_ref[0, pl.ds(off, VC), :]        # (VC, 2) vertex chunk
        du = uv_c[:, 0:1] - col                    # (VC, HWp) bounded chunk
        dv = uv_c[:, 1:2] - row
        d2 = du * du + dv * dv
        return jnp.minimum(d2min, jnp.min(d2, axis=0, keepdims=True))

    d2min = jax.lax.fori_loop(0, Vp // VC, body,
                              jnp.full((1, HWp), 1e30, jnp.float32),
                              unroll=unroll)

    sil = jnp.exp(d2min * (-1.0 / (SIGMA * SIGMA)))
    image = pix_ref[0, 1:2, :] * sil               # (1 - background) * silhouette
    img_ref[0] = image
    diff = image - pix_ref[0, 0:1, :]              # - reference silhouette
    loss_ref[0] = _sum_all(diff * diff)


def splat_and_losses_pallas(uv_vm, colrow, ref_and_invbg, VC):
    nv, Vp, _ = uv_vm.shape
    HWp = colrow.shape[1]
    n_chunks = Vp // VC
    return pl.pallas_call(
        functools.partial(_splat_kernel, Vp=Vp, VC=VC, HWp=HWp,
                          unroll=(n_chunks <= 8)),
        out_shape=(
            jax.ShapeDtypeStruct((nv, 1, HWp), jnp.float32),  # rendered image
            jax.ShapeDtypeStruct((nv, 1, 1), jnp.float32),    # silhouette loss
        ),
        grid=(nv,),
        in_specs=[
            pl.BlockSpec((1, Vp, 2), lambda v: (v, 0, 0)),
            pl.BlockSpec((2, HWp), lambda v: (0, 0)),         # constant -> resident
            pl.BlockSpec((1, 2, HWp), lambda v: (v, 0, 0)),   # [ref, 1-bg] packed
        ],
        out_specs=[
            pl.BlockSpec((1, 1, HWp), lambda v: (v, 0, 0)),
            pl.BlockSpec((1, 1, 1), lambda v: (v, 0, 0)),
        ],
        compiler_params=pltpu.CompilerParams(
            dimension_semantics=("parallel",)),
    )(uv_vm, colrow, ref_and_invbg)


# ----------------------------------------------------------------------------
# forward(): mirrors ObjectPoseFittingBatch.forward()
# ----------------------------------------------------------------------------
def forward(verts, Rs, Ts, Ks, image_refs, object_masks_valid,
            image_refs_background, object_R_IMU, rotations, translations):
    # verts: (1, V, 3); Rs: (nv,3,3); Ts: (nv,3); Ks: (nv,3,3)
    # image_refs / image_refs_background: (nv, H, W); object_masks_valid: (nv,)
    nv, H, W = image_refs.shape
    V = verts.shape[1]
    Vp = ((V + 127) // 128) * 128
    HW = H * W
    HWp = ((HW + 127) // 128) * 128

    # coordinate-major vertices: rows [x, y, z, mask, 0, 0, 0, 0]
    verts_t = verts.reshape(V, 3).astype(jnp.float32).T          # (3, V)
    verts_cm = jnp.zeros((8, Vp), jnp.float32)
    verts_cm = verts_cm.at[0:3, :V].set(verts_t)
    verts_cm = verts_cm.at[3, :V].set(1.0)

    # compose world transform into camera transform (plain JAX, ~100 flops):
    #   cam = (verts @ R_w + t_w) @ Rs + Ts = verts @ (R_w @ Rs) + (t_w @ Rs + Ts)
    R_w = rot6d_to_matrix(object_R_IMU + 1.0 * rotations)[0].astype(jnp.float32)
    t_w = translations.reshape(3).astype(jnp.float32)
    Rs32 = Rs.astype(jnp.float32)
    R_eff = jnp.einsum('ij,vjk->vik', R_w, Rs32)
    T_eff = jnp.einsum('j,vjk->vk', t_w, Rs32) + Ts.astype(jnp.float32)
    cam_params = jnp.concatenate(
        [R_eff.reshape(nv, 9), T_eff.reshape(nv, 3),
         Ks.reshape(nv, 9).astype(jnp.float32),
         jnp.zeros((nv, 3), jnp.float32)], axis=1)               # (nv, 24)

    uv_ln, loff = project_and_offscreen_pallas(verts_cm, cam_params, H, W)
    uv_vm = jnp.swapaxes(uv_ln, 1, 2)              # (nv, Vp, 2) tiny relayout

    # per-pixel constants (padded pixels pushed far away so they contribute 0)
    pix = jnp.arange(HWp)
    valid = pix < HW
    col = jnp.where(valid, (pix % W).astype(jnp.float32), FAR_PIXEL)
    row = jnp.where(valid, (pix // W).astype(jnp.float32), FAR_PIXEL)
    colrow = jnp.stack([col, row], axis=0)         # (2, HWp)

    # pack [reference silhouette, (1 - background)] into one lane-dense stream
    refs_flat = image_refs.reshape(nv, HW).astype(jnp.float32)
    inv_bg_flat = 1.0 - image_refs_background.reshape(nv, HW).astype(jnp.float32)
    ref_and_invbg = jnp.zeros((nv, 2, HWp), jnp.float32)
    ref_and_invbg = ref_and_invbg.at[:, 0, :HW].set(refs_flat)
    ref_and_invbg = ref_and_invbg.at[:, 1, :HW].set(inv_bg_flat)

    # vertex-chunk size: power of two (divides Vp), bounds splat VMEM to a few MiB
    VC = 128
    while VC > 8 and VC * HWp * 4 * 3 > (4 << 20):
        VC //= 2

    image_flat, lsil = splat_and_losses_pallas(uv_vm, colrow, ref_and_invbg, VC)

    mask = object_masks_valid.astype(jnp.float32)
    loss = lsil.reshape(nv) * mask
    loss_offscreen = loff.reshape(nv) * mask
    loss_sum = jnp.sum((1.0 * loss + 10.0 * loss_offscreen) / mask.sum())
    image = image_flat[:, 0, :HW].reshape(nv, H, W)
    return loss_sum, [image]


# ----------------------------------------------------------------------------
if __name__ == "__main__":
    key = jax.random.PRNGKey(0)
    k1, k2, k3, k4, k5, k6 = jax.random.split(key, 6)
    nv, V, H, W = 3, 256, 32, 32

    # deterministic synthetic "buffers" (module __init__ shapes)
    verts = 0.2 * jax.random.normal(k1, (1, V, 3), jnp.float32)        # verts_padded
    Rs = rot6d_to_matrix(jax.random.normal(k2, (nv, 3, 2), jnp.float32))
    Ts = (jnp.tile(jnp.array([[0.0, 0.0, 2.5]], jnp.float32), (nv, 1))
          + 0.05 * jax.random.normal(k3, (nv, 3), jnp.float32))
    Ks = jnp.tile(jnp.array([[[200.0, 0.0, 128.0],
                              [0.0, 200.0, 128.0],
                              [0.0, 0.0, 1.0]]], jnp.float32), (nv, 1, 1))
    image_refs = jax.random.uniform(k4, (nv, H, W), jnp.float32)
    image_refs_background = (jax.random.uniform(k5, (nv, H, W)) > 0.8
                             ).astype(jnp.float32)
    object_masks_valid = jnp.ones((nv,), jnp.float32)
    object_R = jax.random.normal(k6, (1, 3, 2), jnp.float32)           # object_R_IMU
    object_init_T = jnp.array([[0.0, 0.0, 2.0]], jnp.float32)

    # nn.Parameters (deterministic init, as in __init__)
    rotations = jnp.zeros((1, 3, 2), jnp.float32)
    translations = object_init_T

    loss_sum, images = jax.jit(forward)(
        verts, Rs, Ts, Ks, image_refs, object_masks_valid,
        image_refs_background, object_R, rotations, translations)
    jax.block_until_ready(loss_sum)
    jax.block_until_ready(images[0])
    assert images[0].shape == (nv, H, W)
    assert jnp.isfinite(loss_sum)
    print("KERNEL_OK")
</pallas_src>

<mosaic_0001>
module attributes {stable_mosaic.version = 11 : i64} {
  func.func @_proj_kernel(%arg0: i32, %arg1: memref<3x24xf32, #tpu.memory_space<smem>>, %arg2: memref<8x256xf32, #tpu.memory_space<vmem>>, %arg3: memref<1x2x256xf32, #tpu.memory_space<vmem>>, %arg4: memref<1x1x1xf32, #tpu.memory_space<vmem>>) attributes {dimension_semantics = [#tpu.dimension_semantics<parallel>], iteration_bounds = array<i64: 3>, scalar_prefetch = 1 : i64, scratch_operands = 0 : i64, tpu.core_type = #tpu.core_type<tc>, window_params = [{pipeline_mode = #tpu.pipeline_mode<synchronous>, transform_indices = @transform_0, window_bounds = array<i64: 8, 256>}, {transform_indices = @transform_1, window_bounds = array<i64: 1, 2, 256>}, {transform_indices = @transform_2, window_bounds = array<i64: 1, 1, 1>}]} {
    %0 = arith.index_cast %arg0 : i32 to index
    %c0 = arith.constant 0 : index
    %1 = memref.load %arg1[%0, %c0] : memref<3x24xf32, #tpu.memory_space<smem>>
    %2 = arith.index_cast %arg0 : i32 to index
    %c1 = arith.constant 1 : index
    %3 = memref.load %arg1[%2, %c1] : memref<3x24xf32, #tpu.memory_space<smem>>
    %4 = arith.index_cast %arg0 : i32 to index
    %c2 = arith.constant 2 : index
    %5 = memref.load %arg1[%4, %c2] : memref<3x24xf32, #tpu.memory_space<smem>>
    %6 = arith.index_cast %arg0 : i32 to index
    %c3 = arith.constant 3 : index
    %7 = memref.load %arg1[%6, %c3] : memref<3x24xf32, #tpu.memory_space<smem>>
    %8 = arith.index_cast %arg0 : i32 to index
    %c4 = arith.constant 4 : index
    %9 = memref.load %arg1[%8, %c4] : memref<3x24xf32, #tpu.memory_space<smem>>
    %10 = arith.index_cast %arg0 : i32 to index
    %c5 = arith.constant 5 : index
    %11 = memref.load %arg1[%10, %c5] : memref<3x24xf32, #tpu.memory_space<smem>>
    %12 = arith.index_cast %arg0 : i32 to index
    %c6 = arith.constant 6 : index
    %13 = memref.load %arg1[%12, %c6] : memref<3x24xf32, #tpu.memory_space<smem>>
    %14 = arith.index_cast %arg0 : i32 to index
    %c7 = arith.constant 7 : index
    %15 = memref.load %arg1[%14, %c7] : memref<3x24xf32, #tpu.memory_space<smem>>
    %16 = arith.index_cast %arg0 : i32 to index
    %c8 = arith.constant 8 : index
    %17 = memref.load %arg1[%16, %c8] : memref<3x24xf32, #tpu.memory_space<smem>>
    %18 = arith.index_cast %arg0 : i32 to index
    %c9 = arith.constant 9 : index
    %19 = memref.load %arg1[%18, %c9] : memref<3x24xf32, #tpu.memory_space<smem>>
    %20 = arith.index_cast %arg0 : i32 to index
    %c10 = arith.constant 10 : index
    %21 = memref.load %arg1[%20, %c10] : memref<3x24xf32, #tpu.memory_space<smem>>
    %22 = arith.index_cast %arg0 : i32 to index
    %c11 = arith.constant 11 : index
    %23 = memref.load %arg1[%22, %c11] : memref<3x24xf32, #tpu.memory_space<smem>>
    %24 = arith.index_cast %arg0 : i32 to index
    %c12 = arith.constant 12 : index
    %25 = memref.load %arg1[%24, %c12] : memref<3x24xf32, #tpu.memory_space<smem>>
    %26 = arith.index_cast %arg0 : i32 to index
    %c13 = arith.constant 13 : index
    %27 = memref.load %arg1[%26, %c13] : memref<3x24xf32, #tpu.memory_space<smem>>
    %28 = arith.index_cast %arg0 : i32 to index
    %c14 = arith.constant 14 : index
    %29 = memref.load %arg1[%28, %c14] : memref<3x24xf32, #tpu.memory_space<smem>>
    %30 = arith.index_cast %arg0 : i32 to index
    %c15 = arith.constant 15 : index
    %31 = memref.load %arg1[%30, %c15] : memref<3x24xf32, #tpu.memory_space<smem>>
    %32 = arith.index_cast %arg0 : i32 to index
    %c16 = arith.constant 16 : index
    %33 = memref.load %arg1[%32, %c16] : memref<3x24xf32, #tpu.memory_space<smem>>
    %34 = arith.index_cast %arg0 : i32 to index
    %c17 = arith.constant 17 : index
    %35 = memref.load %arg1[%34, %c17] : memref<3x24xf32, #tpu.memory_space<smem>>
    %c0_0 = arith.constant 0 : index
    %c0_1 = arith.constant 0 : index
    %36 = vector.load %arg2[%c0_0, %c0_1] : memref<8x256xf32, #tpu.memory_space<vmem>>, vector<1x256xf32>
    %c1_2 = arith.constant 1 : index
    %c0_3 = arith.constant 0 : index
    %37 = vector.load %arg2[%c1_2, %c0_3] : memref<8x256xf32, #tpu.memory_space<vmem>>, vector<1x256xf32>
    %c2_4 = arith.constant 2 : index
    %c0_5 = arith.constant 0 : index
    %38 = vector.load %arg2[%c2_4, %c0_5] : memref<8x256xf32, #tpu.memory_space<vmem>>, vector<1x256xf32>
    %c3_6 = arith.constant 3 : index
    %c0_7 = arith.constant 0 : index
    %39 = vector.load %arg2[%c3_6, %c0_7] : memref<8x256xf32, #tpu.memory_space<vmem>>, vector<1x256xf32>
    %40 = vector.broadcast %1 : f32 to vector<1x256xf32>
    %41 = arith.mulf %36, %40 : vector<1x256xf32>
    %42 = vector.broadcast %7 : f32 to vector<1x256xf32>
    %43 = arith.mulf %37, %42 : vector<1x256xf32>
    %44 = arith.addf %41, %43 : vector<1x256xf32>
    %45 = vector.broadcast %13 : f32 to vector<1x256xf32>
    %46 = arith.mulf %38, %45 : vector<1x256xf32>
    %47 = arith.addf %44, %46 : vector<1x256xf32>
    %48 = vector.broadcast %19 : f32 to vector<1x256xf32>
    %49 = arith.addf %47, %48 : vector<1x256xf32>
    %50 = vector.broadcast %3 : f32 to vector<1x256xf32>
    %51 = arith.mulf %36, %50 : vector<1x256xf32>
    %52 = vector.broadcast %9 : f32 to vector<1x256xf32>
    %53 = arith.mulf %37, %52 : vector<1x256xf32>
    %54 = arith.addf %51, %53 : vector<1x256xf32>
    %55 = vector.broadcast %15 : f32 to vector<1x256xf32>
    %56 = arith.mulf %38, %55 : vector<1x256xf32>
    %57 = arith.addf %54, %56 : vector<1x256xf32>
    %58 = vector.broadcast %21 : f32 to vector<1x256xf32>
    %59 = arith.addf %57, %58 : vector<1x256xf32>
    %60 = vector.broadcast %5 : f32 to vector<1x256xf32>
    %61 = arith.mulf %36, %60 : vector<1x256xf32>
    %62 = vector.broadcast %11 : f32 to vector<1x256xf32>
    %63 = arith.mulf %37, %62 : vector<1x256xf32>
    %64 = arith.addf %61, %63 : vector<1x256xf32>
    %65 = vector.broadcast %17 : f32 to vector<1x256xf32>
    %66 = arith.mulf %38, %65 : vector<1x256xf32>
    %67 = arith.addf %64, %66 : vector<1x256xf32>
    %68 = vector.broadcast %23 : f32 to vector<1x256xf32>
    %69 = arith.addf %67, %68 : vector<1x256xf32>
    %cst = arith.constant 9.99999971E-10 : f32
    %70 = vector.broadcast %cst : f32 to vector<1x256xf32>
    %71 = arith.addf %69, %70 : vector<1x256xf32>
    %72 = tpu.reciprocal %71 {approx = true} : vector<1x256xf32> -> vector<1x256xf32>
    %73 = arith.mulf %49, %72 : vector<1x256xf32>
    %74 = arith.mulf %59, %72 : vector<1x256xf32>
    %75 = vector.broadcast %25 : f32 to vector<1x256xf32>
    %76 = arith.mulf %73, %75 : vector<1x256xf32>
    %77 = vector.broadcast %27 : f32 to vector<1x256xf32>
    %78 = arith.mulf %74, %77 : vector<1x256xf32>
    %79 = arith.addf %76, %78 : vector<1x256xf32>
    %80 = vector.broadcast %29 : f32 to vector<1x256xf32>
    %81 = arith.addf %79, %80 : vector<1x256xf32>
    %82 = vector.broadcast %31 : f32 to vector<1x256xf32>
    %83 = arith.mulf %73, %82 : vector<1x256xf32>
    %84 = vector.broadcast %33 : f32 to vector<1x256xf32>
    %85 = arith.mulf %74, %84 : vector<1x256xf32>
    %86 = arith.addf %83, %85 : vector<1x256xf32>
    %87 = vector.broadcast %35 : f32 to vector<1x256xf32>
    %88 = arith.addf %86, %87 : vector<1x256xf32>
    %cst_8 = arith.constant 2.560000e+02 : f32
    %89 = vector.broadcast %cst_8 : f32 to vector<1x256xf32>
    %90 = arith.subf %89, %88 : vector<1x256xf32>
    %cst_9 = arith.constant 1.280000e+02 : f32
    %91 = vector.broadcast %cst_9 : f32 to vector<1x256xf32>
    %92 = arith.subf %81, %91 : vector<1x256xf32>
    %cst_10 = arith.constant 7.812500e-03 : f32
    %93 = vector.broadcast %cst_10 : f32 to vector<1x256xf32>
    %94 = arith.mulf %92, %93 : vector<1x256xf32>
    %cst_11 = arith.constant 1.280000e+02 : f32
    %95 = vector.broadcast %cst_11 : f32 to vector<1x256xf32>
    %96 = arith.subf %90, %95 : vector<1x256xf32>
    %cst_12 = arith.constant 7.812500e-03 : f32
    %97 = vector.broadcast %cst_12 : f32 to vector<1x256xf32>
    %98 = arith.mulf %96, %97 : vector<1x256xf32>
    %cst_13 = arith.constant 1.000000e+00 : f32
    %99 = vector.broadcast %cst_13 : f32 to vector<1x256xf32>
    %100 = arith.subf %94, %99 : vector<1x256xf32>
    %cst_14 = arith.constant 0.000000e+00 : f32
    %101 = vector.broadcast %cst_14 : f32 to vector<1x256xf32>
    %102 = arith.maximumf %100, %101 : vector<1x256xf32>
    %cst_15 = arith.constant 1.000000e+00 : f32
    %103 = vector.broadcast %cst_15 : f32 to vector<1x256xf32>
    %104 = arith.subf %98, %103 : vector<1x256xf32>
    %cst_16 = arith.constant 0.000000e+00 : f32
    %105 = vector.broadcast %cst_16 : f32 to vector<1x256xf32>
    %106 = arith.maximumf %104, %105 : vector<1x256xf32>
    %107 = arith.addf %102, %106 : vector<1x256xf32>
    %cst_17 = arith.constant -1.000000e+00 : f32
    %108 = vector.broadcast %cst_17 : f32 to vector<1x256xf32>
    %109 = arith.subf %108, %94 : vector<1x256xf32>
    %cst_18 = arith.constant 0.000000e+00 : f32
    %110 = vector.broadcast %cst_18 : f32 to vector<1x256xf32>
    %111 = arith.maximumf %109, %110 : vector<1x256xf32>
    %112 = arith.addf %107, %111 : vector<1x256xf32>
    %cst_19 = arith.constant -1.000000e+00 : f32
    %113 = vector.broadcast %cst_19 : f32 to vector<1x256xf32>
    %114 = arith.subf %113, %98 : vector<1x256xf32>
    %cst_20 = arith.constant 0.000000e+00 : f32
    %115 = vector.broadcast %cst_20 : f32 to vector<1x256xf32>
    %116 = arith.maximumf %114, %115 : vector<1x256xf32>
    %117 = arith.addf %112, %116 : vector<1x256xf32>
    %cst_21 = arith.constant 0.000000e+00 : f32
    %118 = vector.broadcast %cst_21 : f32 to vector<1x256xf32>
    %119 = arith.subf %118, %69 : vector<1x256xf32>
    %cst_22 = arith.constant 0.000000e+00 : f32
    %120 = vector.broadcast %cst_22 : f32 to vector<1x256xf32>
    %121 = arith.maximumf %119, %120 : vector<1x256xf32>
    %122 = arith.addf %117, %121 : vector<1x256xf32>
    %cst_23 = arith.constant 2.000000e+02 : f32
    %123 = vector.broadcast %cst_23 : f32 to vector<1x256xf32>
    %124 = arith.subf %69, %123 : vector<1x256xf32>
    %cst_24 = arith.constant 0.000000e+00 : f32
    %125 = vector.broadcast %cst_24 : f32 to vector<1x256xf32>
    %126 = arith.maximumf %124, %125 : vector<1x256xf32>
    %127 = arith.addf %122, %126 : vector<1x256xf32>
    %128 = arith.mulf %127, %39 : vector<1x256xf32>
    %cst_25 = arith.constant dense<0.000000e+00> : vector<1xf32>
    %129 = vector.multi_reduction <add>, %128, %cst_25 [1] : vector<1x256xf32> to vector<1xf32>
    %130 = vector.shape_cast %129 : vector<1xf32> to vector<1x1xf32>
    %cst_26 = arith.constant dense<0.000000e+00> : vector<1xf32>
    %131 = vector.multi_reduction <add>, %130, %cst_26 [0] : vector<1x1xf32> to vector<1xf32>
    %132 = vector.shape_cast %131 : vector<1xf32> to vector<1x1xf32>
    %c0_27 = arith.constant 0 : index
    %c0_28 = arith.constant 0 : index
    %c0_29 = arith.constant 0 : index
    %133 = vector.load %arg4[%c0_27, %c0_28, %c0_29] : memref<1x1x1xf32, #tpu.memory_space<vmem>>, vector<1x1x1xf32>
    %134 = vector.shape_cast %133 : vector<1x1x1xf32> to vector<1x1xf32>
    %135 = vector.shape_cast %132 : vector<1x1xf32> to vector<1x1x1xf32>
    tpu.vector_store %arg4[%c0_27, %c0_28, %c0_29], %135 {strides = array<i32>} : memref<1x1x1xf32, #tpu.memory_space<vmem>>, vector<1x1x1xf32>,
    %cst_30 = arith.constant 1.250000e-01 : f32
    %136 = vector.broadcast %cst_30 : f32 to vector<1x256xf32>
    %137 = arith.mulf %81, %136 : vector<1x256xf32>
    %cst_31 = arith.constant 1.250000e-01 : f32
    %138 = vector.broadcast %cst_31 : f32 to vector<1x256xf32>
    %139 = arith.mulf %90, %138 : vector<1x256xf32>
    %cst_32 = arith.constant 5.000000e-01 : f32
    %140 = vector.broadcast %cst_32 : f32 to vector<1x256xf32>
    %141 = arith.cmpf ogt, %39, %140 : vector<1x256xf32>
    %cst_33 = arith.constant -1.000000e+04 : f32
    %142 = vector.broadcast %cst_33 : f32 to vector<1x256xf32>
    %143 = arith.select %141, %137, %142 : vector<1x256xi1>, vector<1x256xf32>
    %c0_34 = arith.constant 0 : index
    %c0_35 = arith.constant 0 : index
    %c0_36 = arith.constant 0 : index
    %144 = vector.load %arg3[%c0_34, %c0_35, %c0_36] : memref<1x2x256xf32, #tpu.memory_space<vmem>>, vector<1x1x256xf32>
    %145 = vector.shape_cast %144 : vector<1x1x256xf32> to vector<1x256xf32>
    %146 = vector.shape_cast %143 : vector<1x256xf32> to vector<1x1x256xf32>
    tpu.vector_store %arg3[%c0_34, %c0_35, %c0_36], %146 {strides = array<i32>} : memref<1x2x256xf32, #tpu.memory_space<vmem>>, vector<1x1x256xf32>,
    %c0_37 = arith.constant 0 : index
    %c1_38 = arith.constant 1 : index
    %c0_39 = arith.constant 0 : index
    %147 = vector.load %arg3[%c0_37, %c1_38, %c0_39] : memref<1x2x256xf32, #tpu.memory_space<vmem>>, vector<1x1x256xf32>
    %148 = vector.shape_cast %147 : vector<1x1x256xf32> to vector<1x256xf32>
    %149 = vector.shape_cast %139 : vector<1x256xf32> to vector<1x1x256xf32>
    tpu.vector_store %arg3[%c0_37, %c1_38, %c0_39], %149 {strides = array<i32>} : memref<1x2x256xf32, #tpu.memory_space<vmem>>, vector<1x1x256xf32>,
    return
  }
  func.func @transform_0(%arg0: i32, %arg1: memref<3x24xf32, #tpu.memory_space<smem>>) -> (i32, i32) {
    %c0_i32 = arith.constant 0 : i32
    %c0_i32_0 = arith.constant 0 : i32
    %c0_i32_1 = arith.constant 0 : i32
    return %c0_i32, %c0_i32_0 : i32, i32
  }
  func.func @transform_1(%arg0: i32, %arg1: memref<3x24xf32, #tpu.memory_space<smem>>) -> (i32, i32, i32) {
    %c0_i32 = arith.constant 0 : i32
    %c0_i32_0 = arith.constant 0 : i32
    %c0_i32_1 = arith.constant 0 : i32
    return %arg0, %c0_i32, %c0_i32_0 : i32, i32, i32
  }
  func.func @transform_2(%arg0: i32, %arg1: memref<3x24xf32, #tpu.memory_space<smem>>) -> (i32, i32, i32) {
    %c0_i32 = arith.constant 0 : i32
    %c0_i32_0 = arith.constant 0 : i32
    %c0_i32_1 = arith.constant 0 : i32
    return %arg0, %c0_i32, %c0_i32_0 : i32, i32, i32
  }
}

module attributes {stable_mosaic.version = 11 : i64} {
  func.func @_splat_kernel(%arg0: i32, %arg1: memref<1x256x2xf32, #tpu.memory_space<vmem>>, %arg2: memref<2x1024xf32, #tpu.memory_space<vmem>>, %arg3: memref<1x2x1024xf32, #tpu.memory_space<vmem>>, %arg4: memref<1x1x1024xf32, #tpu.memory_space<vmem>>, %arg5: memref<1x1x1xf32, #tpu.memory_space<vmem>>) attributes {dimension_semantics = [#tpu.dimension_semantics<parallel>], iteration_bounds = array<i64: 3>, scalar_prefetch = 0 : i64, scratch_operands = 0 : i64, tpu.core_type = #tpu.core_type<tc>, window_params = [{transform_indices = @transform_0, window_bounds = array<i64: 1, 256, 2>}, {pipeline_mode = #tpu.pipeline_mode<synchronous>, transform_indices = @transform_1, window_bounds = array<i64: 2, 1024>}, {transform_indices = @transform_2, window_bounds = array<i64: 1, 2, 1024>}, {transform_indices = @transform_3, window_bounds = array<i64: 1, 1, 1024>}, {transform_indices = @transform_4, window_bounds = array<i64: 1, 1, 1>}]} {
    %c0 = arith.constant 0 : index
    %c0_0 = arith.constant 0 : index
    %0 = vector.load %arg2[%c0, %c0_0] : memref<2x1024xf32, #tpu.memory_space<vmem>>, vector<1x1024xf32>
    %c1 = arith.constant 1 : index
    %c0_1 = arith.constant 0 : index
    %1 = vector.load %arg2[%c1, %c0_1] : memref<2x1024xf32, #tpu.memory_space<vmem>>, vector<1x1024xf32>
    %cst = arith.constant 1.000000e+30 : f32
    %2 = vector.broadcast %cst : f32 to vector<1x1024xf32>
    %c0_i32 = arith.constant 0 : i32
    %c128_i32 = arith.constant 128 : i32
    %3 = arith.muli %c0_i32, %c128_i32 : i32
    %4 = tpu.assume_multiple %3, 128 : i32
    %c0_2 = arith.constant 0 : index
    %5 = arith.index_cast %4 : i32 to index
    %c0_3 = arith.constant 0 : index
    %6 = vector.load %arg1[%c0_2, %5, %c0_3] : memref<1x256x2xf32, #tpu.memory_space<vmem>>, vector<1x128x2xf32>
    %7 = vector.shape_cast %6 : vector<1x128x2xf32> to vector<128x2xf32>
    %8 = vector.extract_strided_slice %7 {offsets = [0, 0], sizes = [128, 1], strides = [1, 1]} : vector<128x2xf32> to vector<128x1xf32>
    %9 = vector.broadcast %8 : vector<128x1xf32> to vector<128x1024xf32>
    %10 = vector.broadcast %0 : vector<1x1024xf32> to vector<128x1024xf32>
    %11 = arith.subf %9, %10 : vector<128x1024xf32>
    %12 = vector.extract_strided_slice %7 {offsets = [0, 1], sizes = [128, 1], strides = [1, 1]} : vector<128x2xf32> to vector<128x1xf32>
    %13 = vector.broadcast %12 : vector<128x1xf32> to vector<128x1024xf32>
    %14 = vector.broadcast %1 : vector<1x1024xf32> to vector<128x1024xf32>
    %15 = arith.subf %13, %14 : vector<128x1024xf32>
    %16 = arith.mulf %11, %11 : vector<128x1024xf32>
    %17 = arith.mulf %15, %15 : vector<128x1024xf32>
    %18 = arith.addf %16, %17 : vector<128x1024xf32>
    %cst_4 = arith.constant dense<0x7F800000> : vector<1024xf32>
    %19 = vector.multi_reduction <minimumf>, %18, %cst_4 [0] : vector<128x1024xf32> to vector<1024xf32>
    %20 = vector.shape_cast %19 : vector<1024xf32> to vector<1x1024xf32>
    %21 = arith.minimumf %2, %20 : vector<1x1024xf32>
    %c1_i32 = arith.constant 1 : i32
    %c128_i32_5 = arith.constant 128 : i32
    %22 = arith.muli %c1_i32, %c128_i32_5 : i32
    %23 = tpu.assume_multiple %22, 128 : i32
    %c0_6 = arith.constant 0 : index
    %24 = arith.index_cast %23 : i32 to index
    %c0_7 = arith.constant 0 : index
    %25 = vector.load %arg1[%c0_6, %24, %c0_7] : memref<1x256x2xf32, #tpu.memory_space<vmem>>, vector<1x128x2xf32>
    %26 = vector.shape_cast %25 : vector<1x128x2xf32> to vector<128x2xf32>
    %27 = vector.extract_strided_slice %26 {offsets = [0, 0], sizes = [128, 1], strides = [1, 1]} : vector<128x2xf32> to vector<128x1xf32>
    %28 = vector.broadcast %27 : vector<128x1xf32> to vector<128x1024xf32>
    %29 = vector.broadcast %0 : vector<1x1024xf32> to vector<128x1024xf32>
    %30 = arith.subf %28, %29 : vector<128x1024xf32>
    %31 = vector.extract_strided_slice %26 {offsets = [0, 1], sizes = [128, 1], strides = [1, 1]} : vector<128x2xf32> to vector<128x1xf32>
    %32 = vector.broadcast %31 : vector<128x1xf32> to vector<128x1024xf32>
    %33 = vector.broadcast %1 : vector<1x1024xf32> to vector<128x1024xf32>
    %34 = arith.subf %32, %33 : vector<128x1024xf32>
    %35 = arith.mulf %30, %30 : vector<128x1024xf32>
    %36 = arith.mulf %34, %34 : vector<128x1024xf32>
    %37 = arith.addf %35, %36 : vector<128x1024xf32>
    %cst_8 = arith.constant dense<0x7F800000> : vector<1024xf32>
    %38 = vector.multi_reduction <minimumf>, %37, %cst_8 [0] : vector<128x1024xf32> to vector<1024xf32>
    %39 = vector.shape_cast %38 : vector<1024xf32> to vector<1x1024xf32>
    %40 = arith.minimumf %21, %39 : vector<1x1024xf32>
    %c2_i32 = arith.constant 2 : i32
    %cst_9 = arith.constant -2.500000e-01 : f32
    %41 = vector.broadcast %cst_9 : f32 to vector<1x1024xf32>
    %42 = arith.mulf %40, %41 : vector<1x1024xf32>
    %43 = math.exp %42 : vector<1x1024xf32>
    %c0_10 = arith.constant 0 : index
    %c1_11 = arith.constant 1 : index
    %c0_12 = arith.constant 0 : index
    %44 = vector.load %arg3[%c0_10, %c1_11, %c0_12] : memref<1x2x1024xf32, #tpu.memory_space<vmem>>, vector<1x1x1024xf32>
    %45 = vector.shape_cast %44 : vector<1x1x1024xf32> to vector<1x1024xf32>
    %46 = arith.mulf %45, %43 : vector<1x1024xf32>
    %c0_13 = arith.constant 0 : index
    %c0_14 = arith.constant 0 : index
    %c0_15 = arith.constant 0 : index
    %47 = vector.load %arg4[%c0_13, %c0_14, %c0_15] : memref<1x1x1024xf32, #tpu.memory_space<vmem>>, vector<1x1x1024xf32>
    %48 = vector.shape_cast %47 : vector<1x1x1024xf32> to vector<1x1024xf32>
    %49 = vector.shape_cast %46 : vector<1x1024xf32> to vector<1x1x1024xf32>
    tpu.vector_store %arg4[%c0_13, %c0_14, %c0_15], %49 {strides = array<i32>} : memref<1x1x1024xf32, #tpu.memory_space<vmem>>, vector<1x1x1024xf32>,
    %c0_16 = arith.constant 0 : index
    %c0_17 = arith.constant 0 : index
    %c0_18 = arith.constant 0 : index
    %50 = vector.load %arg3[%c0_16, %c0_17, %c0_18] : memref<1x2x1024xf32, #tpu.memory_space<vmem>>, vector<1x1x1024xf32>
    %51 = vector.shape_cast %50 : vector<1x1x1024xf32> to vector<1x1024xf32>
    %52 = arith.subf %46, %51 : vector<1x1024xf32>
    %53 = arith.mulf %52, %52 : vector<1x1024xf32>
    %cst_19 = arith.constant dense<0.000000e+00> : vector<1xf32>
    %54 = vector.multi_reduction <add>, %53, %cst_19 [1] : vector<1x1024xf32> to vector<1xf32>
    %55 = vector.shape_cast %54 : vector<1xf32> to vector<1x1xf32>
    %cst_20 = arith.constant dense<0.000000e+00> : vector<1xf32>
    %56 = vector.multi_reduction <add>, %55, %cst_20 [0] : vector<1x1xf32> to vector<1xf32>
    %57 = vector.shape_cast %56 : vector<1xf32> to vector<1x1xf32>
    %c0_21 = arith.constant 0 : index
    %c0_22 = arith.constant 0 : index
    %c0_23 = arith.constant 0 : index
    %58 = vector.load %arg5[%c0_21, %c0_22, %c0_23] : memref<1x1x1xf32, #tpu.memory_space<vmem>>, vector<1x1x1xf32>
    %59 = vector.shape_cast %58 : vector<1x1x1xf32> to vector<1x1xf32>
    %60 = vector.shape_cast %57 : vector<1x1xf32> to vector<1x1x1xf32>
    tpu.vector_store %arg5[%c0_21, %c0_22, %c0_23], %60 {strides = array<i32>} : memref<1x1x1xf32, #tpu.memory_space<vmem>>, vector<1x1x1xf32>,
    return
  }
  func.func @transform_0(%arg0: i32) -> (i32, i32, i32) {
    %c0_i32 = arith.constant 0 : i32
    %c0_i32_0 = arith.constant 0 : i32
    %c0_i32_1 = arith.constant 0 : i32
    return %arg0, %c0_i32, %c0_i32_0 : i32, i32, i32
  }
  func.func @transform_1(%arg0: i32) -> (i32, i32) {
    %c0_i32 = arith.constant 0 : i32
    %c0_i32_0 = arith.constant 0 : i32
    %c0_i32_1 = arith.constant 0 : i32
    return %c0_i32, %c0_i32_0 : i32, i32
  }
  func.func @transform_2(%arg0: i32) -> (i32, i32, i32) {
    %c0_i32 = arith.constant 0 : i32
    %c0_i32_0 = arith.constant 0 : i32
    %c0_i32_1 = arith.constant 0 : i32
    return %arg0, %c0_i32, %c0_i32_0 : i32, i32, i32
  }
  func.func @transform_3(%arg0: i32) -> (i32, i32, i32) {
    %c0_i32 = arith.constant 0 : i32
    %c0_i32_0 = arith.constant 0 : i32
    %c0_i32_1 = arith.constant 0 : i32
    return %arg0, %c0_i32, %c0_i32_0 : i32, i32, i32
  }
  func.func @transform_4(%arg0: i32) -> (i32, i32, i32) {
    %c0_i32 = arith.constant 0 : i32
    %c0_i32_0 = arith.constant 0 : i32
    %c0_i32_1 = arith.constant 0 : i32
    return %arg0, %c0_i32, %c0_i32_0 : i32, i32, i32
  }
}

</mosaic_0001>

<llo_original>
// kernel: squeeze.19
$region0: #{squeeze.19}
  %s0 = inlined_call_operand.vmem [shape: f32[3,1024], index: 0, kind: input, shape index: {}]
  %s1 = inlined_call_operand.hbm [shape: f32[3,32,32], index: 1, kind: output, shape index: {}]
  $region1: #{squeeze.19} parent=0
    #allocation0 [shape = 'u8[49152]{0}', space=vmem, size = 0xc000, scoped, tag = 'operand span for operand 1']
    #allocation1 [shape = 's32[1]{0}', space=sflag, size = 0x4, scoped, tag = 'scoped memory for squeeze.19']
    #allocation2 [shape = 'u8[32768]{0}', space=vmem, size = 0x8000, scoped, tag = 'scoped mem for input reshape']
    %2 = vsyncpa [#allocation1], 0
    %s4 = sshll.u32 1, 4
    %s5 = ssub.s32 %s4, 1
    %s6 = smul.addr 4, 7
    %s7 = scalar_lea.vmem %s0, %s6
    %v8 = vld [vmem:[%s7] sm:%s5]
    %s9 = scalar_lea.vmem [#allocation2], 56
    %10 = vst [vmem:[%s9] sm:%s5] %v8
    %s11 = smul.addr 4, 6
    %s12 = scalar_lea.vmem %s0, %s11
    %v13 = vld [vmem:[%s12] sm:%s5]
    %s14 = scalar_lea.vmem [#allocation2], 48
    %15 = vst [vmem:[%s14] sm:%s5] %v13
    %s16 = smul.addr 4, 5
    %s17 = scalar_lea.vmem %s0, %s16
    %v18 = vld [vmem:[%s17] sm:%s5]
    %s19 = scalar_lea.vmem [#allocation2], 40
    %20 = vst [vmem:[%s19] sm:%s5] %v18
    %s21 = smul.addr 4, 4
    %s22 = scalar_lea.vmem %s0, %s21
    %v23 = vld [vmem:[%s22] sm:%s5]
    %s24 = scalar_lea.vmem [#allocation2], 32
    %25 = vst [vmem:[%s24] sm:%s5] %v23
    %s26 = smul.addr 4, 3
    %s27 = scalar_lea.vmem %s0, %s26
    %v28 = vld [vmem:[%s27] sm:%s5]
    %s29 = scalar_lea.vmem [#allocation2], 24
    %30 = vst [vmem:[%s29] sm:%s5] %v28
    %s31 = smul.addr 4, 2
    %s32 = scalar_lea.vmem %s0, %s31
    %v33 = vld [vmem:[%s32] sm:%s5]
    %s34 = scalar_lea.vmem [#allocation2], 16
    %35 = vst [vmem:[%s34] sm:%s5] %v33
    %s36 = scalar_lea.vmem %s0, 4
    %v37 = vld [vmem:[%s36] sm:%s5]
    %s38 = scalar_lea.vmem [#allocation2], 8
    %39 = vst [vmem:[%s38] sm:%s5] %v37
    %v40 = vld [vmem:[%s0] sm:%s5]
    %41 = vst [vmem:[#allocation2] sm:%s5] %v40
    %v42 = vld [vmem:[#allocation2] sm:$0x7]
    %vm43 = vcmask 261120
    %44 = vst.msk [vmem:[#allocation0] sm:$0x1] %vm43, %v42
    %s45 = scalar_lea.vmem [#allocation0], 31
    %46 = vst.msk [vmem:[%s45] sm:$0x2] %vm43, %v42
    %s47 = scalar_lea.vmem [#allocation0], 62
    %48 = vst.msk [vmem:[%s47] sm:$0x4] %vm43, %v42
    %s49 = scalar_lea.vmem [#allocation2], 8
    %v50 = vld [vmem:[%s49] sm:$0x7]
    %vm51 = vcmask 261120
    %s52 = scalar_lea.vmem [#allocation0], 4
    %53 = vst.msk [vmem:[%s52] sm:$0x1] %vm51, %v50
    %s54 = scalar_lea.vmem [#allocation0], 35
    %55 = vst.msk [vmem:[%s54] sm:$0x2] %vm51, %v50
    %s56 = scalar_lea.vmem [#allocation0], 66
    %57 = vst.msk [vmem:[%s56] sm:$0x4] %vm51, %v50
    %s58 = scalar_lea.vmem [#allocation2], 16
    %v59 = vld [vmem:[%s58] sm:$0x7]
    %vm60 = vcmask 261120
    %s61 = scalar_lea.vmem [#allocation0], 8
    %62 = vst.msk [vmem:[%s61] sm:$0x1] %vm60, %v59
    %s63 = scalar_lea.vmem [#allocation0], 39
    %64 = vst.msk [vmem:[%s63] sm:$0x2] %vm60, %v59
    %s65 = scalar_lea.vmem [#allocation0], 70
    %66 = vst.msk [vmem:[%s65] sm:$0x4] %vm60, %v59
    %s67 = scalar_lea.vmem [#allocation2], 24
    %v68 = vld [vmem:[%s67] sm:$0x7]
    %vm69 = vcmask 261120
    %s70 = scalar_lea.vmem [#allocation0], 12
    %71 = vst.msk [vmem:[%s70] sm:$0x1] %vm69, %v68
    %s72 = scalar_lea.vmem [#allocation0], 43
    %73 = vst.msk [vmem:[%s72] sm:$0x2] %vm69, %v68
    %s74 = scalar_lea.vmem [#allocation0], 74
    %75 = vst.msk [vmem:[%s74] sm:$0x4] %vm69, %v68
    %s76 = scalar_lea.vmem [#allocation2], 32
    %v77 = vld [vmem:[%s76] sm:$0x7]
    %vm78 = vcmask 261120
    %s79 = scalar_lea.vmem [#allocation0], 16
    %80 = vst.msk [vmem:[%s79] sm:$0x1] %vm78, %v77
    %s81 = scalar_lea.vmem [#allocation0], 47
    %82 = vst.msk [vmem:[%s81] sm:$0x2] %vm78, %v77
    %s83 = scalar_lea.vmem [#allocation0], 78
    %84 = vst.msk [vmem:[%s83] sm:$0x4] %vm78, %v77
    %s85 = scalar_lea.vmem [#allocation2], 40
    %v86 = vld [vmem:[%s85] sm:$0x7]
    %vm87 = vcmask 261120
    %s88 = scalar_lea.vmem [#allocation0], 20
    %89 = vst.msk [vmem:[%s88] sm:$0x1] %vm87, %v86
    %s90 = scalar_lea.vmem [#allocation0], 51
    %91 = vst.msk [vmem:[%s90] sm:$0x2] %vm87, %v86
    %s92 = scalar_lea.vmem [#allocation0], 82
    %93 = vst.msk [vmem:[%s92] sm:$0x4] %vm87, %v86
    %s94 = scalar_lea.vmem [#allocation2], 48
    %v95 = vld [vmem:[%s94] sm:$0x7]
    %vm96 = vcmask 261120
    %s97 = scalar_lea.vmem [#allocation0], 24
    %98 = vst.msk [vmem:[%s97] sm:$0x1] %vm96, %v95
    %s99 = scalar_lea.vmem [#allocation0], 55
    %100 = vst.msk [vmem:[%s99] sm:$0x2] %vm96, %v95
    %s101 = scalar_lea.vmem [#allocation0], 86
    %102 = vst.msk [vmem:[%s101] sm:$0x4] %vm96, %v95
    %s103 = scalar_lea.vmem [#allocation2], 56
    %v104 = vld [vmem:[%s103] sm:$0x7]
    %vm105 = vcmask 261120
    %s106 = scalar_lea.vmem [#allocation0], 28
    %107 = vst.msk [vmem:[%s106] sm:$0x1] %vm105, %v104
    %s108 = scalar_lea.vmem [#allocation0], 59
    %109 = vst.msk [vmem:[%s108] sm:$0x2] %vm105, %v104
    %s110 = scalar_lea.vmem [#allocation0], 90
    %111 = vst.msk [vmem:[%s110] sm:$0x4] %vm105, %v104
    %v112 = vld [vmem:[#allocation2] ss:$8 sm:$0xf]
    %v113 = vld [vmem:[#allocation2] ss:$8 sm:$0xf0]
    %vm114 = vcmask 1047556
    %v115 = vsel %vm114, %v113, %v112
    %116 = vrot.lane.b32.xlu0 %v115, 96
    %v117 = vpop.permute.xlu0 %116
    %vm118 = vcmask 261120
    %s119 = scalar_lea.vmem [#allocation0], 1
    %120 = vst.msk [vmem:[%s119] ss:$4 sm:$0xff] %vm118, %v117
    %s121 = scalar_lea.vmem [#allocation2], 1
    %v122 = vld [vmem:[%s121] ss:$8 sm:$0xf]
    %s123 = scalar_lea.vmem [#allocation2], 1
    %v124 = vld [vmem:[%s123] ss:$8 sm:$0xf0]
    %vm125 = vcmask 1047556
    %v126 = vsel %vm125, %v124, %v122
    %127 = vrot.lane.b32.xlu0 %v126, 96
    %v128 = vpop.permute.xlu0 %127
    %vm129 = vcmask 261120
    %s130 = scalar_lea.vmem [#allocation0], 33
    %131 = vst.msk [vmem:[%s130] ss:$4 sm:$0xff] %vm129, %v128
    %s132 = scalar_lea.vmem [#allocation2], 2
    %v133 = vld [vmem:[%s132] ss:$8 sm:$0xf]
    %s134 = scalar_lea.vmem [#allocation2], 2
    %v135 = vld [vmem:[%s134] ss:$8 sm:$0xf0]
    %vm136 = vcmask 1047556
    %v137 = vsel %vm136, %v135, %v133
    %138 = vrot.lane.b32.xlu0 %v137, 96
    %v139 = vpop.permute.xlu0 %138
    %vm140 = vcmask 261120
    %s141 = scalar_lea.vmem [#allocation0], 65
    %142 = vst.msk [vmem:[%s141] ss:$4 sm:$0xff] %vm140, %v139
    %v143 = vld [vmem:[#allocation2] ss:$8 sm:$0xf]
    %v144 = vld [vmem:[#allocation2] ss:$8 sm:$0xf0]
    %vm145 = vcmask 1047556
    %v146 = vsel %vm145, %v144, %v143
    %147 = vrot.lane.b32.xlu0 %v146, 64
    %v148 = vpop.permute.xlu0 %147
    %vm149 = vcmask 261120
    %s150 = scalar_lea.vmem [#allocation0], 2
    %151 = vst.msk [vmem:[%s150] ss:$4 sm:$0xff] %vm149, %v148
    %s152 = scalar_lea.vmem [#allocation2], 1
    %v153 = vld [vmem:[%s152] ss:$8 sm:$0xf]
    %s154 = scalar_lea.vmem [#allocation2], 1
    %v155 = vld [vmem:[%s154] ss:$8 sm:$0xf0]
    %vm156 = vcmask 1047556
    %v157 = vsel %vm156, %v155, %v153
    %158 = vrot.lane.b32.xlu0 %v157, 64
    %v159 = vpop.permute.xlu0 %158
    %vm160 = vcmask 261120
    %s161 = scalar_lea.vmem [#allocation0], 34
    %162 = vst.msk [vmem:[%s161] ss:$4 sm:$0xff] %vm160, %v159
    %s163 = scalar_lea.vmem [#allocation2], 2
    %v164 = vld [vmem:[%s163] ss:$8 sm:$0xf]
    %s165 = scalar_lea.vmem [#allocation2], 2
    %v166 = vld [vmem:[%s165] ss:$8 sm:$0xf0]
    %vm167 = vcmask 1047556
    %v168 = vsel %vm167, %v166, %v164
    %169 = vrot.lane.b32.xlu0 %v168, 64
    %v170 = vpop.permute.xlu0 %169
    %vm171 = vcmask 261120
    %s172 = scalar_lea.vmem [#allocation0], 66
    %173 = vst.msk [vmem:[%s172] ss:$4 sm:$0xff] %vm171, %v170
    %v174 = vld [vmem:[#allocation2] ss:$8 sm:$0xf]
    %v175 = vld [vmem:[#allocation2] ss:$8 sm:$0xf0]
    %vm176 = vcmask 1047556
    %v177 = vsel %vm176, %v175, %v174
    %178 = vrot.lane.b32.xlu0 %v177, 32
    %v179 = vpop.permute.xlu0 %178
    %vm180 = vcmask 261120
    %s181 = scalar_lea.vmem [#allocation0], 3
    %182 = vst.msk [vmem:[%s181] ss:$4 sm:$0xff] %vm180, %v179
    %s183 = scalar_lea.vmem [#allocation2], 1
    %v184 = vld [vmem:[%s183] ss:$8 sm:$0xf]
    %s185 = scalar_lea.vmem [#allocation2], 1
    %v186 = vld [vmem:[%s185] ss:$8 sm:$0xf0]
    %vm187 = vcmask 1047556
    %v188 = vsel %vm187, %v186, %v184
    %189 = vrot.lane.b32.xlu0 %v188, 32
    %v190 = vpop.permute.xlu0 %189
    %vm191 = vcmask 261120
    %s192 = scalar_lea.vmem [#allocation0], 35
    %193 = vst.msk [vmem:[%s192] ss:$4 sm:$0xff] %vm191, %v190
    %s194 = scalar_lea.vmem [#allocation2], 2
    %v195 = vld [vmem:[%s194] ss:$8 sm:$0xf]
    %s196 = scalar_lea.vmem [#allocation2], 2
    %v197 = vld [vmem:[%s196] ss:$8 sm:$0xf0]
    %vm198 = vcmask 1047556
    %v199 = vsel %vm198, %v197, %v195
    %200 = vrot.lane.b32.xlu0 %v199, 32
    %v201 = vpop.permute.xlu0 %200
    %vm202 = vcmask 261120
    %s203 = scalar_lea.vmem [#allocation0], 67
    %204 = vst.msk [vmem:[%s203] ss:$4 sm:$0xff] %vm202, %v201
    %s206 = ssub.s32 1536, 1536
    %207 = vsyncadd [#allocation1], %s206
    %s209 = sshll.u32 [#allocation0], 4
    %s210 = int_to_ptr.vmem [resolvable:$true] %s209
    %212 = dma.vmem_to_hbm [thread:$0]  %s210, 1536, %s1, [#allocation1]
    %213 = dma.done [#allocation1], 1536
    %214 = vsyncpa [#allocation1], 1

// kernel: forward.2
$region0: #{forward.2}
  #allocation0 [shape = 'u32[]', space=smem, size = 0x4, offset = 0x4, fixed_abs, tag = 'smem constant byte address 0x4 - core index']
  #allocation1 [shape = 'u32[144,128]{1,0:T(1,128)}', space=vmem, size = 0x12000, scoped, tag = 'internal scratch']
  #allocation2 [shape = 's32[1]{0}', space=sflag, size = 0x4, scoped, tag = 'scoped memory for forward.2']
  #allocation3 [shape = 'u8[2048]{0}', space=smem, size = 0x800, scoped, tag = 'prefetched SMEM operand 0']
  %s0 = inlined_call_operand.vmem [shape: f32[3,24], index: 0, kind: input, shape index: {}]
  %s1 = inlined_call_operand.vmem [shape: f32[8,256], index: 1, kind: input, shape index: {}]
  %s2 = inlined_call_operand.vmem [shape: f32[3,2,256], index: 2, kind: output, shape index: {0}]
  %s3 = inlined_call_operand.vmem [shape: f32[3,1,1], index: 3, kind: output, shape index: {1}]
  %4 = xla_tuple %s2, %s3
  %s5 = sld [smem:[#allocation0]]
  $region45: #{forward.2} parent=0
    _
  %s7 = ssub.s32 1, %s5
  %s8 = scalar_select 0, %s7, %s5
  %s9 = sshll.u32 %s0, 4
  %s10 = int_to_ptr.vmem [resolvable:$true] %s9
  %12 = dma.vmem_to_smem %s10, 64, [#allocation3], [#allocation2]
  %13 = dma.done [#allocation2], 64
  %14 = sfence
  loop: start=0, step=1, limit=5
  $region2: #{forward.2} parent=0 // loop_pre_header
    _
  $region3: #{forward.2} parent=0 // loop_header
    %s16 = sphi 0, %s20
    %p17 = scmp.ge.s32.totalorder %s16, 5
    %s24 = sphi 0, %s24
    %s26 = sphi 0, %s24
    %s27 = sphi 0, %s26
    %s41 = sphi 0, %s27
    %s47 = sphi 0, %s49
    %s50 = sphi 0, %s47
    %s51 = sphi 0, %s50
    %s67 = sphi 0, %s51
    %s73 = sphi 0, %s75
    %s76 = sphi 0, %s73
    %s77 = sphi 0, %s76
    %s93 = sphi 0, %s77
  $region4: #{forward.2} parent=0 // loop_header_branch
    %19 = sbr.rel (%p17) target = $region8
  $region5: #{forward.2} parent=0 // loop_body
    %s21 = ssub.s32 %s16, 1
    %s22 = ssub.s32 %s16, 2
    %s23 = sadd.s32 %s16, 1
    %s25 = sadd.s32 %s24, 1
    %p28 = scmp.eq.s32.totalorder %s16, 2
    %p29 = scmp.ne.s32.totalorder %s24, %s26
    %p30 = scmp.eq.s32.totalorder %s16, 0
    %p31 = por %p29, %p30
    %p32 = scmp.ne.s32.totalorder %s24, %s26
    %p33 = scmp.eq.s32.totalorder %s21, 2
    %p34 = por %p32, %p33
    %p35 = scmp.ne.s32.totalorder %s26, %s27
    %p36 = scmp.eq.s32.totalorder %s21, 0
    %p37 = por %p35, %p36
    %p38 = scmp.ne.s32.totalorder %s26, %s27
    %p39 = scmp.eq.s32.totalorder %s22, 2
    %p40 = por %p38, %p39
    %p42 = scmp.ne.s32.totalorder %s27, %s41
    %p43 = scmp.eq.s32.totalorder %s22, 0
    %p44 = por %p42, %p43
    %s45 = ssub.s32 %s16, %s23
    %p46 = scmp.eq.s32.totalorder %s45, 0
    %s48 = sadd.s32 %s47, 1
    %s49 = scalar_select %p46, %s47, %s48
    %p52 = pneg %p46
    %p53 = scmp.eq.s32.totalorder %s16, 2
    %p54 = por %p52, %p53
    %p55 = scmp.ne.s32.totalorder %s47, %s50
    %p56 = scmp.eq.s32.totalorder %s16, 0
    %p57 = por %p55, %p56
    %p58 = scmp.ne.s32.totalorder %s47, %s50
    %p59 = scmp.eq.s32.totalorder %s21, 2
    %p60 = por %p58, %p59
    %p61 = scmp.ne.s32.totalorder %s50, %s51
    %p62 = scmp.eq.s32.totalorder %s21, 0
    %p63 = por %p61, %p62
    %p64 = scmp.ne.s32.totalorder %s50, %s51
    %p65 = scmp.eq.s32.totalorder %s22, 2
    %p66 = por %p64, %p65
    %p68 = scmp.ne.s32.totalorder %s51, %s67
    %p69 = scmp.eq.s32.totalorder %s22, 0
    %p70 = por %p68, %p69
    %s71 = ssub.s32 %s16, %s23
    %p72 = scmp.eq.s32.totalorder %s71, 0
    %s74 = sadd.s32 %s73, 1
    %s75 = scalar_select %p72, %s73, %s74
    %p78 = pneg %p72
    %p79 = scmp.eq.s32.totalorder %s16, 2
    %p80 = por %p78, %p79
    %p81 = scmp.ne.s32.totalorder %s73, %s76
    %p82 = scmp.eq.s32.totalorder %s16, 0
    %p83 = por %p81, %p82
    %p84 = scmp.ne.s32.totalorder %s73, %s76
    %p85 = scmp.eq.s32.totalorder %s21, 2
    %p86 = por %p84, %p85
    %p87 = scmp.ne.s32.totalorder %s76, %s77
    %p88 = scmp.eq.s32.totalorder %s21, 0
    %p89 = por %p87, %p88
    %p90 = scmp.ne.s32.totalorder %s76, %s77
    %p91 = scmp.eq.s32.totalorder %s22, 2
    %p92 = por %p90, %p91
    %p94 = scmp.ne.s32.totalorder %s77, %s93
    %p95 = scmp.eq.s32.totalorder %s22, 0
    %p96 = por %p94, %p95
    %p97 = scmp.le.s32.totalorder 1, %s16
    %p98 = scmp.lt.s32.totalorder %s16, 4
    %p99 = pnand %p97, %p98
    %p100 = pneg %p99
    // Predicated region
    $region9: #{forward.2} parent=5 // pred_check
      _
    $region10: #{forward.2} parent=5 // pred_check_branch
      %102 = sbr.rel (%p99) target = $region12
    $region11: #{forward.2} parent=5 // pred_region
      %s103 = ssub.s32 %s16, 1
      // Predicated region
      $region13: #{forward.2} parent=11 // pred_check
        %p104 = pneg %p37
      $region14: #{forward.2} parent=11 // pred_check_branch
        %106 = sbr.rel (%p104) target = $region16
      $region15: #{forward.2} parent=11 // pred_region
        _
      $region16: #{forward.2} parent=11 // pred_fallthru
        _
    $region12: #{forward.2} parent=5 // pred_fallthru
      _
    %p107 = scmp.lt.s32.totalorder %s16, 3
    // Predicated region
    $region17: #{forward.2} parent=5 // pred_check
      %p108 = pneg %p107
    $region18: #{forward.2} parent=5 // pred_check_branch
      %110 = sbr.rel (%p108) target = $region20
    $region19: #{forward.2} parent=5 // pred_region
      _
    $region20: #{forward.2} parent=5 // pred_fallthru
      _
    %p111 = scmp.le.s32.totalorder 1, %s16
    %p112 = scmp.lt.s32.totalorder %s16, 4
    %p113 = pnand %p111, %p112
    %p114 = pneg %p113
    // Predicated region
    $region21: #{forward.2} parent=5 // pred_check
      _
    $region22: #{forward.2} parent=5 // pred_check_branch
      %116 = sbr.rel (%p113) target = $region24
    $region23: #{forward.2} parent=5 // pred_region
      %s117 = ssub.s32 %s16, 1
      %p118 = pneg %p37
      %p119 = pneg %p34
      %p120 = pneg %p63
      %p121 = pneg %p60
      %p122 = scmp.lt.s32.totalorder %s21, 2
      %s123 = scalar_select %p122, %s21, 2
      %s124 = smul.addr %s123, 2
      %s125 = smul.addr %s124, 2
      %s126 = scalar_lea.vmem %s2, %s125
      %p127 = pneg %p89
      %p128 = pneg %p86
      %p129 = scmp.lt.s32.totalorder %s21, 2
      %s130 = scalar_select %p129, %s21, 2
      %s131 = scalar_lea.vmem %s3, %s130
      %p132 = scmp.lt.s32.totalorder %s21, 2
      %s133 = scalar_select %p132, %s21, 2
      %s134 = smul.addr %s133, 2
      %s135 = smul.addr %s134, 2
      %s136 = scalar_lea.vmem %s2, %s135
      %p137 = scmp.lt.s32.totalorder %s21, 2
      %s138 = scalar_select %p137, %s21, 2
      %s139 = scalar_lea.vmem %s3, %s138
      %s140 = smul.u32 %s21, 128
      %s141 = sld [smem:[#allocation3 + %s140]]
      %s142 = sadd.s32 %s140, 1
      %s143 = sld [smem:[#allocation3 + %s142]]
      %s144 = sadd.s32 %s140, 2
      %s145 = sld [smem:[#allocation3 + %s144]]
      %s146 = sadd.s32 %s140, 3
      %s147 = sld [smem:[#allocation3 + %s146]]
      %s148 = sadd.s32 %s140, 4
      %s149 = sld [smem:[#allocation3 + %s148]]
      %s150 = sadd.s32 %s140, 5
      %s151 = sld [smem:[#allocation3 + %s150]]
      %s152 = sadd.s32 %s140, 6
      %s153 = sld [smem:[#allocation3 + %s152]]
      %s154 = sadd.s32 %s140, 7
      %s155 = sld [smem:[#allocation3 + %s154]]
      %s156 = sadd.s32 %s140, 8
      %s157 = sld [smem:[#allocation3 + %s156]]
      %s158 = sadd.s32 %s140, 9
      %s159 = sld [smem:[#allocation3 + %s158]]
      %s160 = sadd.s32 %s140, 10
      %s161 = sld [smem:[#allocation3 + %s160]]
      %s162 = sadd.s32 %s140, 11
      %s163 = sld [smem:[#allocation3 + %s162]]
      %s164 = sadd.s32 %s140, 12
      %s165 = sld [smem:[#allocation3 + %s164]]
      %s166 = sadd.s32 %s140, 13
      %s167 = sld [smem:[#allocation3 + %s166]]
      %s168 = sadd.s32 %s140, 14
      %s169 = sld [smem:[#allocation3 + %s168]]
      %s170 = sadd.s32 %s140, 15
      %s171 = sld [smem:[#allocation3 + %s170]]
      %s172 = sadd.s32 %s140, 16
      %s173 = sld [smem:[#allocation3 + %s172]]
      %s174 = sadd.s32 %s140, 17
      %s175 = sld [smem:[#allocation3 + %s174]]
      %v176 = vld [vmem:[%s1] ss:$8 sm:$0x3]
      %s177 = scalar_lea.vmem %s1, 1
      %v178 = vld [vmem:[%s177] ss:$8 sm:$0x3]
      %s179 = scalar_lea.vmem %s1, 2
      %v180 = vld [vmem:[%s179] ss:$8 sm:$0x3]
      %s181 = scalar_lea.vmem %s1, 3
      %v182 = vld [vmem:[%s181] ss:$8 sm:$0x3]
      %v183 = vstv %s141
      %v184 = vmul.f32 %v176, %v183
      %v185 = vstv %s147
      %v186 = vmul.f32 %v178, %v185
      %v187 = vadd.f32 %v184, %v186
      %v188 = vstv %s153
      %v189 = vmul.f32 %v180, %v188
      %v190 = vadd.f32 %v187, %v189
      %v191 = vstv %s159
      %v192 = vadd.f32 %v190, %v191
      %v193 = vstv %s143
      %v194 = vmul.f32 %v176, %v193
      %v195 = vstv %s149
      %v196 = vmul.f32 %v178, %v195
      %v197 = vadd.f32 %v194, %v196
      %v198 = vstv %s155
      %v199 = vmul.f32 %v180, %v198
      %v200 = vadd.f32 %v197, %v199
      %v201 = vstv %s161
      %v202 = vadd.f32 %v200, %v201
      %v203 = vstv %s145
      %v204 = vmul.f32 %v176, %v203
      %v205 = vstv %s151
      %v206 = vmul.f32 %v178, %v205
      %v207 = vadd.f32 %v204, %v206
      %v208 = vstv %s157
      %v209 = vmul.f32 %v180, %v208
      %v210 = vadd.f32 %v207, %v209
      %v211 = vstv %s163
      %v212 = vadd.f32 %v210, %v211
      %v213 = vadd.f32 %v212, 1e-09
      %v214 = vrcp.pop %v213
      %v215 = vmul.f32 %v192, %v214
      %v216 = vmul.f32 %v202, %v214
      %v217 = vstv %s165
      %v218 = vmul.f32 %v215, %v217
      %v219 = vstv %s167
      %v220 = vmul.f32 %v216, %v219
      %v221 = vadd.f32 %v218, %v220
      %v222 = vstv %s169
      %v223 = vadd.f32 %v221, %v222
      %v224 = vstv %s171
      %v225 = vmul.f32 %v215, %v224
      %v226 = vstv %s173
      %v227 = vmul.f32 %v216, %v226
      %v228 = vadd.f32 %v225, %v227
      %v229 = vstv %s175
      %v230 = vadd.f32 %v228, %v229
      %v231 = vsub.f32 256.0, %v230
      %v232 = vsub.f32 %v223, 128.0
      %v233 = vmul.f32 %v232, 0.0078125
      %v234 = vsub.f32 %v231, 128.0
      %v235 = vmul.f32 %v234, 0.0078125
      %v236 = vsub.f32 %v233, 1.0
      %v237 = vmax.f32 %v236, 0.0
      %v238 = vsub.f32 %v235, 1.0
      %v239 = vmax.f32 %v238, 0.0
      %v240 = vadd.f32 %v237, %v239
      %v241 = vsub.f32 -1.0, %v233
      %v242 = vmax.f32 %v241, 0.0
      %v243 = vadd.f32 %v240, %v242
      %v244 = vsub.f32 -1.0, %v235
      %v245 = vmax.f32 %v244, 0.0
      %v246 = vadd.f32 %v243, %v245
      %v247 = vsub.f32 0.0, %v212
      %v248 = vmax.f32 %v247, 0.0
      %v249 = vadd.f32 %v246, %v248
      %v250 = vsub.f32 %v212, 200.0
      %v251 = vmax.f32 %v250, 0.0
      %v252 = vadd.f32 %v249, %v251
      %v253 = vmul.f32 %v252, %v182
      %v255 = vlaneseq
      %v256 = vshrl.u32 %v255, 7
      %v257 = vsub.s32 0, %v256
      %v258 = vrot.slane %v253, %v257
      %v259 = vlaneseq
      %v260 = vshrl.u32 %v259, 7
      %v261 = vsub.s32 1, %v260
      %v262 = vrot.slane %v253, %v261
      %vm265 = vcmask 1040384
      %v266 = vsel %vm265, %v258, 0.0
      %v267 = vsel %vm265, %v262, 0.0
      %v268 = vadd.f32 %v266, %v267
      %269 = vadd.xlane.f32.xlu0 %v268
      %v270 = vpop.xlane.xlu0 %269
      %v271 = vadd.f32 %v270, 0.0
      %vm272 = vcmask 0
      %273 = vst.msk [vmem:[%s139] sm:$0x1] %vm272, %v271
      %v274 = vmul.f32 %v223, 0.125
      %v275 = vmul.f32 %v231, 0.125
      %vm276 = vcmp.gt.f32.partialorder %v182, 0.5
      %v277 = vsel %vm276, %v274, -10000.0
      %v278 = vlaneseq
      %vm279 = vcmp.ge.s32.totalorder %v278, 0
      %vm280 = vcmp.lt.s32.totalorder %v278, 256
      %vm281 = vmand %vm279, %vm280
      %282 = vst.msk [vmem:[%s136] ss:$2 sm:$0x3] %vm281, %v277
      %s283 = scalar_lea.vmem %s136, 1
      %284 = vst.msk [vmem:[%s283] ss:$2 sm:$0x3] %vm281, %v275
      %p285 = scmp.lt.s32.totalorder %s21, 2
      %s286 = scalar_select %p285, %s21, 2
      %s287 = smul.addr %s286, 2
      %s288 = smul.addr %s287, 2
      %s289 = scalar_lea.vmem %s2, %s288
      %p290 = scmp.lt.s32.totalorder %s21, 2
      %s291 = scalar_select %p290, %s21, 2
      %s292 = scalar_lea.vmem %s3, %s291
      // Predicated region
      $region25: #{forward.2} parent=23 // pred_check
        %p293 = pneg %p60
      $region26: #{forward.2} parent=23 // pred_check_branch
        %295 = sbr.rel (%p293) target = $region28
      $region27: #{forward.2} parent=23 // pred_region
        _
      $region28: #{forward.2} parent=23 // pred_fallthru
        _
      // Predicated region
      $region29: #{forward.2} parent=23 // pred_check
        %p296 = pneg %p86
      $region30: #{forward.2} parent=23 // pred_check_branch
        %298 = sbr.rel (%p296) target = $region32
      $region31: #{forward.2} parent=23 // pred_region
        _
      $region32: #{forward.2} parent=23 // pred_fallthru
        _
    $region24: #{forward.2} parent=5 // pred_fallthru
      _
    %p299 = scmp.le.s32.totalorder 2, %s16
    // Predicated region
    $region33: #{forward.2} parent=5 // pred_check
      %p300 = pneg %p299
    $region34: #{forward.2} parent=5 // pred_check_branch
      %302 = sbr.rel (%p300) target = $region36
    $region35: #{forward.2} parent=5 // pred_region
      %s303 = ssub.s32 %s16, 2
      // Predicated region
      $region37: #{forward.2} parent=35 // pred_check
        %p304 = pneg %p66
      $region38: #{forward.2} parent=35 // pred_check_branch
        %306 = sbr.rel (%p304) target = $region40
      $region39: #{forward.2} parent=35 // pred_region
        %p307 = scmp.lt.s32.totalorder %s22, 2
        %s308 = scalar_select %p307, %s22, 2
        %s309 = smul.addr %s308, 2
        %s310 = smul.addr %s309, 2
        %s311 = scalar_lea.vmem %s2, %s310
      $region40: #{forward.2} parent=35 // pred_fallthru
        _
      // Predicated region
      $region41: #{forward.2} parent=35 // pred_check
        %p312 = pneg %p92
      $region42: #{forward.2} parent=35 // pred_check_branch
        %314 = sbr.rel (%p312) target = $region44
      $region43: #{forward.2} parent=35 // pred_region
        %p315 = scmp.lt.s32.totalorder %s22, 2
        %s316 = scalar_select %p315, %s22, 2
        %s317 = scalar_lea.vmem %s3, %s316
      $region44: #{forward.2} parent=35 // pred_fallthru
        _
    $region36: #{forward.2} parent=5 // pred_fallthru
      _
  $region6: #{forward.2} parent=0 // loop_footer
    %s20 = sadd.s32 1, %s16
  $region7: #{forward.2} parent=0 // loop_footer_branch
    %15 = sbr.rel target = $region3
  $region8: #{forward.2} parent=0 // loop_exit
    _

// kernel: forward.3
$region0: #{forward.3}
  #allocation0 [shape = 'u32[]', space=smem, size = 0x4, offset = 0x4, fixed_abs, tag = 'smem constant byte address 0x4 - core index']
  #allocation1 [shape = 'u32[144,128]{1,0:T(1,128)}', space=vmem, size = 0x12000, scoped, tag = 'internal scratch']
  %s0 = inlined_call_operand.vmem [shape: f32[3,256,2], index: 0, kind: input, shape index: {}]
  %s1 = inlined_call_operand.vmem [shape: f32[2,1024], index: 1, kind: input, shape index: {}]
  %s2 = inlined_call_operand.vmem [shape: f32[3,2,1024], index: 2, kind: input, shape index: {}]
  %s3 = inlined_call_operand.vmem [shape: f32[3,1,1024], index: 3, kind: output, shape index: {0}]
  %s4 = inlined_call_operand.vmem [shape: f32[3,1,1], index: 4, kind: output, shape index: {1}]
  %5 = xla_tuple %s3, %s4
  %s6 = sld [smem:[#allocation0]]
  $region53: #{forward.3} parent=0
    _
  %s8 = ssub.s32 1, %s6
  %s9 = scalar_select 0, %s8, %s6
  loop: start=0, step=1, limit=5
  $region2: #{forward.3} parent=0 // loop_pre_header
    _
  $region3: #{forward.3} parent=0 // loop_header
    %s11 = sphi 0, %s15
    %p12 = scmp.ge.s32.totalorder %s11, 5
    %s21 = sphi 0, %s23
    %s24 = sphi 0, %s21
    %s25 = sphi 0, %s24
    %s41 = sphi 0, %s25
    %s45 = sphi 0, %s45
    %s47 = sphi 0, %s45
    %s48 = sphi 0, %s47
    %s62 = sphi 0, %s48
    %s68 = sphi 0, %s70
    %s71 = sphi 0, %s68
    %s72 = sphi 0, %s71
    %s88 = sphi 0, %s72
    %s94 = sphi 0, %s96
    %s97 = sphi 0, %s94
    %s98 = sphi 0, %s97
    %s114 = sphi 0, %s98
    %s120 = sphi 0, %s122
    %s123 = sphi 0, %s120
    %s124 = sphi 0, %s123
    %s140 = sphi 0, %s124
  $region4: #{forward.3} parent=0 // loop_header_branch
    %14 = sbr.rel (%p12) target = $region8
  $region5: #{forward.3} parent=0 // loop_body
    %s16 = ssub.s32 %s11, 1
    %s17 = ssub.s32 %s11, 2
    %s18 = sadd.s32 %s11, 1
    %s19 = ssub.s32 %s11, %s18
    %p20 = scmp.eq.s32.totalorder %s19, 0
    %s22 = sadd.s32 %s21, 1
    %s23 = scalar_select %p20, %s21, %s22
    %p26 = pneg %p20
    %p27 = scmp.eq.s32.totalorder %s11, 2
    %p28 = por %p26, %p27
    %p29 = scmp.ne.s32.totalorder %s21, %s24
    %p30 = scmp.eq.s32.totalorder %s11, 0
    %p31 = por %p29, %p30
    %p32 = scmp.ne.s32.totalorder %s21, %s24
    %p33 = scmp.eq.s32.totalorder %s16, 2
    %p34 = por %p32, %p33
    %p35 = scmp.ne.s32.totalorder %s24, %s25
    %p36 = scmp.eq.s32.totalorder %s16, 0
    %p37 = por %p35, %p36
    %p38 = scmp.ne.s32.totalorder %s24, %s25
    %p39 = scmp.eq.s32.totalorder %s17, 2
    %p40 = por %p38, %p39
    %p42 = scmp.ne.s32.totalorder %s25, %s41
    %p43 = scmp.eq.s32.totalorder %s17, 0
    %p44 = por %p42, %p43
    %s46 = sadd.s32 %s45, 1
    %p49 = scmp.eq.s32.totalorder %s11, 2
    %p50 = scmp.ne.s32.totalorder %s45, %s47
    %p51 = scmp.eq.s32.totalorder %s11, 0
    %p52 = por %p50, %p51
    %p53 = scmp.ne.s32.totalorder %s45, %s47
    %p54 = scmp.eq.s32.totalorder %s16, 2
    %p55 = por %p53, %p54
    %p56 = scmp.ne.s32.totalorder %s47, %s48
    %p57 = scmp.eq.s32.totalorder %s16, 0
    %p58 = por %p56, %p57
    %p59 = scmp.ne.s32.totalorder %s47, %s48
    %p60 = scmp.eq.s32.totalorder %s17, 2
    %p61 = por %p59, %p60
    %p63 = scmp.ne.s32.totalorder %s48, %s62
    %p64 = scmp.eq.s32.totalorder %s17, 0
    %p65 = por %p63, %p64
    %s66 = ssub.s32 %s11, %s18
    %p67 = scmp.eq.s32.totalorder %s66, 0
    %s69 = sadd.s32 %s68, 1
    %s70 = scalar_select %p67, %s68, %s69
    %p73 = pneg %p67
    %p74 = scmp.eq.s32.totalorder %s11, 2
    %p75 = por %p73, %p74
    %p76 = scmp.ne.s32.totalorder %s68, %s71
    %p77 = scmp.eq.s32.totalorder %s11, 0
    %p78 = por %p76, %p77
    %p79 = scmp.ne.s32.totalorder %s68, %s71
    %p80 = scmp.eq.s32.totalorder %s16, 2
    %p81 = por %p79, %p80
    %p82 = scmp.ne.s32.totalorder %s71, %s72
    %p83 = scmp.eq.s32.totalorder %s16, 0
    %p84 = por %p82, %p83
    %p85 = scmp.ne.s32.totalorder %s71, %s72
    %p86 = scmp.eq.s32.totalorder %s17, 2
    %p87 = por %p85, %p86
    %p89 = scmp.ne.s32.totalorder %s72, %s88
    %p90 = scmp.eq.s32.totalorder %s17, 0
    %p91 = por %p89, %p90
    %s92 = ssub.s32 %s11, %s18
    %p93 = scmp.eq.s32.totalorder %s92, 0
    %s95 = sadd.s32 %s94, 1
    %s96 = scalar_select %p93, %s94, %s95
    %p99 = pneg %p93
    %p100 = scmp.eq.s32.totalorder %s11, 2
    %p101 = por %p99, %p100
    %p102 = scmp.ne.s32.totalorder %s94, %s97
    %p103 = scmp.eq.s32.totalorder %s11, 0
    %p104 = por %p102, %p103
    %p105 = scmp.ne.s32.totalorder %s94, %s97
    %p106 = scmp.eq.s32.totalorder %s16, 2
    %p107 = por %p105, %p106
    %p108 = scmp.ne.s32.totalorder %s97, %s98
    %p109 = scmp.eq.s32.totalorder %s16, 0
    %p110 = por %p108, %p109
    %p111 = scmp.ne.s32.totalorder %s97, %s98
    %p112 = scmp.eq.s32.totalorder %s17, 2
    %p113 = por %p111, %p112
    %p115 = scmp.ne.s32.totalorder %s98, %s114
    %p116 = scmp.eq.s32.totalorder %s17, 0
    %p117 = por %p115, %p116
    %s118 = ssub.s32 %s11, %s18
    %p119 = scmp.eq.s32.totalorder %s118, 0
    %s121 = sadd.s32 %s120, 1
    %s122 = scalar_select %p119, %s120, %s121
    %p125 = pneg %p119
    %p126 = scmp.eq.s32.totalorder %s11, 2
    %p127 = por %p125, %p126
    %p128 = scmp.ne.s32.totalorder %s120, %s123
    %p129 = scmp.eq.s32.totalorder %s11, 0
    %p130 = por %p128, %p129
    %p131 = scmp.ne.s32.totalorder %s120, %s123
    %p132 = scmp.eq.s32.totalorder %s16, 2
    %p133 = por %p131, %p132
    %p134 = scmp.ne.s32.totalorder %s123, %s124
    %p135 = scmp.eq.s32.totalorder %s16, 0
    %p136 = por %p134, %p135
    %p137 = scmp.ne.s32.totalorder %s123, %s124
    %p138 = scmp.eq.s32.totalorder %s17, 2
    %p139 = por %p137, %p138
    %p141 = scmp.ne.s32.totalorder %s124, %s140
    %p142 = scmp.eq.s32.totalorder %s17, 0
    %p143 = por %p141, %p142
    %p144 = scmp.le.s32.totalorder 1, %s11
    %p145 = scmp.lt.s32.totalorder %s11, 4
    %p146 = pnand %p144, %p145
    %p147 = pneg %p146
    // Predicated region
    $region9: #{forward.3} parent=5 // pred_check
      _
    $region10: #{forward.3} parent=5 // pred_check_branch
      %149 = sbr.rel (%p146) target = $region12
    $region11: #{forward.3} parent=5 // pred_region
      %s150 = ssub.s32 %s11, 1
      // Predicated region
      $region13: #{forward.3} parent=11 // pred_check
        %p151 = pneg %p58
      $region14: #{forward.3} parent=11 // pred_check_branch
        %153 = sbr.rel (%p151) target = $region16
      $region15: #{forward.3} parent=11 // pred_region
        _
      $region16: #{forward.3} parent=11 // pred_fallthru
        _
    $region12: #{forward.3} parent=5 // pred_fallthru
      _
    %p154 = scmp.lt.s32.totalorder %s11, 3
    // Predicated region
    $region17: #{forward.3} parent=5 // pred_check
      %p155 = pneg %p154
    $region18: #{forward.3} parent=5 // pred_check_branch
      %157 = sbr.rel (%p155) target = $region20
    $region19: #{forward.3} parent=5 // pred_region
      // Predicated region
      $region21: #{forward.3} parent=19 // pred_check
        %p158 = pneg %p31
      $region22: #{forward.3} parent=19 // pred_check_branch
        %160 = sbr.rel (%p158) target = $region24
      $region23: #{forward.3} parent=19 // pred_region
        %p161 = scmp.lt.s32.totalorder %s11, 2
        %s162 = scalar_select %p161, %s11, 2
        %s163 = smul.addr %s162, 32
        %s164 = smul.addr %s163, 8
        %s165 = scalar_lea.vmem %s0, %s164
      $region24: #{forward.3} parent=19 // pred_fallthru
        _
      // Predicated region
      $region25: #{forward.3} parent=19 // pred_check
        %p166 = pneg %p78
      $region26: #{forward.3} parent=19 // pred_check_branch
        %168 = sbr.rel (%p166) target = $region28
      $region27: #{forward.3} parent=19 // pred_region
        %p169 = scmp.lt.s32.totalorder %s11, 2
        %s170 = scalar_select %p169, %s11, 2
        %s171 = smul.addr %s170, 8
        %s172 = smul.addr %s171, 2
        %s173 = scalar_lea.vmem %s2, %s172
      $region28: #{forward.3} parent=19 // pred_fallthru
        _
    $region20: #{forward.3} parent=5 // pred_fallthru
      _
    %p174 = scmp.le.s32.totalorder 1, %s11
    %p175 = scmp.lt.s32.totalorder %s11, 4
    %p176 = pnand %p174, %p175
    %p177 = pneg %p176
    // Predicated region
    $region29: #{forward.3} parent=5 // pred_check
      _
    $region30: #{forward.3} parent=5 // pred_check_branch
      %179 = sbr.rel (%p176) target = $region32
    $region31: #{forward.3} parent=5 // pred_region
      %s180 = ssub.s32 %s11, 1
      %p181 = scmp.lt.s32.totalorder %s16, 2
      %s182 = scalar_select %p181, %s16, 2
      %s183 = smul.addr %s182, 32
      %s184 = smul.addr %s183, 8
      %s185 = scalar_lea.vmem %s0, %s184
      %p186 = pneg %p37
      %p187 = pneg %p34
      %p188 = pneg %p58
      %p189 = pneg %p55
      %p190 = scmp.lt.s32.totalorder %s16, 2
      %s191 = scalar_select %p190, %s16, 2
      %s192 = smul.addr %s191, 8
      %s193 = smul.addr %s192, 2
      %s194 = scalar_lea.vmem %s2, %s193
      %p195 = pneg %p84
      %p196 = pneg %p81
      %p197 = pneg %p110
      %p198 = pneg %p107
      %p199 = scmp.lt.s32.totalorder %s16, 2
      %s200 = scalar_select %p199, %s16, 2
      %s201 = smul.addr %s200, 8
      %s202 = scalar_lea.vmem %s3, %s201
      %p203 = pneg %p136
      %p204 = pneg %p133
      %p205 = scmp.lt.s32.totalorder %s16, 2
      %s206 = scalar_select %p205, %s16, 2
      %s207 = scalar_lea.vmem %s4, %s206
      %p208 = scmp.lt.s32.totalorder %s16, 2
      %s209 = scalar_select %p208, %s16, 2
      %s210 = smul.addr %s209, 32
      %s211 = smul.addr %s210, 8
      %s212 = scalar_lea.vmem %s0, %s211
      %p213 = scmp.lt.s32.totalorder %s16, 2
      %s214 = scalar_select %p213, %s16, 2
      %s215 = smul.addr %s214, 8
      %s216 = smul.addr %s215, 2
      %s217 = scalar_lea.vmem %s2, %s216
      %p218 = scmp.lt.s32.totalorder %s16, 2
      %s219 = scalar_select %p218, %s16, 2
      %s220 = smul.addr %s219, 8
      %s221 = scalar_lea.vmem %s3, %s220
      %p222 = scmp.lt.s32.totalorder %s16, 2
      %s223 = scalar_select %p222, %s16, 2
      %s224 = scalar_lea.vmem %s4, %s223
      %v225 = vld [vmem:[%s1] ss:$2 sm:$0xff]
      %s226 = scalar_lea.vmem %s1, 1
      %v227 = vld [vmem:[%s226] ss:$2 sm:$0xff]
      %v228 = vld [vmem:[%s212] sm:$0xff]
      %v229 = vld [vmem:[%s212 + $0x8] sm:$0xff]
      %v230 = vld [vmem:[%s212 + $0x10] sm:$0xff]
      %v231 = vld [vmem:[%s212 + $0x18] sm:$0xff]
      %v232 = vld [vmem:[%s212 + $0x20] sm:$0xff]
      %v233 = vld [vmem:[%s212 + $0x28] sm:$0xff]
      %v234 = vld [vmem:[%s212 + $0x30] sm:$0xff]
      %v235 = vld [vmem:[%s212 + $0x38] sm:$0xff]
      %v236 = vld [vmem:[%s212 + $0x40] sm:$0xff]
      %v237 = vld [vmem:[%s212 + $0x48] sm:$0xff]
      %v238 = vld [vmem:[%s212 + $0x50] sm:$0xff]
      %v239 = vld [vmem:[%s212 + $0x58] sm:$0xff]
      %v240 = vld [vmem:[%s212 + $0x60] sm:$0xff]
      %v241 = vld [vmem:[%s212 + $0x68] sm:$0xff]
      %v242 = vld [vmem:[%s212 + $0x70] sm:$0xff]
      %v243 = vld [vmem:[%s212 + $0x78] sm:$0xff]
      %245 = vset.pattern.permute.xlu0 0
      %246 = vperm.xlu0 %245, %v228
      %v247 = vpop.permute.xlu0 %246
      %250 = vset.pattern.permute.xlu0 0
      %251 = vperm.xlu0 %250, %v229
      %v252 = vpop.permute.xlu0 %251
      %255 = vset.pattern.permute.xlu0 0
      %256 = vperm.xlu0 %255, %v230
      %v257 = vpop.permute.xlu0 %256
      %260 = vset.pattern.permute.xlu0 0
      %261 = vperm.xlu0 %260, %v231
      %v262 = vpop.permute.xlu0 %261
      %265 = vset.pattern.permute.xlu0 0
      %266 = vperm.xlu0 %265, %v232
      %v267 = vpop.permute.xlu0 %266
      %270 = vset.pattern.permute.xlu0 0
      %271 = vperm.xlu0 %270, %v233
      %v272 = vpop.permute.xlu0 %271
      %275 = vset.pattern.permute.xlu0 0
      %276 = vperm.xlu0 %275, %v234
      %v277 = vpop.permute.xlu0 %276
      %280 = vset.pattern.permute.xlu0 0
      %281 = vperm.xlu0 %280, %v235
      %v282 = vpop.permute.xlu0 %281
      %285 = vset.pattern.permute.xlu0 0
      %286 = vperm.xlu0 %285, %v236
      %v287 = vpop.permute.xlu0 %286
      %290 = vset.pattern.permute.xlu0 0
      %291 = vperm.xlu0 %290, %v237
      %v292 = vpop.permute.xlu0 %291
      %295 = vset.pattern.permute.xlu0 0
      %296 = vperm.xlu0 %295, %v238
      %v297 = vpop.permute.xlu0 %296
      %300 = vset.pattern.permute.xlu0 0
      %301 = vperm.xlu0 %300, %v239
      %v302 = vpop.permute.xlu0 %301
      %305 = vset.pattern.permute.xlu0 0
      %306 = vperm.xlu0 %305, %v240
      %v307 = vpop.permute.xlu0 %306
      %310 = vset.pattern.permute.xlu0 0
      %311 = vperm.xlu0 %310, %v241
      %v312 = vpop.permute.xlu0 %311
      %315 = vset.pattern.permute.xlu0 0
      %316 = vperm.xlu0 %315, %v242
      %v317 = vpop.permute.xlu0 %316
      %320 = vset.pattern.permute.xlu0 0
      %321 = vperm.xlu0 %320, %v243
      %v322 = vpop.permute.xlu0 %321
      %v325 = vlaneseq
      %v326 = vshrl.u32 %v325, 7
      %v327 = vsub.s32 0, %v326
      %v328 = vrot.slane %v225, %v327
      %v329 = vlaneseq
      %v330 = vshrl.u32 %v329, 7
      %v331 = vsub.s32 1, %v330
      %v332 = vrot.slane %v225, %v331
      %v333 = vlaneseq
      %v334 = vshrl.u32 %v333, 7
      %v335 = vsub.s32 2, %v334
      %v336 = vrot.slane %v225, %v335
      %v337 = vlaneseq
      %v338 = vshrl.u32 %v337, 7
      %v339 = vsub.s32 3, %v338
      %v340 = vrot.slane %v225, %v339
      %v341 = vlaneseq
      %v342 = vshrl.u32 %v341, 7
      %v343 = vsub.s32 4, %v342
      %v344 = vrot.slane %v225, %v343
      %v345 = vlaneseq
      %v346 = vshrl.u32 %v345, 7
      %v347 = vsub.s32 5, %v346
      %v348 = vrot.slane %v225, %v347
      %v349 = vlaneseq
      %v350 = vshrl.u32 %v349, 7
      %v351 = vsub.s32 6, %v350
      %v352 = vrot.slane %v225, %v351
      %v353 = vlaneseq
      %v354 = vshrl.u32 %v353, 7
      %v355 = vsub.s32 7, %v354
      %v356 = vrot.slane %v225, %v355
      %v365 = vsub.f32 %v247, %v328
      %v366 = vsub.f32 %v247, %v332
      %v367 = vsub.f32 %v247, %v336
      %v368 = vsub.f32 %v247, %v340
      %v369 = vsub.f32 %v247, %v344
      %v370 = vsub.f32 %v247, %v348
      %v371 = vsub.f32 %v247, %v352
      %v372 = vsub.f32 %v247, %v356
      %v373 = vsub.f32 %v252, %v328
      %v374 = vsub.f32 %v252, %v332
      %v375 = vsub.f32 %v252, %v336
      %v376 = vsub.f32 %v252, %v340
      %v377 = vsub.f32 %v252, %v344
      %v378 = vsub.f32 %v252, %v348
      %v379 = vsub.f32 %v252, %v352
      %v380 = vsub.f32 %v252, %v356
      %v381 = vsub.f32 %v257, %v328
      %v382 = vsub.f32 %v257, %v332
      %v383 = vsub.f32 %v257, %v336
      %v384 = vsub.f32 %v257, %v340
      %v385 = vsub.f32 %v257, %v344
      %v386 = vsub.f32 %v257, %v348
      %v387 = vsub.f32 %v257, %v352
      %v388 = vsub.f32 %v257, %v356
      %v389 = vsub.f32 %v262, %v328
      %v390 = vsub.f32 %v262, %v332
      %v391 = vsub.f32 %v262, %v336
      %v392 = vsub.f32 %v262, %v340
      %v393 = vsub.f32 %v262, %v344
      %v394 = vsub.f32 %v262, %v348
      %v395 = vsub.f32 %v262, %v352
      %v396 = vsub.f32 %v262, %v356
      %v397 = vsub.f32 %v267, %v328
      %v398 = vsub.f32 %v267, %v332
      %v399 = vsub.f32 %v267, %v336
      %v400 = vsub.f32 %v267, %v340
      %v401 = vsub.f32 %v267, %v344
      %v402 = vsub.f32 %v267, %v348
      %v403 = vsub.f32 %v267, %v352
      %v404 = vsub.f32 %v267, %v356
      %v405 = vsub.f32 %v272, %v328
      %v406 = vsub.f32 %v272, %v332
      %v407 = vsub.f32 %v272, %v336
      %v408 = vsub.f32 %v272, %v340
      %v409 = vsub.f32 %v272, %v344
      %v410 = vsub.f32 %v272, %v348
      %v411 = vsub.f32 %v272, %v352
      %v412 = vsub.f32 %v272, %v356
      %v413 = vsub.f32 %v277, %v328
      %v414 = vsub.f32 %v277, %v332
      %v415 = vsub.f32 %v277, %v336
      %v416 = vsub.f32 %v277, %v340
      %v417 = vsub.f32 %v277, %v344
      %v418 = vsub.f32 %v277, %v348
      %v419 = vsub.f32 %v277, %v352
      %v420 = vsub.f32 %v277, %v356
      %v421 = vsub.f32 %v282, %v328
      %v422 = vsub.f32 %v282, %v332
      %v423 = vsub.f32 %v282, %v336
      %v424 = vsub.f32 %v282, %v340
      %v425 = vsub.f32 %v282, %v344
      %v426 = vsub.f32 %v282, %v348
      %v427 = vsub.f32 %v282, %v352
      %v428 = vsub.f32 %v282, %v356
      %v429 = vsub.f32 %v287, %v328
      %v430 = vsub.f32 %v287, %v332
      %v431 = vsub.f32 %v287, %v336
      %v432 = vsub.f32 %v287, %v340
      %v433 = vsub.f32 %v287, %v344
      %v434 = vsub.f32 %v287, %v348
      %v435 = vsub.f32 %v287, %v352
      %v436 = vsub.f32 %v287, %v356
      %v437 = vsub.f32 %v292, %v328
      %v438 = vsub.f32 %v292, %v332
      %v439 = vsub.f32 %v292, %v336
      %v440 = vsub.f32 %v292, %v340
      %v441 = vsub.f32 %v292, %v344
      %v442 = vsub.f32 %v292, %v348
      %v443 = vsub.f32 %v292, %v352
      %v444 = vsub.f32 %v292, %v356
      %v445 = vsub.f32 %v297, %v328
      %v446 = vsub.f32 %v297, %v332
      %v447 = vsub.f32 %v297, %v336
      %v448 = vsub.f32 %v297, %v340
      %v449 = vsub.f32 %v297, %v344
      %v450 = vsub.f32 %v297, %v348
      %v451 = vsub.f32 %v297, %v352
      %v452 = vsub.f32 %v297, %v356
      %v453 = vsub.f32 %v302, %v328
      %v454 = vsub.f32 %v302, %v332
      %v455 = vsub.f32 %v302, %v336
      %v456 = vsub.f32 %v302, %v340
      %v457 = vsub.f32 %v302, %v344
      %v458 = vsub.f32 %v302, %v348
      %v459 = vsub.f32 %v302, %v352
      %v460 = vsub.f32 %v302, %v356
      %v461 = vsub.f32 %v307, %v328
      %v462 = vsub.f32 %v307, %v332
      %v463 = vsub.f32 %v307, %v336
      %v464 = vsub.f32 %v307, %v340
      %v465 = vsub.f32 %v307, %v344
      %v466 = vsub.f32 %v307, %v348
      %v467 = vsub.f32 %v307, %v352
      %v468 = vsub.f32 %v307, %v356
      %v469 = vsub.f32 %v312, %v328
      %v470 = vsub.f32 %v312, %v332
      %v471 = vsub.f32 %v312, %v336
      %v472 = vsub.f32 %v312, %v340
      %v473 = vsub.f32 %v312, %v344
      %v474 = vsub.f32 %v312, %v348
      %v475 = vsub.f32 %v312, %v352
      %v476 = vsub.f32 %v312, %v356
      %v477 = vsub.f32 %v317, %v328
      %v478 = vsub.f32 %v317, %v332
      %v479 = vsub.f32 %v317, %v336
      %v480 = vsub.f32 %v317, %v340
      %v481 = vsub.f32 %v317, %v344
      %v482 = vsub.f32 %v317, %v348
      %v483 = vsub.f32 %v317, %v352
      %v484 = vsub.f32 %v317, %v356
      %v485 = vsub.f32 %v322, %v328
      %v486 = vsub.f32 %v322, %v332
      %v487 = vsub.f32 %v322, %v336
      %v488 = vsub.f32 %v322, %v340
      %v489 = vsub.f32 %v322, %v344
      %v490 = vsub.f32 %v322, %v348
      %v491 = vsub.f32 %v322, %v352
      %v492 = vsub.f32 %v322, %v356
      %493 = vset.pattern.permute.xlu0 1
      %494 = vperm.xlu0 %493, %v228
      %v495 = vpop.permute.xlu0 %494
      %497 = vset.pattern.permute.xlu0 1
      %498 = vperm.xlu0 %497, %v229
      %v499 = vpop.permute.xlu0 %498
      %501 = vset.pattern.permute.xlu0 1
      %502 = vperm.xlu0 %501, %v230
      %v503 = vpop.permute.xlu0 %502
      %505 = vset.pattern.permute.xlu0 1
      %506 = vperm.xlu0 %505, %v231
      %v507 = vpop.permute.xlu0 %506
      %509 = vset.pattern.permute.xlu0 1
      %510 = vperm.xlu0 %509, %v232
      %v511 = vpop.permute.xlu0 %510
      %513 = vset.pattern.permute.xlu0 1
      %514 = vperm.xlu0 %513, %v233
      %v515 = vpop.permute.xlu0 %514
      %517 = vset.pattern.permute.xlu0 1
      %518 = vperm.xlu0 %517, %v234
      %v519 = vpop.permute.xlu0 %518
      %521 = vset.pattern.permute.xlu0 1
      %522 = vperm.xlu0 %521, %v235
      %v523 = vpop.permute.xlu0 %522
      %525 = vset.pattern.permute.xlu0 1
      %526 = vperm.xlu0 %525, %v236
      %v527 = vpop.permute.xlu0 %526
      %529 = vset.pattern.permute.xlu0 1
      %530 = vperm.xlu0 %529, %v237
      %v531 = vpop.permute.xlu0 %530
      %533 = vset.pattern.permute.xlu0 1
      %534 = vperm.xlu0 %533, %v238
      %v535 = vpop.permute.xlu0 %534
      %537 = vset.pattern.permute.xlu0 1
      %538 = vperm.xlu0 %537, %v239
      %v539 = vpop.permute.xlu0 %538
      %541 = vset.pattern.permute.xlu0 1
      %542 = vperm.xlu0 %541, %v240
      %v543 = vpop.permute.xlu0 %542
      %545 = vset.pattern.permute.xlu0 1
      %546 = vperm.xlu0 %545, %v241
      %v547 = vpop.permute.xlu0 %546
      %549 = vset.pattern.permute.xlu0 1
      %550 = vperm.xlu0 %549, %v242
      %v551 = vpop.permute.xlu0 %550
      %553 = vset.pattern.permute.xlu0 1
      %554 = vperm.xlu0 %553, %v243
      %v555 = vpop.permute.xlu0 %554
      %v558 = vlaneseq
      %v559 = vshrl.u32 %v558, 7
      %v560 = vsub.s32 0, %v559
      %v561 = vrot.slane %v227, %v560
      %v562 = vlaneseq
      %v563 = vshrl.u32 %v562, 7
      %v564 = vsub.s32 1, %v563
      %v565 = vrot.slane %v227, %v564
      %v566 = vlaneseq
      %v567 = vshrl.u32 %v566, 7
      %v568 = vsub.s32 2, %v567
      %v569 = vrot.slane %v227, %v568
      %v570 = vlaneseq
      %v571 = vshrl.u32 %v570, 7
      %v572 = vsub.s32 3, %v571
      %v573 = vrot.slane %v227, %v572
      %v574 = vlaneseq
      %v575 = vshrl.u32 %v574, 7
      %v576 = vsub.s32 4, %v575
      %v577 = vrot.slane %v227, %v576
      %v578 = vlaneseq
      %v579 = vshrl.u32 %v578, 7
      %v580 = vsub.s32 5, %v579
      %v581 = vrot.slane %v227, %v580
      %v582 = vlaneseq
      %v583 = vshrl.u32 %v582, 7
      %v584 = vsub.s32 6, %v583
      %v585 = vrot.slane %v227, %v584
      %v586 = vlaneseq
      %v587 = vshrl.u32 %v586, 7
      %v588 = vsub.s32 7, %v587
      %v589 = vrot.slane %v227, %v588
      %v598 = vsub.f32 %v495, %v561
      %v599 = vsub.f32 %v495, %v565
      %v600 = vsub.f32 %v495, %v569
      %v601 = vsub.f32 %v495, %v573
      %v602 = vsub.f32 %v495, %v577
      %v603 = vsub.f32 %v495, %v581
      %v604 = vsub.f32 %v495, %v585
      %v605 = vsub.f32 %v495, %v589
      %v606 = vsub.f32 %v499, %v561
      %v607 = vsub.f32 %v499, %v565
      %v608 = vsub.f32 %v499, %v569
      %v609 = vsub.f32 %v499, %v573
      %v610 = vsub.f32 %v499, %v577
      %v611 = vsub.f32 %v499, %v581
      %v612 = vsub.f32 %v499, %v585
      %v613 = vsub.f32 %v499, %v589
      %v614 = vsub.f32 %v503, %v561
      %v615 = vsub.f32 %v503, %v565
      %v616 = vsub.f32 %v503, %v569
      %v617 = vsub.f32 %v503, %v573
      %v618 = vsub.f32 %v503, %v577
      %v619 = vsub.f32 %v503, %v581
      %v620 = vsub.f32 %v503, %v585
      %v621 = vsub.f32 %v503, %v589
      %v622 = vsub.f32 %v507, %v561
      %v623 = vsub.f32 %v507, %v565
      %v624 = vsub.f32 %v507, %v569
      %v625 = vsub.f32 %v507, %v573
      %v626 = vsub.f32 %v507, %v577
      %v627 = vsub.f32 %v507, %v581
      %v628 = vsub.f32 %v507, %v585
      %v629 = vsub.f32 %v507, %v589
      %v630 = vsub.f32 %v511, %v561
      %v631 = vsub.f32 %v511, %v565
      %v632 = vsub.f32 %v511, %v569
      %v633 = vsub.f32 %v511, %v573
      %v634 = vsub.f32 %v511, %v577
      %v635 = vsub.f32 %v511, %v581
      %v636 = vsub.f32 %v511, %v585
      %v637 = vsub.f32 %v511, %v589
      %v638 = vsub.f32 %v515, %v561
      %v639 = vsub.f32 %v515, %v565
      %v640 = vsub.f32 %v515, %v569
      %v641 = vsub.f32 %v515, %v573
      %v642 = vsub.f32 %v515, %v577
      %v643 = vsub.f32 %v515, %v581
      %v644 = vsub.f32 %v515, %v585
      %v645 = vsub.f32 %v515, %v589
      %v646 = vsub.f32 %v519, %v561
      %v647 = vsub.f32 %v519, %v565
      %v648 = vsub.f32 %v519, %v569
      %v649 = vsub.f32 %v519, %v573
      %v650 = vsub.f32 %v519, %v577
      %v651 = vsub.f32 %v519, %v581
      %v652 = vsub.f32 %v519, %v585
      %v653 = vsub.f32 %v519, %v589
      %v654 = vsub.f32 %v523, %v561
      %v655 = vsub.f32 %v523, %v565
      %v656 = vsub.f32 %v523, %v569
      %v657 = vsub.f32 %v523, %v573
      %v658 = vsub.f32 %v523, %v577
      %v659 = vsub.f32 %v523, %v581
      %v660 = vsub.f32 %v523, %v585
      %v661 = vsub.f32 %v523, %v589
      %v662 = vsub.f32 %v527, %v561
      %v663 = vsub.f32 %v527, %v565
      %v664 = vsub.f32 %v527, %v569
      %v665 = vsub.f32 %v527, %v573
      %v666 = vsub.f32 %v527, %v577
      %v667 = vsub.f32 %v527, %v581
      %v668 = vsub.f32 %v527, %v585
      %v669 = vsub.f32 %v527, %v589
      %v670 = vsub.f32 %v531, %v561
      %v671 = vsub.f32 %v531, %v565
      %v672 = vsub.f32 %v531, %v569
      %v673 = vsub.f32 %v531, %v573
      %v674 = vsub.f32 %v531, %v577
      %v675 = vsub.f32 %v531, %v581
      %v676 = vsub.f32 %v531, %v585
      %v677 = vsub.f32 %v531, %v589
      %v678 = vsub.f32 %v535, %v561
      %v679 = vsub.f32 %v535, %v565
      %v680 = vsub.f32 %v535, %v569
      %v681 = vsub.f32 %v535, %v573
      %v682 = vsub.f32 %v535, %v577
      %v683 = vsub.f32 %v535, %v581
      %v684 = vsub.f32 %v535, %v585
      %v685 = vsub.f32 %v535, %v589
      %v686 = vsub.f32 %v539, %v561
      %v687 = vsub.f32 %v539, %v565
      %v688 = vsub.f32 %v539, %v569
      %v689 = vsub.f32 %v539, %v573
      %v690 = vsub.f32 %v539, %v577
      %v691 = vsub.f32 %v539, %v581
      %v692 = vsub.f32 %v539, %v585
      %v693 = vsub.f32 %v539, %v589
      %v694 = vsub.f32 %v543, %v561
      %v695 = vsub.f32 %v543, %v565
      %v696 = vsub.f32 %v543, %v569
      %v697 = vsub.f32 %v543, %v573
      %v698 = vsub.f32 %v543, %v577
      %v699 = vsub.f32 %v543, %v581
      %v700 = vsub.f32 %v543, %v585
      %v701 = vsub.f32 %v543, %v589
      %v702 = vsub.f32 %v547, %v561
      %v703 = vsub.f32 %v547, %v565
      %v704 = vsub.f32 %v547, %v569
      %v705 = vsub.f32 %v547, %v573
      %v706 = vsub.f32 %v547, %v577
      %v707 = vsub.f32 %v547, %v581
      %v708 = vsub.f32 %v547, %v585
      %v709 = vsub.f32 %v547, %v589
      %v710 = vsub.f32 %v551, %v561
      %v711 = vsub.f32 %v551, %v565
      %v712 = vsub.f32 %v551, %v569
      %v713 = vsub.f32 %v551, %v573
      %v714 = vsub.f32 %v551, %v577
      %v715 = vsub.f32 %v551, %v581
      %v716 = vsub.f32 %v551, %v585
      %v717 = vsub.f32 %v551, %v589
      %v718 = vsub.f32 %v555, %v561
      %v719 = vsub.f32 %v555, %v565
      %v720 = vsub.f32 %v555, %v569
      %v721 = vsub.f32 %v555, %v573
      %v722 = vsub.f32 %v555, %v577
      %v723 = vsub.f32 %v555, %v581
      %v724 = vsub.f32 %v555, %v585
      %v725 = vsub.f32 %v555, %v589
      %v726 = vmul.f32 %v365, %v365
      %v727 = vmul.f32 %v366, %v366
      %v728 = vmul.f32 %v367, %v367
      %v729 = vmul.f32 %v368, %v368
      %v730 = vmul.f32 %v369, %v369
      %v731 = vmul.f32 %v370, %v370
      %v732 = vmul.f32 %v371, %v371
      %v733 = vmul.f32 %v372, %v372
      %v734 = vmul.f32 %v373, %v373
      %v735 = vmul.f32 %v374, %v374
      %v736 = vmul.f32 %v375, %v375
      %v737 = vmul.f32 %v376, %v376
      %v738 = vmul.f32 %v377, %v377
      %v739 = vmul.f32 %v378, %v378
      %v740 = vmul.f32 %v379, %v379
      %v741 = vmul.f32 %v380, %v380
      %v742 = vmul.f32 %v381, %v381
      %v743 = vmul.f32 %v382, %v382
      %v744 = vmul.f32 %v383, %v383
      %v745 = vmul.f32 %v384, %v384
      %v746 = vmul.f32 %v385, %v385
      %v747 = vmul.f32 %v386, %v386
      %v748 = vmul.f32 %v387, %v387
      %v749 = vmul.f32 %v388, %v388
      %v750 = vmul.f32 %v389, %v389
      %v751 = vmul.f32 %v390, %v390
      %v752 = vmul.f32 %v391, %v391
      %v753 = vmul.f32 %v392, %v392
      %v754 = vmul.f32 %v393, %v393
      %v755 = vmul.f32 %v394, %v394
      %v756 = vmul.f32 %v395, %v395
      %v757 = vmul.f32 %v396, %v396
      %v758 = vmul.f32 %v397, %v397
      %v759 = vmul.f32 %v398, %v398
      %v760 = vmul.f32 %v399, %v399
      %v761 = vmul.f32 %v400, %v400
      %v762 = vmul.f32 %v401, %v401
      %v763 = vmul.f32 %v402, %v402
      %v764 = vmul.f32 %v403, %v403
      %v765 = vmul.f32 %v404, %v404
      %v766 = vmul.f32 %v405, %v405
      %v767 = vmul.f32 %v406, %v406
      %v768 = vmul.f32 %v407, %v407
      %v769 = vmul.f32 %v408, %v408
      %v770 = vmul.f32 %v409, %v409
      %v771 = vmul.f32 %v410, %v410
      %v772 = vmul.f32 %v411, %v411
      %v773 = vmul.f32 %v412, %v412
      %v774 = vmul.f32 %v413, %v413
      %v775 = vmul.f32 %v414, %v414
      %v776 = vmul.f32 %v415, %v415
      %v777 = vmul.f32 %v416, %v416
      %v778 = vmul.f32 %v417, %v417
      %v779 = vmul.f32 %v418, %v418
      %v780 = vmul.f32 %v419, %v419
      %v781 = vmul.f32 %v420, %v420
      %v782 = vmul.f32 %v421, %v421
      %v783 = vmul.f32 %v422, %v422
      %v784 = vmul.f32 %v423, %v423
      %v785 = vmul.f32 %v424, %v424
      %v786 = vmul.f32 %v425, %v425
      %v787 = vmul.f32 %v426, %v426
      %v788 = vmul.f32 %v427, %v427
      %v789 = vmul.f32 %v428, %v428
      %v790 = vmul.f32 %v429, %v429
      %v791 = vmul.f32 %v430, %v430
      %v792 = vmul.f32 %v431, %v431
      %v793 = vmul.f32 %v432, %v432
      %v794 = vmul.f32 %v433, %v433
      %v795 = vmul.f32 %v434, %v434
      %v796 = vmul.f32 %v435, %v435
      %v797 = vmul.f32 %v436, %v436
      %v798 = vmul.f32 %v437, %v437
      %v799 = vmul.f32 %v438, %v438
      %v800 = vmul.f32 %v439, %v439
      %v801 = vmul.f32 %v440, %v440
      %v802 = vmul.f32 %v441, %v441
      %v803 = vmul.f32 %v442, %v442
      %v804 = vmul.f32 %v443, %v443
      %v805 = vmul.f32 %v444, %v444
      %v806 = vmul.f32 %v445, %v445
      %v807 = vmul.f32 %v446, %v446
      %v808 = vmul.f32 %v447, %v447
      %v809 = vmul.f32 %v448, %v448
      %v810 = vmul.f32 %v449, %v449
      %v811 = vmul.f32 %v450, %v450
      %v812 = vmul.f32 %v451, %v451
      %v813 = vmul.f32 %v452, %v452
      %v814 = vmul.f32 %v453, %v453
      %v815 = vmul.f32 %v454, %v454
      %v816 = vmul.f32 %v455, %v455
      %v817 = vmul.f32 %v456, %v456
      %v818 = vmul.f32 %v457, %v457
      %v819 = vmul.f32 %v458, %v458
      %v820 = vmul.f32 %v459, %v459
      %v821 = vmul.f32 %v460, %v460
      %v822 = vmul.f32 %v461, %v461
      %v823 = vmul.f32 %v462, %v462
      %v824 = vmul.f32 %v463, %v463
      %v825 = vmul.f32 %v464, %v464
      %v826 = vmul.f32 %v465, %v465
      %v827 = vmul.f32 %v466, %v466
      %v828 = vmul.f32 %v467, %v467
      %v829 = vmul.f32 %v468, %v468
      %v830 = vmul.f32 %v469, %v469
      %v831 = vmul.f32 %v470, %v470
      %v832 = vmul.f32 %v471, %v471
      %v833 = vmul.f32 %v472, %v472
      %v834 = vmul.f32 %v473, %v473
      %v835 = vmul.f32 %v474, %v474
      %v836 = vmul.f32 %v475, %v475
      %v837 = vmul.f32 %v476, %v476
      %v838 = vmul.f32 %v477, %v477
      %v839 = vmul.f32 %v478, %v478
      %v840 = vmul.f32 %v479, %v479
      %v841 = vmul.f32 %v480, %v480
      %v842 = vmul.f32 %v481, %v481
      %v843 = vmul.f32 %v482, %v482
      %v844 = vmul.f32 %v483, %v483
      %v845 = vmul.f32 %v484, %v484
      %v846 = vmul.f32 %v485, %v485
      %v847 = vmul.f32 %v486, %v486
      %v848 = vmul.f32 %v487, %v487
      %v849 = vmul.f32 %v488, %v488
      %v850 = vmul.f32 %v489, %v489
      %v851 = vmul.f32 %v490, %v490
      %v852 = vmul.f32 %v491, %v491
      %v853 = vmul.f32 %v492, %v492
      %v854 = vmul.f32 %v598, %v598
      %v855 = vmul.f32 %v599, %v599
      %v856 = vmul.f32 %v600, %v600
      %v857 = vmul.f32 %v601, %v601
      %v858 = vmul.f32 %v602, %v602
      %v859 = vmul.f32 %v603, %v603
      %v860 = vmul.f32 %v604, %v604
      %v861 = vmul.f32 %v605, %v605
      %v862 = vmul.f32 %v606, %v606
      %v863 = vmul.f32 %v607, %v607
      %v864 = vmul.f32 %v608, %v608
      %v865 = vmul.f32 %v609, %v609
      %v866 = vmul.f32 %v610, %v610
      %v867 = vmul.f32 %v611, %v611
      %v868 = vmul.f32 %v612, %v612
      %v869 = vmul.f32 %v613, %v613
      %v870 = vmul.f32 %v614, %v614
      %v871 = vmul.f32 %v615, %v615
      %v872 = vmul.f32 %v616, %v616
      %v873 = vmul.f32 %v617, %v617
      %v874 = vmul.f32 %v618, %v618
      %v875 = vmul.f32 %v619, %v619
      %v876 = vmul.f32 %v620, %v620
      %v877 = vmul.f32 %v621, %v621
      %v878 = vmul.f32 %v622, %v622
      %v879 = vmul.f32 %v623, %v623
      %v880 = vmul.f32 %v624, %v624
      %v881 = vmul.f32 %v625, %v625
      %v882 = vmul.f32 %v626, %v626
      %v883 = vmul.f32 %v627, %v627
      %v884 = vmul.f32 %v628, %v628
      %v885 = vmul.f32 %v629, %v629
      %v886 = vmul.f32 %v630, %v630
      %v887 = vmul.f32 %v631, %v631
      %v888 = vmul.f32 %v632, %v632
      %v889 = vmul.f32 %v633, %v633
      %v890 = vmul.f32 %v634, %v634
      %v891 = vmul.f32 %v635, %v635
      %v892 = vmul.f32 %v636, %v636
      %v893 = vmul.f32 %v637, %v637
      %v894 = vmul.f32 %v638, %v638
      %v895 = vmul.f32 %v639, %v639
      %v896 = vmul.f32 %v640, %v640
      %v897 = vmul.f32 %v641, %v641
      %v898 = vmul.f32 %v642, %v642
      %v899 = vmul.f32 %v643, %v643
      %v900 = vmul.f32 %v644, %v644
      %v901 = vmul.f32 %v645, %v645
      %v902 = vmul.f32 %v646, %v646
      %v903 = vmul.f32 %v647, %v647
      %v904 = vmul.f32 %v648, %v648
      %v905 = vmul.f32 %v649, %v649
      %v906 = vmul.f32 %v650, %v650
      %v907 = vmul.f32 %v651, %v651
      %v908 = vmul.f32 %v652, %v652
      %v909 = vmul.f32 %v653, %v653
      %v910 = vmul.f32 %v654, %v654
      %v911 = vmul.f32 %v655, %v655
      %v912 = vmul.f32 %v656, %v656
      %v913 = vmul.f32 %v657, %v657
      %v914 = vmul.f32 %v658, %v658
      %v915 = vmul.f32 %v659, %v659
      %v916 = vmul.f32 %v660, %v660
      %v917 = vmul.f32 %v661, %v661
      %v918 = vmul.f32 %v662, %v662
      %v919 = vmul.f32 %v663, %v663
      %v920 = vmul.f32 %v664, %v664
      %v921 = vmul.f32 %v665, %v665
      %v922 = vmul.f32 %v666, %v666
      %v923 = vmul.f32 %v667, %v667
      %v924 = vmul.f32 %v668, %v668
      %v925 = vmul.f32 %v669, %v669
      %v926 = vmul.f32 %v670, %v670
      %v927 = vmul.f32 %v671, %v671
      %v928 = vmul.f32 %v672, %v672
      %v929 = vmul.f32 %v673, %v673
      %v930 = vmul.f32 %v674, %v674
      %v931 = vmul.f32 %v675, %v675
      %v932 = vmul.f32 %v676, %v676
      %v933 = vmul.f32 %v677, %v677
      %v934 = vmul.f32 %v678, %v678
      %v935 = vmul.f32 %v679, %v679
      %v936 = vmul.f32 %v680, %v680
      %v937 = vmul.f32 %v681, %v681
      %v938 = vmul.f32 %v682, %v682
      %v939 = vmul.f32 %v683, %v683
      %v940 = vmul.f32 %v684, %v684
      %v941 = vmul.f32 %v685, %v685
      %v942 = vmul.f32 %v686, %v686
      %v943 = vmul.f32 %v687, %v687
      %v944 = vmul.f32 %v688, %v688
      %v945 = vmul.f32 %v689, %v689
      %v946 = vmul.f32 %v690, %v690
      %v947 = vmul.f32 %v691, %v691
      %v948 = vmul.f32 %v692, %v692
      %v949 = vmul.f32 %v693, %v693
      %v950 = vmul.f32 %v694, %v694
      %v951 = vmul.f32 %v695, %v695
      %v952 = vmul.f32 %v696, %v696
      %v953 = vmul.f32 %v697, %v697
      %v954 = vmul.f32 %v698, %v698
      %v955 = vmul.f32 %v699, %v699
      %v956 = vmul.f32 %v700, %v700
      %v957 = vmul.f32 %v701, %v701
      %v958 = vmul.f32 %v702, %v702
      %v959 = vmul.f32 %v703, %v703
      %v960 = vmul.f32 %v704, %v704
      %v961 = vmul.f32 %v705, %v705
      %v962 = vmul.f32 %v706, %v706
      %v963 = vmul.f32 %v707, %v707
      %v964 = vmul.f32 %v708, %v708
      %v965 = vmul.f32 %v709, %v709
      %v966 = vmul.f32 %v710, %v710
      %v967 = vmul.f32 %v711, %v711
      %v968 = vmul.f32 %v712, %v712
      %v969 = vmul.f32 %v713, %v713
      %v970 = vmul.f32 %v714, %v714
      %v971 = vmul.f32 %v715, %v715
      %v972 = vmul.f32 %v716, %v716
      %v973 = vmul.f32 %v717, %v717
      %v974 = vmul.f32 %v718, %v718
      %v975 = vmul.f32 %v719, %v719
      %v976 = vmul.f32 %v720, %v720
      %v977 = vmul.f32 %v721, %v721
      %v978 = vmul.f32 %v722, %v722
      %v979 = vmul.f32 %v723, %v723
      %v980 = vmul.f32 %v724, %v724
      %v981 = vmul.f32 %v725, %v725
      %v982 = vadd.f32 %v726, %v854
      %v983 = vadd.f32 %v727, %v855
      %v984 = vadd.f32 %v728, %v856
      %v985 = vadd.f32 %v729, %v857
      %v986 = vadd.f32 %v730, %v858
      %v987 = vadd.f32 %v731, %v859
      %v988 = vadd.f32 %v732, %v860
      %v989 = vadd.f32 %v733, %v861
      %v990 = vadd.f32 %v734, %v862
      %v991 = vadd.f32 %v735, %v863
      %v992 = vadd.f32 %v736, %v864
      %v993 = vadd.f32 %v737, %v865
      %v994 = vadd.f32 %v738, %v866
      %v995 = vadd.f32 %v739, %v867
      %v996 = vadd.f32 %v740, %v868
      %v997 = vadd.f32 %v741, %v869
      %v998 = vadd.f32 %v742, %v870
      %v999 = vadd.f32 %v743, %v871
      %v1000 = vadd.f32 %v744, %v872
      %v1001 = vadd.f32 %v745, %v873
      %v1002 = vadd.f32 %v746, %v874
      %v1003 = vadd.f32 %v747, %v875
      %v1004 = vadd.f32 %v748, %v876
      %v1005 = vadd.f32 %v749, %v877
      %v1006 = vadd.f32 %v750, %v878
      %v1007 = vadd.f32 %v751, %v879
      %v1008 = vadd.f32 %v752, %v880
      %v1009 = vadd.f32 %v753, %v881
      %v1010 = vadd.f32 %v754, %v882
      %v1011 = vadd.f32 %v755, %v883
      %v1012 = vadd.f32 %v756, %v884
      %v1013 = vadd.f32 %v757, %v885
      %v1014 = vadd.f32 %v758, %v886
      %v1015 = vadd.f32 %v759, %v887
      %v1016 = vadd.f32 %v760, %v888
      %v1017 = vadd.f32 %v761, %v889
      %v1018 = vadd.f32 %v762, %v890
      %v1019 = vadd.f32 %v763, %v891
      %v1020 = vadd.f32 %v764, %v892
      %v1021 = vadd.f32 %v765, %v893
      %v1022 = vadd.f32 %v766, %v894
      %v1023 = vadd.f32 %v767, %v895
      %v1024 = vadd.f32 %v768, %v896
      %v1025 = vadd.f32 %v769, %v897
      %v1026 = vadd.f32 %v770, %v898
      %v1027 = vadd.f32 %v771, %v899
      %v1028 = vadd.f32 %v772, %v900
      %v1029 = vadd.f32 %v773, %v901
      %v1030 = vadd.f32 %v774, %v902
      %v1031 = vadd.f32 %v775, %v903
      %v1032 = vadd.f32 %v776, %v904
      %v1033 = vadd.f32 %v777, %v905
      %v1034 = vadd.f32 %v778, %v906
      %v1035 = vadd.f32 %v779, %v907
      %v1036 = vadd.f32 %v780, %v908
      %v1037 = vadd.f32 %v781, %v909
      %v1038 = vadd.f32 %v782, %v910
      %v1039 = vadd.f32 %v783, %v911
      %v1040 = vadd.f32 %v784, %v912
      %v1041 = vadd.f32 %v785, %v913
      %v1042 = vadd.f32 %v786, %v914
      %v1043 = vadd.f32 %v787, %v915
      %v1044 = vadd.f32 %v788, %v916
      %v1045 = vadd.f32 %v789, %v917
      %v1046 = vadd.f32 %v790, %v918
      %v1047 = vadd.f32 %v791, %v919
      %v1048 = vadd.f32 %v792, %v920
      %v1049 = vadd.f32 %v793, %v921
      %v1050 = vadd.f32 %v794, %v922
      %v1051 = vadd.f32 %v795, %v923
      %v1052 = vadd.f32 %v796, %v924
      %v1053 = vadd.f32 %v797, %v925
      %v1054 = vadd.f32 %v798, %v926
      %v1055 = vadd.f32 %v799, %v927
      %v1056 = vadd.f32 %v800, %v928
      %v1057 = vadd.f32 %v801, %v929
      %v1058 = vadd.f32 %v802, %v930
      %v1059 = vadd.f32 %v803, %v931
      %v1060 = vadd.f32 %v804, %v932
      %v1061 = vadd.f32 %v805, %v933
      %v1062 = vadd.f32 %v806, %v934
      %v1063 = vadd.f32 %v807, %v935
      %v1064 = vadd.f32 %v808, %v936
      %v1065 = vadd.f32 %v809, %v937
      %v1066 = vadd.f32 %v810, %v938
      %v1067 = vadd.f32 %v811, %v939
      %v1068 = vadd.f32 %v812, %v940
      %v1069 = vadd.f32 %v813, %v941
      %v1070 = vadd.f32 %v814, %v942
      %v1071 = vadd.f32 %v815, %v943
      %v1072 = vadd.f32 %v816, %v944
      %v1073 = vadd.f32 %v817, %v945
      %v1074 = vadd.f32 %v818, %v946
      %v1075 = vadd.f32 %v819, %v947
      %v1076 = vadd.f32 %v820, %v948
      %v1077 = vadd.f32 %v821, %v949
      %v1078 = vadd.f32 %v822, %v950
      %v1079 = vadd.f32 %v823, %v951
      %v1080 = vadd.f32 %v824, %v952
      %v1081 = vadd.f32 %v825, %v953
      %v1082 = vadd.f32 %v826, %v954
      %v1083 = vadd.f32 %v827, %v955
      %v1084 = vadd.f32 %v828, %v956
      %v1085 = vadd.f32 %v829, %v957
      %v1086 = vadd.f32 %v830, %v958
      %v1087 = vadd.f32 %v831, %v959
      %v1088 = vadd.f32 %v832, %v960
      %v1089 = vadd.f32 %v833, %v961
      %v1090 = vadd.f32 %v834, %v962
      %v1091 = vadd.f32 %v835, %v963
      %v1092 = vadd.f32 %v836, %v964
      %v1093 = vadd.f32 %v837, %v965
      %v1094 = vadd.f32 %v838, %v966
      %v1095 = vadd.f32 %v839, %v967
      %v1096 = vadd.f32 %v840, %v968
      %v1097 = vadd.f32 %v841, %v969
      %v1098 = vadd.f32 %v842, %v970
      %v1099 = vadd.f32 %v843, %v971
      %v1100 = vadd.f32 %v844, %v972
      %v1101 = vadd.f32 %v845, %v973
      %v1102 = vadd.f32 %v846, %v974
      %v1103 = vadd.f32 %v847, %v975
      %v1104 = vadd.f32 %v848, %v976
      %v1105 = vadd.f32 %v849, %v977
      %v1106 = vadd.f32 %v850, %v978
      %v1107 = vadd.f32 %v851, %v979
      %v1108 = vadd.f32 %v852, %v980
      %v1109 = vadd.f32 %v853, %v981
      %v1110 = vmin.f32 %v982, %v990
      %v1111 = vmin.f32 %v1110, %v998
      %v1112 = vmin.f32 %v1111, %v1006
      %v1113 = vmin.f32 %v1112, %v1014
      %v1114 = vmin.f32 %v1113, %v1022
      %v1115 = vmin.f32 %v1114, %v1030
      %v1116 = vmin.f32 %v1115, %v1038
      %v1117 = vmin.f32 %v1116, %v1046
      %v1118 = vmin.f32 %v1117, %v1054
      %v1119 = vmin.f32 %v1118, %v1062
      %v1120 = vmin.f32 %v1119, %v1070
      %v1121 = vmin.f32 %v1120, %v1078
      %v1122 = vmin.f32 %v1121, %v1086
      %v1123 = vmin.f32 %v1122, %v1094
      %v1124 = vmin.f32 %v1123, %v1102
      %v1125 = vrot.slane %v1124, 4
      %v1126 = vmin.f32 %v1124, %v1125
      %v1127 = vrot.slane %v1126, 2
      %v1128 = vmin.f32 %v1126, %v1127
      %v1129 = vrot.slane %v1128, 1
      %v1130 = vmin.f32 %v1128, %v1129
      %v1131 = vmin.f32 %v983, %v991
      %v1132 = vmin.f32 %v1131, %v999
      %v1133 = vmin.f32 %v1132, %v1007
      %v1134 = vmin.f32 %v1133, %v1015
      %v1135 = vmin.f32 %v1134, %v1023
      %v1136 = vmin.f32 %v1135, %v1031
      %v1137 = vmin.f32 %v1136, %v1039
      %v1138 = vmin.f32 %v1137, %v1047
      %v1139 = vmin.f32 %v1138, %v1055
      %v1140 = vmin.f32 %v1139, %v1063
      %v1141 = vmin.f32 %v1140, %v1071
      %v1142 = vmin.f32 %v1141, %v1079
      %v1143 = vmin.f32 %v1142, %v1087
      %v1144 = vmin.f32 %v1143, %v1095
      %v1145 = vmin.f32 %v1144, %v1103
      %v1146 = vrot.slane %v1145, 4
      %v1147 = vmin.f32 %v1145, %v1146
      %v1148 = vrot.slane %v1147, 2
      %v1149 = vmin.f32 %v1147, %v1148
      %v1150 = vrot.slane %v1149, 1
      %v1151 = vmin.f32 %v1149, %v1150
      %v1152 = vmin.f32 %v984, %v992
      %v1153 = vmin.f32 %v1152, %v1000
      %v1154 = vmin.f32 %v1153, %v1008
      %v1155 = vmin.f32 %v1154, %v1016
      %v1156 = vmin.f32 %v1155, %v1024
      %v1157 = vmin.f32 %v1156, %v1032
      %v1158 = vmin.f32 %v1157, %v1040
      %v1159 = vmin.f32 %v1158, %v1048
      %v1160 = vmin.f32 %v1159, %v1056
      %v1161 = vmin.f32 %v1160, %v1064
      %v1162 = vmin.f32 %v1161, %v1072
      %v1163 = vmin.f32 %v1162, %v1080
      %v1164 = vmin.f32 %v1163, %v1088
      %v1165 = vmin.f32 %v1164, %v1096
      %v1166 = vmin.f32 %v1165, %v1104
      %v1167 = vrot.slane %v1166, 4
      %v1168 = vmin.f32 %v1166, %v1167
      %v1169 = vrot.slane %v1168, 2
      %v1170 = vmin.f32 %v1168, %v1169
      %v1171 = vrot.slane %v1170, 1
      %v1172 = vmin.f32 %v1170, %v1171
      %v1173 = vmin.f32 %v985, %v993
      %v1174 = vmin.f32 %v1173, %v1001
      %v1175 = vmin.f32 %v1174, %v1009
      %v1176 = vmin.f32 %v1175, %v1017
      %v1177 = vmin.f32 %v1176, %v1025
      %v1178 = vmin.f32 %v1177, %v1033
      %v1179 = vmin.f32 %v1178, %v1041
      %v1180 = vmin.f32 %v1179, %v1049
      %v1181 = vmin.f32 %v1180, %v1057
      %v1182 = vmin.f32 %v1181, %v1065
      %v1183 = vmin.f32 %v1182, %v1073
      %v1184 = vmin.f32 %v1183, %v1081
      %v1185 = vmin.f32 %v1184, %v1089
      %v1186 = vmin.f32 %v1185, %v1097
      %v1187 = vmin.f32 %v1186, %v1105
      %v1188 = vrot.slane %v1187, 4
      %v1189 = vmin.f32 %v1187, %v1188
      %v1190 = vrot.slane %v1189, 2
      %v1191 = vmin.f32 %v1189, %v1190
      %v1192 = vrot.slane %v1191, 1
      %v1193 = vmin.f32 %v1191, %v1192
      %v1194 = vmin.f32 %v986, %v994
      %v1195 = vmin.f32 %v1194, %v1002
      %v1196 = vmin.f32 %v1195, %v1010
      %v1197 = vmin.f32 %v1196, %v1018
      %v1198 = vmin.f32 %v1197, %v1026
      %v1199 = vmin.f32 %v1198, %v1034
      %v1200 = vmin.f32 %v1199, %v1042
      %v1201 = vmin.f32 %v1200, %v1050
      %v1202 = vmin.f32 %v1201, %v1058
      %v1203 = vmin.f32 %v1202, %v1066
      %v1204 = vmin.f32 %v1203, %v1074
      %v1205 = vmin.f32 %v1204, %v1082
      %v1206 = vmin.f32 %v1205, %v1090
      %v1207 = vmin.f32 %v1206, %v1098
      %v1208 = vmin.f32 %v1207, %v1106
      %v1209 = vrot.slane %v1208, 4
      %v1210 = vmin.f32 %v1208, %v1209
      %v1211 = vrot.slane %v1210, 2
      %v1212 = vmin.f32 %v1210, %v1211
      %v1213 = vrot.slane %v1212, 1
      %v1214 = vmin.f32 %v1212, %v1213
      %v1215 = vmin.f32 %v987, %v995
      %v1216 = vmin.f32 %v1215, %v1003
      %v1217 = vmin.f32 %v1216, %v1011
      %v1218 = vmin.f32 %v1217, %v1019
      %v1219 = vmin.f32 %v1218, %v1027
      %v1220 = vmin.f32 %v1219, %v1035
      %v1221 = vmin.f32 %v1220, %v1043
      %v1222 = vmin.f32 %v1221, %v1051
      %v1223 = vmin.f32 %v1222, %v1059
      %v1224 = vmin.f32 %v1223, %v1067
      %v1225 = vmin.f32 %v1224, %v1075
      %v1226 = vmin.f32 %v1225, %v1083
      %v1227 = vmin.f32 %v1226, %v1091
      %v1228 = vmin.f32 %v1227, %v1099
      %v1229 = vmin.f32 %v1228, %v1107
      %v1230 = vrot.slane %v1229, 4
      %v1231 = vmin.f32 %v1229, %v1230
      %v1232 = vrot.slane %v1231, 2
      %v1233 = vmin.f32 %v1231, %v1232
      %v1234 = vrot.slane %v1233, 1
      %v1235 = vmin.f32 %v1233, %v1234
      %v1236 = vmin.f32 %v988, %v996
      %v1237 = vmin.f32 %v1236, %v1004
      %v1238 = vmin.f32 %v1237, %v1012
      %v1239 = vmin.f32 %v1238, %v1020
      %v1240 = vmin.f32 %v1239, %v1028
      %v1241 = vmin.f32 %v1240, %v1036
      %v1242 = vmin.f32 %v1241, %v1044
      %v1243 = vmin.f32 %v1242, %v1052
      %v1244 = vmin.f32 %v1243, %v1060
      %v1245 = vmin.f32 %v1244, %v1068
      %v1246 = vmin.f32 %v1245, %v1076
      %v1247 = vmin.f32 %v1246, %v1084
      %v1248 = vmin.f32 %v1247, %v1092
      %v1249 = vmin.f32 %v1248, %v1100
      %v1250 = vmin.f32 %v1249, %v1108
      %v1251 = vrot.slane %v1250, 4
      %v1252 = vmin.f32 %v1250, %v1251
      %v1253 = vrot.slane %v1252, 2
      %v1254 = vmin.f32 %v1252, %v1253
      %v1255 = vrot.slane %v1254, 1
      %v1256 = vmin.f32 %v1254, %v1255
      %v1257 = vmin.f32 %v989, %v997
      %v1258 = vmin.f32 %v1257, %v1005
      %v1259 = vmin.f32 %v1258, %v1013
      %v1260 = vmin.f32 %v1259, %v1021
      %v1261 = vmin.f32 %v1260, %v1029
      %v1262 = vmin.f32 %v1261, %v1037
      %v1263 = vmin.f32 %v1262, %v1045
      %v1264 = vmin.f32 %v1263, %v1053
      %v1265 = vmin.f32 %v1264, %v1061
      %v1266 = vmin.f32 %v1265, %v1069
      %v1267 = vmin.f32 %v1266, %v1077
      %v1268 = vmin.f32 %v1267, %v1085
      %v1269 = vmin.f32 %v1268, %v1093
      %v1270 = vmin.f32 %v1269, %v1101
      %v1271 = vmin.f32 %v1270, %v1109
      %v1272 = vrot.slane %v1271, 4
      %v1273 = vmin.f32 %v1271, %v1272
      %v1274 = vrot.slane %v1273, 2
      %v1275 = vmin.f32 %v1273, %v1274
      %v1276 = vrot.slane %v1275, 1
      %v1277 = vmin.f32 %v1275, %v1276
      %v1278 = vmin.f32 %v1130, 1e+30
      %v1279 = vmin.f32 %v1151, 1e+30
      %v1280 = vmin.f32 %v1172, 1e+30
      %v1281 = vmin.f32 %v1193, 1e+30
      %v1282 = vmin.f32 %v1214, 1e+30
      %v1283 = vmin.f32 %v1235, 1e+30
      %v1284 = vmin.f32 %v1256, 1e+30
      %v1285 = vmin.f32 %v1277, 1e+30
      %s1286 = scalar_lea.vmem %s212, 128
      %v1287 = vld [vmem:[%s1286] sm:$0xff]
      %v1288 = vld [vmem:[%s1286 + $0x8] sm:$0xff]
      %v1289 = vld [vmem:[%s1286 + $0x10] sm:$0xff]
      %v1290 = vld [vmem:[%s1286 + $0x18] sm:$0xff]
      %v1291 = vld [vmem:[%s1286 + $0x20] sm:$0xff]
      %v1292 = vld [vmem:[%s1286 + $0x28] sm:$0xff]
      %v1293 = vld [vmem:[%s1286 + $0x30] sm:$0xff]
      %v1294 = vld [vmem:[%s1286 + $0x38] sm:$0xff]
      %v1295 = vld [vmem:[%s1286 + $0x40] sm:$0xff]
      %v1296 = vld [vmem:[%s1286 + $0x48] sm:$0xff]
      %v1297 = vld [vmem:[%s1286 + $0x50] sm:$0xff]
      %v1298 = vld [vmem:[%s1286 + $0x58] sm:$0xff]
      %v1299 = vld [vmem:[%s1286 + $0x60] sm:$0xff]
      %v1300 = vld [vmem:[%s1286 + $0x68] sm:$0xff]
      %v1301 = vld [vmem:[%s1286 + $0x70] sm:$0xff]
      %v1302 = vld [vmem:[%s1286 + $0x78] sm:$0xff]
      %1304 = vset.pattern.permute.xlu0 0
      %1305 = vperm.xlu0 %1304, %v1287
      %v1306 = vpop.permute.xlu0 %1305
      %1309 = vset.pattern.permute.xlu0 0
      %1310 = vperm.xlu0 %1309, %v1288
      %v1311 = vpop.permute.xlu0 %1310
      %1314 = vset.pattern.permute.xlu0 0
      %1315 = vperm.xlu0 %1314, %v1289
      %v1316 = vpop.permute.xlu0 %1315
      %1319 = vset.pattern.permute.xlu0 0
      %1320 = vperm.xlu0 %1319, %v1290
      %v1321 = vpop.permute.xlu0 %1320
      %1324 = vset.pattern.permute.xlu0 0
      %1325 = vperm.xlu0 %1324, %v1291
      %v1326 = vpop.permute.xlu0 %1325
      %1329 = vset.pattern.permute.xlu0 0
      %1330 = vperm.xlu0 %1329, %v1292
      %v1331 = vpop.permute.xlu0 %1330
      %1334 = vset.pattern.permute.xlu0 0
      %1335 = vperm.xlu0 %1334, %v1293
      %v1336 = vpop.permute.xlu0 %1335
      %1339 = vset.pattern.permute.xlu0 0
      %1340 = vperm.xlu0 %1339, %v1294
      %v1341 = vpop.permute.xlu0 %1340
      %1344 = vset.pattern.permute.xlu0 0
      %1345 = vperm.xlu0 %1344, %v1295
      %v1346 = vpop.permute.xlu0 %1345
      %1349 = vset.pattern.permute.xlu0 0
      %1350 = vperm.xlu0 %1349, %v1296
      %v1351 = vpop.permute.xlu0 %1350
      %1354 = vset.pattern.permute.xlu0 0
      %1355 = vperm.xlu0 %1354, %v1297
      %v1356 = vpop.permute.xlu0 %1355
      %1359 = vset.pattern.permute.xlu0 0
      %1360 = vperm.xlu0 %1359, %v1298
      %v1361 = vpop.permute.xlu0 %1360
      %1364 = vset.pattern.permute.xlu0 0
      %1365 = vperm.xlu0 %1364, %v1299
      %v1366 = vpop.permute.xlu0 %1365
      %1369 = vset.pattern.permute.xlu0 0
      %1370 = vperm.xlu0 %1369, %v1300
      %v1371 = vpop.permute.xlu0 %1370
      %1374 = vset.pattern.permute.xlu0 0
      %1375 = vperm.xlu0 %1374, %v1301
      %v1376 = vpop.permute.xlu0 %1375
      %1379 = vset.pattern.permute.xlu0 0
      %1380 = vperm.xlu0 %1379, %v1302
      %v1381 = vpop.permute.xlu0 %1380
      %v1383 = vsub.f32 %v1306, %v328
      %v1384 = vsub.f32 %v1306, %v332
      %v1385 = vsub.f32 %v1306, %v336
      %v1386 = vsub.f32 %v1306, %v340
      %v1387 = vsub.f32 %v1306, %v344
      %v1388 = vsub.f32 %v1306, %v348
      %v1389 = vsub.f32 %v1306, %v352
      %v1390 = vsub.f32 %v1306, %v356
      %v1391 = vsub.f32 %v1311, %v328
      %v1392 = vsub.f32 %v1311, %v332
      %v1393 = vsub.f32 %v1311, %v336
      %v1394 = vsub.f32 %v1311, %v340
      %v1395 = vsub.f32 %v1311, %v344
      %v1396 = vsub.f32 %v1311, %v348
      %v1397 = vsub.f32 %v1311, %v352
      %v1398 = vsub.f32 %v1311, %v356
      %v1399 = vsub.f32 %v1316, %v328
      %v1400 = vsub.f32 %v1316, %v332
      %v1401 = vsub.f32 %v1316, %v336
      %v1402 = vsub.f32 %v1316, %v340
      %v1403 = vsub.f32 %v1316, %v344
      %v1404 = vsub.f32 %v1316, %v348
      %v1405 = vsub.f32 %v1316, %v352
      %v1406 = vsub.f32 %v1316, %v356
      %v1407 = vsub.f32 %v1321, %v328
      %v1408 = vsub.f32 %v1321, %v332
      %v1409 = vsub.f32 %v1321, %v336
      %v1410 = vsub.f32 %v1321, %v340
      %v1411 = vsub.f32 %v1321, %v344
      %v1412 = vsub.f32 %v1321, %v348
      %v1413 = vsub.f32 %v1321, %v352
      %v1414 = vsub.f32 %v1321, %v356
      %v1415 = vsub.f32 %v1326, %v328
      %v1416 = vsub.f32 %v1326, %v332
      %v1417 = vsub.f32 %v1326, %v336
      %v1418 = vsub.f32 %v1326, %v340
      %v1419 = vsub.f32 %v1326, %v344
      %v1420 = vsub.f32 %v1326, %v348
      %v1421 = vsub.f32 %v1326, %v352
      %v1422 = vsub.f32 %v1326, %v356
      %v1423 = vsub.f32 %v1331, %v328
      %v1424 = vsub.f32 %v1331, %v332
      %v1425 = vsub.f32 %v1331, %v336
      %v1426 = vsub.f32 %v1331, %v340
      %v1427 = vsub.f32 %v1331, %v344
      %v1428 = vsub.f32 %v1331, %v348
      %v1429 = vsub.f32 %v1331, %v352
      %v1430 = vsub.f32 %v1331, %v356
      %v1431 = vsub.f32 %v1336, %v328
      %v1432 = vsub.f32 %v1336, %v332
      %v1433 = vsub.f32 %v1336, %v336
      %v1434 = vsub.f32 %v1336, %v340
      %v1435 = vsub.f32 %v1336, %v344
      %v1436 = vsub.f32 %v1336, %v348
      %v1437 = vsub.f32 %v1336, %v352
      %v1438 = vsub.f32 %v1336, %v356
      %v1439 = vsub.f32 %v1341, %v328
      %v1440 = vsub.f32 %v1341, %v332
      %v1441 = vsub.f32 %v1341, %v336
      %v1442 = vsub.f32 %v1341, %v340
      %v1443 = vsub.f32 %v1341, %v344
      %v1444 = vsub.f32 %v1341, %v348
      %v1445 = vsub.f32 %v1341, %v352
      %v1446 = vsub.f32 %v1341, %v356
      %v1447 = vsub.f32 %v1346, %v328
      %v1448 = vsub.f32 %v1346, %v332
      %v1449 = vsub.f32 %v1346, %v336
      %v1450 = vsub.f32 %v1346, %v340
      %v1451 = vsub.f32 %v1346, %v344
      %v1452 = vsub.f32 %v1346, %v348
      %v1453 = vsub.f32 %v1346, %v352
      %v1454 = vsub.f32 %v1346, %v356
      %v1455 = vsub.f32 %v1351, %v328
      %v1456 = vsub.f32 %v1351, %v332
      %v1457 = vsub.f32 %v1351, %v336
      %v1458 = vsub.f32 %v1351, %v340
      %v1459 = vsub.f32 %v1351, %v344
      %v1460 = vsub.f32 %v1351, %v348
      %v1461 = vsub.f32 %v1351, %v352
      %v1462 = vsub.f32 %v1351, %v356
      %v1463 = vsub.f32 %v1356, %v328
      %v1464 = vsub.f32 %v1356, %v332
      %v1465 = vsub.f32 %v1356, %v336
      %v1466 = vsub.f32 %v1356, %v340
      %v1467 = vsub.f32 %v1356, %v344
      %v1468 = vsub.f32 %v1356, %v348
      %v1469 = vsub.f32 %v1356, %v352
      %v1470 = vsub.f32 %v1356, %v356
      %v1471 = vsub.f32 %v1361, %v328
      %v1472 = vsub.f32 %v1361, %v332
      %v1473 = vsub.f32 %v1361, %v336
      %v1474 = vsub.f32 %v1361, %v340
      %v1475 = vsub.f32 %v1361, %v344
      %v1476 = vsub.f32 %v1361, %v348
      %v1477 = vsub.f32 %v1361, %v352
      %v1478 = vsub.f32 %v1361, %v356
      %v1479 = vsub.f32 %v1366, %v328
      %v1480 = vsub.f32 %v1366, %v332
      %v1481 = vsub.f32 %v1366, %v336
      %v1482 = vsub.f32 %v1366, %v340
      %v1483 = vsub.f32 %v1366, %v344
      %v1484 = vsub.f32 %v1366, %v348
      %v1485 = vsub.f32 %v1366, %v352
      %v1486 = vsub.f32 %v1366, %v356
      %v1487 = vsub.f32 %v1371, %v328
      %v1488 = vsub.f32 %v1371, %v332
      %v1489 = vsub.f32 %v1371, %v336
      %v1490 = vsub.f32 %v1371, %v340
      %v1491 = vsub.f32 %v1371, %v344
      %v1492 = vsub.f32 %v1371, %v348
      %v1493 = vsub.f32 %v1371, %v352
      %v1494 = vsub.f32 %v1371, %v356
      %v1495 = vsub.f32 %v1376, %v328
      %v1496 = vsub.f32 %v1376, %v332
      %v1497 = vsub.f32 %v1376, %v336
      %v1498 = vsub.f32 %v1376, %v340
      %v1499 = vsub.f32 %v1376, %v344
      %v1500 = vsub.f32 %v1376, %v348
      %v1501 = vsub.f32 %v1376, %v352
      %v1502 = vsub.f32 %v1376, %v356
      %v1503 = vsub.f32 %v1381, %v328
      %v1504 = vsub.f32 %v1381, %v332
      %v1505 = vsub.f32 %v1381, %v336
      %v1506 = vsub.f32 %v1381, %v340
      %v1507 = vsub.f32 %v1381, %v344
      %v1508 = vsub.f32 %v1381, %v348
      %v1509 = vsub.f32 %v1381, %v352
      %v1510 = vsub.f32 %v1381, %v356
      %1511 = vset.pattern.permute.xlu0 1
      %1512 = vperm.xlu0 %1511, %v1287
      %v1513 = vpop.permute.xlu0 %1512
      %1515 = vset.pattern.permute.xlu0 1
      %1516 = vperm.xlu0 %1515, %v1288
      %v1517 = vpop.permute.xlu0 %1516
      %1519 = vset.pattern.permute.xlu0 1
      %1520 = vperm.xlu0 %1519, %v1289
      %v1521 = vpop.permute.xlu0 %1520
      %1523 = vset.pattern.permute.xlu0 1
      %1524 = vperm.xlu0 %1523, %v1290
      %v1525 = vpop.permute.xlu0 %1524
      %1527 = vset.pattern.permute.xlu0 1
      %1528 = vperm.xlu0 %1527, %v1291
      %v1529 = vpop.permute.xlu0 %1528
      %1531 = vset.pattern.permute.xlu0 1
      %1532 = vperm.xlu0 %1531, %v1292
      %v1533 = vpop.permute.xlu0 %1532
      %1535 = vset.pattern.permute.xlu0 1
      %1536 = vperm.xlu0 %1535, %v1293
      %v1537 = vpop.permute.xlu0 %1536
      %1539 = vset.pattern.permute.xlu0 1
      %1540 = vperm.xlu0 %1539, %v1294
      %v1541 = vpop.permute.xlu0 %1540
      %1543 = vset.pattern.permute.xlu0 1
      %1544 = vperm.xlu0 %1543, %v1295
      %v1545 = vpop.permute.xlu0 %1544
      %1547 = vset.pattern.permute.xlu0 1
      %1548 = vperm.xlu0 %1547, %v1296
      %v1549 = vpop.permute.xlu0 %1548
      %1551 = vset.pattern.permute.xlu0 1
      %1552 = vperm.xlu0 %1551, %v1297
      %v1553 = vpop.permute.xlu0 %1552
      %1555 = vset.pattern.permute.xlu0 1
      %1556 = vperm.xlu0 %1555, %v1298
      %v1557 = vpop.permute.xlu0 %1556
      %1559 = vset.pattern.permute.xlu0 1
      %1560 = vperm.xlu0 %1559, %v1299
      %v1561 = vpop.permute.xlu0 %1560
      %1563 = vset.pattern.permute.xlu0 1
      %1564 = vperm.xlu0 %1563, %v1300
      %v1565 = vpop.permute.xlu0 %1564
      %1567 = vset.pattern.permute.xlu0 1
      %1568 = vperm.xlu0 %1567, %v1301
      %v1569 = vpop.permute.xlu0 %1568
      %1571 = vset.pattern.permute.xlu0 1
      %1572 = vperm.xlu0 %1571, %v1302
      %v1573 = vpop.permute.xlu0 %1572
      %v1575 = vsub.f32 %v1513, %v561
      %v1576 = vsub.f32 %v1513, %v565
      %v1577 = vsub.f32 %v1513, %v569
      %v1578 = vsub.f32 %v1513, %v573
      %v1579 = vsub.f32 %v1513, %v577
      %v1580 = vsub.f32 %v1513, %v581
      %v1581 = vsub.f32 %v1513, %v585
      %v1582 = vsub.f32 %v1513, %v589
      %v1583 = vsub.f32 %v1517, %v561
      %v1584 = vsub.f32 %v1517, %v565
      %v1585 = vsub.f32 %v1517, %v569
      %v1586 = vsub.f32 %v1517, %v573
      %v1587 = vsub.f32 %v1517, %v577
      %v1588 = vsub.f32 %v1517, %v581
      %v1589 = vsub.f32 %v1517, %v585
      %v1590 = vsub.f32 %v1517, %v589
      %v1591 = vsub.f32 %v1521, %v561
      %v1592 = vsub.f32 %v1521, %v565
      %v1593 = vsub.f32 %v1521, %v569
      %v1594 = vsub.f32 %v1521, %v573
      %v1595 = vsub.f32 %v1521, %v577
      %v1596 = vsub.f32 %v1521, %v581
      %v1597 = vsub.f32 %v1521, %v585
      %v1598 = vsub.f32 %v1521, %v589
      %v1599 = vsub.f32 %v1525, %v561
      %v1600 = vsub.f32 %v1525, %v565
      %v1601 = vsub.f32 %v1525, %v569
      %v1602 = vsub.f32 %v1525, %v573
      %v1603 = vsub.f32 %v1525, %v577
      %v1604 = vsub.f32 %v1525, %v581
      %v1605 = vsub.f32 %v1525, %v585
      %v1606 = vsub.f32 %v1525, %v589
      %v1607 = vsub.f32 %v1529, %v561
      %v1608 = vsub.f32 %v1529, %v565
      %v1609 = vsub.f32 %v1529, %v569
      %v1610 = vsub.f32 %v1529, %v573
      %v1611 = vsub.f32 %v1529, %v577
      %v1612 = vsub.f32 %v1529, %v581
      %v1613 = vsub.f32 %v1529, %v585
      %v1614 = vsub.f32 %v1529, %v589
      %v1615 = vsub.f32 %v1533, %v561
      %v1616 = vsub.f32 %v1533, %v565
      %v1617 = vsub.f32 %v1533, %v569
      %v1618 = vsub.f32 %v1533, %v573
      %v1619 = vsub.f32 %v1533, %v577
      %v1620 = vsub.f32 %v1533, %v581
      %v1621 = vsub.f32 %v1533, %v585
      %v1622 = vsub.f32 %v1533, %v589
      %v1623 = vsub.f32 %v1537, %v561
      %v1624 = vsub.f32 %v1537, %v565
      %v1625 = vsub.f32 %v1537, %v569
      %v1626 = vsub.f32 %v1537, %v573
      %v1627 = vsub.f32 %v1537, %v577
      %v1628 = vsub.f32 %v1537, %v581
      %v1629 = vsub.f32 %v1537, %v585
      %v1630 = vsub.f32 %v1537, %v589
      %v1631 = vsub.f32 %v1541, %v561
      %v1632 = vsub.f32 %v1541, %v565
      %v1633 = vsub.f32 %v1541, %v569
      %v1634 = vsub.f32 %v1541, %v573
      %v1635 = vsub.f32 %v1541, %v577
      %v1636 = vsub.f32 %v1541, %v581
      %v1637 = vsub.f32 %v1541, %v585
      %v1638 = vsub.f32 %v1541, %v589
      %v1639 = vsub.f32 %v1545, %v561
      %v1640 = vsub.f32 %v1545, %v565
      %v1641 = vsub.f32 %v1545, %v569
      %v1642 = vsub.f32 %v1545, %v573
      %v1643 = vsub.f32 %v1545, %v577
      %v1644 = vsub.f32 %v1545, %v581
      %v1645 = vsub.f32 %v1545, %v585
      %v1646 = vsub.f32 %v1545, %v589
      %v1647 = vsub.f32 %v1549, %v561
      %v1648 = vsub.f32 %v1549, %v565
      %v1649 = vsub.f32 %v1549, %v569
      %v1650 = vsub.f32 %v1549, %v573
      %v1651 = vsub.f32 %v1549, %v577
      %v1652 = vsub.f32 %v1549, %v581
      %v1653 = vsub.f32 %v1549, %v585
      %v1654 = vsub.f32 %v1549, %v589
      %v1655 = vsub.f32 %v1553, %v561
      %v1656 = vsub.f32 %v1553, %v565
      %v1657 = vsub.f32 %v1553, %v569
      %v1658 = vsub.f32 %v1553, %v573
      %v1659 = vsub.f32 %v1553, %v577
      %v1660 = vsub.f32 %v1553, %v581
      %v1661 = vsub.f32 %v1553, %v585
      %v1662 = vsub.f32 %v1553, %v589
      %v1663 = vsub.f32 %v1557, %v561
      %v1664 = vsub.f32 %v1557, %v565
      %v1665 = vsub.f32 %v1557, %v569
      %v1666 = vsub.f32 %v1557, %v573
      %v1667 = vsub.f32 %v1557, %v577
      %v1668 = vsub.f32 %v1557, %v581
      %v1669 = vsub.f32 %v1557, %v585
      %v1670 = vsub.f32 %v1557, %v589
      %v1671 = vsub.f32 %v1561, %v561
      %v1672 = vsub.f32 %v1561, %v565
      %v1673 = vsub.f32 %v1561, %v569
      %v1674 = vsub.f32 %v1561, %v573
      %v1675 = vsub.f32 %v1561, %v577
      %v1676 = vsub.f32 %v1561, %v581
      %v1677 = vsub.f32 %v1561, %v585
      %v1678 = vsub.f32 %v1561, %v589
      %v1679 = vsub.f32 %v1565, %v561
      %v1680 = vsub.f32 %v1565, %v565
      %v1681 = vsub.f32 %v1565, %v569
      %v1682 = vsub.f32 %v1565, %v573
      %v1683 = vsub.f32 %v1565, %v577
      %v1684 = vsub.f32 %v1565, %v581
      %v1685 = vsub.f32 %v1565, %v585
      %v1686 = vsub.f32 %v1565, %v589
      %v1687 = vsub.f32 %v1569, %v561
      %v1688 = vsub.f32 %v1569, %v565
      %v1689 = vsub.f32 %v1569, %v569
      %v1690 = vsub.f32 %v1569, %v573
      %v1691 = vsub.f32 %v1569, %v577
      %v1692 = vsub.f32 %v1569, %v581
      %v1693 = vsub.f32 %v1569, %v585
      %v1694 = vsub.f32 %v1569, %v589
      %v1695 = vsub.f32 %v1573, %v561
      %v1696 = vsub.f32 %v1573, %v565
      %v1697 = vsub.f32 %v1573, %v569
      %v1698 = vsub.f32 %v1573, %v573
      %v1699 = vsub.f32 %v1573, %v577
      %v1700 = vsub.f32 %v1573, %v581
      %v1701 = vsub.f32 %v1573, %v585
      %v1702 = vsub.f32 %v1573, %v589
      %v1703 = vmul.f32 %v1383, %v1383
      %v1704 = vmul.f32 %v1384, %v1384
      %v1705 = vmul.f32 %v1385, %v1385
      %v1706 = vmul.f32 %v1386, %v1386
      %v1707 = vmul.f32 %v1387, %v1387
      %v1708 = vmul.f32 %v1388, %v1388
      %v1709 = vmul.f32 %v1389, %v1389
      %v1710 = vmul.f32 %v1390, %v1390
      %v1711 = vmul.f32 %v1391, %v1391
      %v1712 = vmul.f32 %v1392, %v1392
      %v1713 = vmul.f32 %v1393, %v1393
      %v1714 = vmul.f32 %v1394, %v1394
      %v1715 = vmul.f32 %v1395, %v1395
      %v1716 = vmul.f32 %v1396, %v1396
      %v1717 = vmul.f32 %v1397, %v1397
      %v1718 = vmul.f32 %v1398, %v1398
      %v1719 = vmul.f32 %v1399, %v1399
      %v1720 = vmul.f32 %v1400, %v1400
      %v1721 = vmul.f32 %v1401, %v1401
      %v1722 = vmul.f32 %v1402, %v1402
      %v1723 = vmul.f32 %v1403, %v1403
      %v1724 = vmul.f32 %v1404, %v1404
      %v1725 = vmul.f32 %v1405, %v1405
      %v1726 = vmul.f32 %v1406, %v1406
      %v1727 = vmul.f32 %v1407, %v1407
      %v1728 = vmul.f32 %v1408, %v1408
      %v1729 = vmul.f32 %v1409, %v1409
      %v1730 = vmul.f32 %v1410, %v1410
      %v1731 = vmul.f32 %v1411, %v1411
      %v1732 = vmul.f32 %v1412, %v1412
      %v1733 = vmul.f32 %v1413, %v1413
      %v1734 = vmul.f32 %v1414, %v1414
      %v1735 = vmul.f32 %v1415, %v1415
      %v1736 = vmul.f32 %v1416, %v1416
      %v1737 = vmul.f32 %v1417, %v1417
      %v1738 = vmul.f32 %v1418, %v1418
      %v1739 = vmul.f32 %v1419, %v1419
      %v1740 = vmul.f32 %v1420, %v1420
      %v1741 = vmul.f32 %v1421, %v1421
      %v1742 = vmul.f32 %v1422, %v1422
      %v1743 = vmul.f32 %v1423, %v1423
      %v1744 = vmul.f32 %v1424, %v1424
      %v1745 = vmul.f32 %v1425, %v1425
      %v1746 = vmul.f32 %v1426, %v1426
      %v1747 = vmul.f32 %v1427, %v1427
      %v1748 = vmul.f32 %v1428, %v1428
      %v1749 = vmul.f32 %v1429, %v1429
      %v1750 = vmul.f32 %v1430, %v1430
      %v1751 = vmul.f32 %v1431, %v1431
      %v1752 = vmul.f32 %v1432, %v1432
      %v1753 = vmul.f32 %v1433, %v1433
      %v1754 = vmul.f32 %v1434, %v1434
      %v1755 = vmul.f32 %v1435, %v1435
      %v1756 = vmul.f32 %v1436, %v1436
      %v1757 = vmul.f32 %v1437, %v1437
      %v1758 = vmul.f32 %v1438, %v1438
      %v1759 = vmul.f32 %v1439, %v1439
      %v1760 = vmul.f32 %v1440, %v1440
      %v1761 = vmul.f32 %v1441, %v1441
      %v1762 = vmul.f32 %v1442, %v1442
      %v1763 = vmul.f32 %v1443, %v1443
      %v1764 = vmul.f32 %v1444, %v1444
      %v1765 = vmul.f32 %v1445, %v1445
      %v1766 = vmul.f32 %v1446, %v1446
      %v1767 = vmul.f32 %v1447, %v1447
      %v1768 = vmul.f32 %v1448, %v1448
      %v1769 = vmul.f32 %v1449, %v1449
      %v1770 = vmul.f32 %v1450, %v1450
      %v1771 = vmul.f32 %v1451, %v1451
      %v1772 = vmul.f32 %v1452, %v1452
      %v1773 = vmul.f32 %v1453, %v1453
      %v1774 = vmul.f32 %v1454, %v1454
      %v1775 = vmul.f32 %v1455, %v1455
      %v1776 = vmul.f32 %v1456, %v1456
      %v1777 = vmul.f32 %v1457, %v1457
      %v1778 = vmul.f32 %v1458, %v1458
      %v1779 = vmul.f32 %v1459, %v1459
      %v1780 = vmul.f32 %v1460, %v1460
      %v1781 = vmul.f32 %v1461, %v1461
      %v1782 = vmul.f32 %v1462, %v1462
      %v1783 = vmul.f32 %v1463, %v1463
      %v1784 = vmul.f32 %v1464, %v1464
      %v1785 = vmul.f32 %v1465, %v1465
      %v1786 = vmul.f32 %v1466, %v1466
      %v1787 = vmul.f32 %v1467, %v1467
      %v1788 = vmul.f32 %v1468, %v1468
      %v1789 = vmul.f32 %v1469, %v1469
      %v1790 = vmul.f32 %v1470, %v1470
      %v1791 = vmul.f32 %v1471, %v1471
      %v1792 = vmul.f32 %v1472, %v1472
      %v1793 = vmul.f32 %v1473, %v1473
      %v1794 = vmul.f32 %v1474, %v1474
      %v1795 = vmul.f32 %v1475, %v1475
      %v1796 = vmul.f32 %v1476, %v1476
      %v1797 = vmul.f32 %v1477, %v1477
      %v1798 = vmul.f32 %v1478, %v1478
      %v1799 = vmul.f32 %v1479, %v1479
      %v1800 = vmul.f32 %v1480, %v1480
      %v1801 = vmul.f32 %v1481, %v1481
      %v1802 = vmul.f32 %v1482, %v1482
      %v1803 = vmul.f32 %v1483, %v1483
      %v1804 = vmul.f32 %v1484, %v1484
      %v1805 = vmul.f32 %v1485, %v1485
      %v1806 = vmul.f32 %v1486, %v1486
      %v1807 = vmul.f32 %v1487, %v1487
      %v1808 = vmul.f32 %v1488, %v1488
      %v1809 = vmul.f32 %v1489, %v1489
      %v1810 = vmul.f32 %v1490, %v1490
      %v1811 = vmul.f32 %v1491, %v1491
      %v1812 = vmul.f32 %v1492, %v1492
      %v1813 = vmul.f32 %v1493, %v1493
      %v1814 = vmul.f32 %v1494, %v1494
      %v1815 = vmul.f32 %v1495, %v1495
      %v1816 = vmul.f32 %v1496, %v1496
      %v1817 = vmul.f32 %v1497, %v1497
      %v1818 = vmul.f32 %v1498, %v1498
      %v1819 = vmul.f32 %v1499, %v1499
      %v1820 = vmul.f32 %v1500, %v1500
      %v1821 = vmul.f32 %v1501, %v1501
      %v1822 = vmul.f32 %v1502, %v1502
      %v1823 = vmul.f32 %v1503, %v1503
      %v1824 = vmul.f32 %v1504, %v1504
      %v1825 = vmul.f32 %v1505, %v1505
      %v1826 = vmul.f32 %v1506, %v1506
      %v1827 = vmul.f32 %v1507, %v1507
      %v1828 = vmul.f32 %v1508, %v1508
      %v1829 = vmul.f32 %v1509, %v1509
      %v1830 = vmul.f32 %v1510, %v1510
      %v1831 = vmul.f32 %v1575, %v1575
      %v1832 = vmul.f32 %v1576, %v1576
      %v1833 = vmul.f32 %v1577, %v1577
      %v1834 = vmul.f32 %v1578, %v1578
      %v1835 = vmul.f32 %v1579, %v1579
      %v1836 = vmul.f32 %v1580, %v1580
      %v1837 = vmul.f32 %v1581, %v1581
      %v1838 = vmul.f32 %v1582, %v1582
      %v1839 = vmul.f32 %v1583, %v1583
      %v1840 = vmul.f32 %v1584, %v1584
      %v1841 = vmul.f32 %v1585, %v1585
      %v1842 = vmul.f32 %v1586, %v1586
      %v1843 = vmul.f32 %v1587, %v1587
      %v1844 = vmul.f32 %v1588, %v1588
      %v1845 = vmul.f32 %v1589, %v1589
      %v1846 = vmul.f32 %v1590, %v1590
      %v1847 = vmul.f32 %v1591, %v1591
      %v1848 = vmul.f32 %v1592, %v1592
      %v1849 = vmul.f32 %v1593, %v1593
      %v1850 = vmul.f32 %v1594, %v1594
      %v1851 = vmul.f32 %v1595, %v1595
      %v1852 = vmul.f32 %v1596, %v1596
      %v1853 = vmul.f32 %v1597, %v1597
      %v1854 = vmul.f32 %v1598, %v1598
      %v1855 = vmul.f32 %v1599, %v1599
      %v1856 = vmul.f32 %v1600, %v1600
      %v1857 = vmul.f32 %v1601, %v1601
      %v1858 = vmul.f32 %v1602, %v1602
      %v1859 = vmul.f32 %v1603, %v1603
      %v1860 = vmul.f32 %v1604, %v1604
      %v1861 = vmul.f32 %v1605, %v1605
      %v1862 = vmul.f32 %v1606, %v1606
      %v1863 = vmul.f32 %v1607, %v1607
      %v1864 = vmul.f32 %v1608, %v1608
      %v1865 = vmul.f32 %v1609, %v1609
      %v1866 = vmul.f32 %v1610, %v1610
      %v1867 = vmul.f32 %v1611, %v1611
      %v1868 = vmul.f32 %v1612, %v1612
      %v1869 = vmul.f32 %v1613, %v1613
      %v1870 = vmul.f32 %v1614, %v1614
      %v1871 = vmul.f32 %v1615, %v1615
      %v1872 = vmul.f32 %v1616, %v1616
      %v1873 = vmul.f32 %v1617, %v1617
      %v1874 = vmul.f32 %v1618, %v1618
      %v1875 = vmul.f32 %v1619, %v1619
      %v1876 = vmul.f32 %v1620, %v1620
      %v1877 = vmul.f32 %v1621, %v1621
      %v1878 = vmul.f32 %v1622, %v1622
      %v1879 = vmul.f32 %v1623, %v1623
      %v1880 = vmul.f32 %v1624, %v1624
      %v1881 = vmul.f32 %v1625, %v1625
      %v1882 = vmul.f32 %v1626, %v1626
      %v1883 = vmul.f32 %v1627, %v1627
      %v1884 = vmul.f32 %v1628, %v1628
      %v1885 = vmul.f32 %v1629, %v1629
      %v1886 = vmul.f32 %v1630, %v1630
      %v1887 = vmul.f32 %v1631, %v1631
      %v1888 = vmul.f32 %v1632, %v1632
      %v1889 = vmul.f32 %v1633, %v1633
      %v1890 = vmul.f32 %v1634, %v1634
      %v1891 = vmul.f32 %v1635, %v1635
      %v1892 = vmul.f32 %v1636, %v1636
      %v1893 = vmul.f32 %v1637, %v1637
      %v1894 = vmul.f32 %v1638, %v1638
      %v1895 = vmul.f32 %v1639, %v1639
      %v1896 = vmul.f32 %v1640, %v1640
      %v1897 = vmul.f32 %v1641, %v1641
      %v1898 = vmul.f32 %v1642, %v1642
      %v1899 = vmul.f32 %v1643, %v1643
      %v1900 = vmul.f32 %v1644, %v1644
      %v1901 = vmul.f32 %v1645, %v1645
      %v1902 = vmul.f32 %v1646, %v1646
      %v1903 = vmul.f32 %v1647, %v1647
      %v1904 = vmul.f32 %v1648, %v1648
      %v1905 = vmul.f32 %v1649, %v1649
      %v1906 = vmul.f32 %v1650, %v1650
      %v1907 = vmul.f32 %v1651, %v1651
      %v1908 = vmul.f32 %v1652, %v1652
      %v1909 = vmul.f32 %v1653, %v1653
      %v1910 = vmul.f32 %v1654, %v1654
      %v1911 = vmul.f32 %v1655, %v1655
      %v1912 = vmul.f32 %v1656, %v1656
      %v1913 = vmul.f32 %v1657, %v1657
      %v1914 = vmul.f32 %v1658, %v1658
      %v1915 = vmul.f32 %v1659, %v1659
      %v1916 = vmul.f32 %v1660, %v1660
      %v1917 = vmul.f32 %v1661, %v1661
      %v1918 = vmul.f32 %v1662, %v1662
      %v1919 = vmul.f32 %v1663, %v1663
      %v1920 = vmul.f32 %v1664, %v1664
      %v1921 = vmul.f32 %v1665, %v1665
      %v1922 = vmul.f32 %v1666, %v1666
      %v1923 = vmul.f32 %v1667, %v1667
      %v1924 = vmul.f32 %v1668, %v1668
      %v1925 = vmul.f32 %v1669, %v1669
      %v1926 = vmul.f32 %v1670, %v1670
      %v1927 = vmul.f32 %v1671, %v1671
      %v1928 = vmul.f32 %v1672, %v1672
      %v1929 = vmul.f32 %v1673, %v1673
      %v1930 = vmul.f32 %v1674, %v1674
      %v1931 = vmul.f32 %v1675, %v1675
      %v1932 = vmul.f32 %v1676, %v1676
      %v1933 = vmul.f32 %v1677, %v1677
      %v1934 = vmul.f32 %v1678, %v1678
      %v1935 = vmul.f32 %v1679, %v1679
      %v1936 = vmul.f32 %v1680, %v1680
      %v1937 = vmul.f32 %v1681, %v1681
      %v1938 = vmul.f32 %v1682, %v1682
      %v1939 = vmul.f32 %v1683, %v1683
      %v1940 = vmul.f32 %v1684, %v1684
      %v1941 = vmul.f32 %v1685, %v1685
      %v1942 = vmul.f32 %v1686, %v1686
      %v1943 = vmul.f32 %v1687, %v1687
      %v1944 = vmul.f32 %v1688, %v1688
      %v1945 = vmul.f32 %v1689, %v1689
      %v1946 = vmul.f32 %v1690, %v1690
      %v1947 = vmul.f32 %v1691, %v1691
      %v1948 = vmul.f32 %v1692, %v1692
      %v1949 = vmul.f32 %v1693, %v1693
      %v1950 = vmul.f32 %v1694, %v1694
      %v1951 = vmul.f32 %v1695, %v1695
      %v1952 = vmul.f32 %v1696, %v1696
      %v1953 = vmul.f32 %v1697, %v1697
      %v1954 = vmul.f32 %v1698, %v1698
      %v1955 = vmul.f32 %v1699, %v1699
      %v1956 = vmul.f32 %v1700, %v1700
      %v1957 = vmul.f32 %v1701, %v1701
      %v1958 = vmul.f32 %v1702, %v1702
      %v1959 = vadd.f32 %v1703, %v1831
      %v1960 = vadd.f32 %v1704, %v1832
      %v1961 = vadd.f32 %v1705, %v1833
      %v1962 = vadd.f32 %v1706, %v1834
      %v1963 = vadd.f32 %v1707, %v1835
      %v1964 = vadd.f32 %v1708, %v1836
      %v1965 = vadd.f32 %v1709, %v1837
      %v1966 = vadd.f32 %v1710, %v1838
      %v1967 = vadd.f32 %v1711, %v1839
      %v1968 = vadd.f32 %v1712, %v1840
      %v1969 = vadd.f32 %v1713, %v1841
      %v1970 = vadd.f32 %v1714, %v1842
      %v1971 = vadd.f32 %v1715, %v1843
      %v1972 = vadd.f32 %v1716, %v1844
      %v1973 = vadd.f32 %v1717, %v1845
      %v1974 = vadd.f32 %v1718, %v1846
      %v1975 = vadd.f32 %v1719, %v1847
      %v1976 = vadd.f32 %v1720, %v1848
      %v1977 = vadd.f32 %v1721, %v1849
      %v1978 = vadd.f32 %v1722, %v1850
      %v1979 = vadd.f32 %v1723, %v1851
      %v1980 = vadd.f32 %v1724, %v1852
      %v1981 = vadd.f32 %v1725, %v1853
      %v1982 = vadd.f32 %v1726, %v1854
      %v1983 = vadd.f32 %v1727, %v1855
      %v1984 = vadd.f32 %v1728, %v1856
      %v1985 = vadd.f32 %v1729, %v1857
      %v1986 = vadd.f32 %v1730, %v1858
      %v1987 = vadd.f32 %v1731, %v1859
      %v1988 = vadd.f32 %v1732, %v1860
      %v1989 = vadd.f32 %v1733, %v1861
      %v1990 = vadd.f32 %v1734, %v1862
      %v1991 = vadd.f32 %v1735, %v1863
      %v1992 = vadd.f32 %v1736, %v1864
      %v1993 = vadd.f32 %v1737, %v1865
      %v1994 = vadd.f32 %v1738, %v1866
      %v1995 = vadd.f32 %v1739, %v1867
      %v1996 = vadd.f32 %v1740, %v1868
      %v1997 = vadd.f32 %v1741, %v1869
      %v1998 = vadd.f32 %v1742, %v1870
      %v1999 = vadd.f32 %v1743, %v1871
      %v2000 = vadd.f32 %v1744, %v1872
      %v2001 = vadd.f32 %v1745, %v1873
      %v2002 = vadd.f32 %v1746, %v1874
      %v2003 = vadd.f32 %v1747, %v1875
      %v2004 = vadd.f32 %v1748, %v1876
      %v2005 = vadd.f32 %v1749, %v1877
      %v2006 = vadd.f32 %v1750, %v1878
      %v2007 = vadd.f32 %v1751, %v1879
      %v2008 = vadd.f32 %v1752, %v1880
      %v2009 = vadd.f32 %v1753, %v1881
      %v2010 = vadd.f32 %v1754, %v1882
      %v2011 = vadd.f32 %v1755, %v1883
      %v2012 = vadd.f32 %v1756, %v1884
      %v2013 = vadd.f32 %v1757, %v1885
      %v2014 = vadd.f32 %v1758, %v1886
      %v2015 = vadd.f32 %v1759, %v1887
      %v2016 = vadd.f32 %v1760, %v1888
      %v2017 = vadd.f32 %v1761, %v1889
      %v2018 = vadd.f32 %v1762, %v1890
      %v2019 = vadd.f32 %v1763, %v1891
      %v2020 = vadd.f32 %v1764, %v1892
      %v2021 = vadd.f32 %v1765, %v1893
      %v2022 = vadd.f32 %v1766, %v1894
      %v2023 = vadd.f32 %v1767, %v1895
      %v2024 = vadd.f32 %v1768, %v1896
      %v2025 = vadd.f32 %v1769, %v1897
      %v2026 = vadd.f32 %v1770, %v1898
      %v2027 = vadd.f32 %v1771, %v1899
      %v2028 = vadd.f32 %v1772, %v1900
      %v2029 = vadd.f32 %v1773, %v1901
      %v2030 = vadd.f32 %v1774, %v1902
      %v2031 = vadd.f32 %v1775, %v1903
      %v2032 = vadd.f32 %v1776, %v1904
      %v2033 = vadd.f32 %v1777, %v1905
      %v2034 = vadd.f32 %v1778, %v1906
      %v2035 = vadd.f32 %v1779, %v1907
      %v2036 = vadd.f32 %v1780, %v1908
      %v2037 = vadd.f32 %v1781, %v1909
      %v2038 = vadd.f32 %v1782, %v1910
      %v2039 = vadd.f32 %v1783, %v1911
      %v2040 = vadd.f32 %v1784, %v1912
      %v2041 = vadd.f32 %v1785, %v1913
      %v2042 = vadd.f32 %v1786, %v1914
      %v2043 = vadd.f32 %v1787, %v1915
      %v2044 = vadd.f32 %v1788, %v1916
      %v2045 = vadd.f32 %v1789, %v1917
      %v2046 = vadd.f32 %v1790, %v1918
      %v2047 = vadd.f32 %v1791, %v1919
      %v2048 = vadd.f32 %v1792, %v1920
      %v2049 = vadd.f32 %v1793, %v1921
      %v2050 = vadd.f32 %v1794, %v1922
      %v2051 = vadd.f32 %v1795, %v1923
      %v2052 = vadd.f32 %v1796, %v1924
      %v2053 = vadd.f32 %v1797, %v1925
      %v2054 = vadd.f32 %v1798, %v1926
      %v2055 = vadd.f32 %v1799, %v1927
      %v2056 = vadd.f32 %v1800, %v1928
      %v2057 = vadd.f32 %v1801, %v1929
      %v2058 = vadd.f32 %v1802, %v1930
      %v2059 = vadd.f32 %v1803, %v1931
      %v2060 = vadd.f32 %v1804, %v1932
      %v2061 = vadd.f32 %v1805, %v1933
      %v2062 = vadd.f32 %v1806, %v1934
      %v2063 = vadd.f32 %v1807, %v1935
      %v2064 = vadd.f32 %v1808, %v1936
      %v2065 = vadd.f32 %v1809, %v1937
      %v2066 = vadd.f32 %v1810, %v1938
      %v2067 = vadd.f32 %v1811, %v1939
      %v2068 = vadd.f32 %v1812, %v1940
      %v2069 = vadd.f32 %v1813, %v1941
      %v2070 = vadd.f32 %v1814, %v1942
      %v2071 = vadd.f32 %v1815, %v1943
      %v2072 = vadd.f32 %v1816, %v1944
      %v2073 = vadd.f32 %v1817, %v1945
      %v2074 = vadd.f32 %v1818, %v1946
      %v2075 = vadd.f32 %v1819, %v1947
      %v2076 = vadd.f32 %v1820, %v1948
      %v2077 = vadd.f32 %v1821, %v1949
      %v2078 = vadd.f32 %v1822, %v1950
      %v2079 = vadd.f32 %v1823, %v1951
      %v2080 = vadd.f32 %v1824, %v1952
      %v2081 = vadd.f32 %v1825, %v1953
      %v2082 = vadd.f32 %v1826, %v1954
      %v2083 = vadd.f32 %v1827, %v1955
      %v2084 = vadd.f32 %v1828, %v1956
      %v2085 = vadd.f32 %v1829, %v1957
      %v2086 = vadd.f32 %v1830, %v1958
      %v2087 = vmin.f32 %v1959, %v1967
      %v2088 = vmin.f32 %v2087, %v1975
      %v2089 = vmin.f32 %v2088, %v1983
      %v2090 = vmin.f32 %v2089, %v1991
      %v2091 = vmin.f32 %v2090, %v1999
      %v2092 = vmin.f32 %v2091, %v2007
      %v2093 = vmin.f32 %v2092, %v2015
      %v2094 = vmin.f32 %v2093, %v2023
      %v2095 = vmin.f32 %v2094, %v2031
      %v2096 = vmin.f32 %v2095, %v2039
      %v2097 = vmin.f32 %v2096, %v2047
      %v2098 = vmin.f32 %v2097, %v2055
      %v2099 = vmin.f32 %v2098, %v2063
      %v2100 = vmin.f32 %v2099, %v2071
      %v2101 = vmin.f32 %v2100, %v2079
      %v2102 = vrot.slane %v2101, 4
      %v2103 = vmin.f32 %v2101, %v2102
      %v2104 = vrot.slane %v2103, 2
      %v2105 = vmin.f32 %v2103, %v2104
      %v2106 = vrot.slane %v2105, 1
      %v2107 = vmin.f32 %v2105, %v2106
      %v2108 = vmin.f32 %v1960, %v1968
      %v2109 = vmin.f32 %v2108, %v1976
      %v2110 = vmin.f32 %v2109, %v1984
      %v2111 = vmin.f32 %v2110, %v1992
      %v2112 = vmin.f32 %v2111, %v2000
      %v2113 = vmin.f32 %v2112, %v2008
      %v2114 = vmin.f32 %v2113, %v2016
      %v2115 = vmin.f32 %v2114, %v2024
      %v2116 = vmin.f32 %v2115, %v2032
      %v2117 = vmin.f32 %v2116, %v2040
      %v2118 = vmin.f32 %v2117, %v2048
      %v2119 = vmin.f32 %v2118, %v2056
      %v2120 = vmin.f32 %v2119, %v2064
      %v2121 = vmin.f32 %v2120, %v2072
      %v2122 = vmin.f32 %v2121, %v2080
      %v2123 = vrot.slane %v2122, 4
      %v2124 = vmin.f32 %v2122, %v2123
      %v2125 = vrot.slane %v2124, 2
      %v2126 = vmin.f32 %v2124, %v2125
      %v2127 = vrot.slane %v2126, 1
      %v2128 = vmin.f32 %v2126, %v2127
      %v2129 = vmin.f32 %v1961, %v1969
      %v2130 = vmin.f32 %v2129, %v1977
      %v2131 = vmin.f32 %v2130, %v1985
      %v2132 = vmin.f32 %v2131, %v1993
      %v2133 = vmin.f32 %v2132, %v2001
      %v2134 = vmin.f32 %v2133, %v2009
      %v2135 = vmin.f32 %v2134, %v2017
      %v2136 = vmin.f32 %v2135, %v2025
      %v2137 = vmin.f32 %v2136, %v2033
      %v2138 = vmin.f32 %v2137, %v2041
      %v2139 = vmin.f32 %v2138, %v2049
      %v2140 = vmin.f32 %v2139, %v2057
      %v2141 = vmin.f32 %v2140, %v2065
      %v2142 = vmin.f32 %v2141, %v2073
      %v2143 = vmin.f32 %v2142, %v2081
      %v2144 = vrot.slane %v2143, 4
      %v2145 = vmin.f32 %v2143, %v2144
      %v2146 = vrot.slane %v2145, 2
      %v2147 = vmin.f32 %v2145, %v2146
      %v2148 = vrot.slane %v2147, 1
      %v2149 = vmin.f32 %v2147, %v2148
      %v2150 = vmin.f32 %v1962, %v1970
      %v2151 = vmin.f32 %v2150, %v1978
      %v2152 = vmin.f32 %v2151, %v1986
      %v2153 = vmin.f32 %v2152, %v1994
      %v2154 = vmin.f32 %v2153, %v2002
      %v2155 = vmin.f32 %v2154, %v2010
      %v2156 = vmin.f32 %v2155, %v2018
      %v2157 = vmin.f32 %v2156, %v2026
      %v2158 = vmin.f32 %v2157, %v2034
      %v2159 = vmin.f32 %v2158, %v2042
      %v2160 = vmin.f32 %v2159, %v2050
      %v2161 = vmin.f32 %v2160, %v2058
      %v2162 = vmin.f32 %v2161, %v2066
      %v2163 = vmin.f32 %v2162, %v2074
      %v2164 = vmin.f32 %v2163, %v2082
      %v2165 = vrot.slane %v2164, 4
      %v2166 = vmin.f32 %v2164, %v2165
      %v2167 = vrot.slane %v2166, 2
      %v2168 = vmin.f32 %v2166, %v2167
      %v2169 = vrot.slane %v2168, 1
      %v2170 = vmin.f32 %v2168, %v2169
      %v2171 = vmin.f32 %v1963, %v1971
      %v2172 = vmin.f32 %v2171, %v1979
      %v2173 = vmin.f32 %v2172, %v1987
      %v2174 = vmin.f32 %v2173, %v1995
      %v2175 = vmin.f32 %v2174, %v2003
      %v2176 = vmin.f32 %v2175, %v2011
      %v2177 = vmin.f32 %v2176, %v2019
      %v2178 = vmin.f32 %v2177, %v2027
      %v2179 = vmin.f32 %v2178, %v2035
      %v2180 = vmin.f32 %v2179, %v2043
      %v2181 = vmin.f32 %v2180, %v2051
      %v2182 = vmin.f32 %v2181, %v2059
      %v2183 = vmin.f32 %v2182, %v2067
      %v2184 = vmin.f32 %v2183, %v2075
      %v2185 = vmin.f32 %v2184, %v2083
      %v2186 = vrot.slane %v2185, 4
      %v2187 = vmin.f32 %v2185, %v2186
      %v2188 = vrot.slane %v2187, 2
      %v2189 = vmin.f32 %v2187, %v2188
      %v2190 = vrot.slane %v2189, 1
      %v2191 = vmin.f32 %v2189, %v2190
      %v2192 = vmin.f32 %v1964, %v1972
      %v2193 = vmin.f32 %v2192, %v1980
      %v2194 = vmin.f32 %v2193, %v1988
      %v2195 = vmin.f32 %v2194, %v1996
      %v2196 = vmin.f32 %v2195, %v2004
      %v2197 = vmin.f32 %v2196, %v2012
      %v2198 = vmin.f32 %v2197, %v2020
      %v2199 = vmin.f32 %v2198, %v2028
      %v2200 = vmin.f32 %v2199, %v2036
      %v2201 = vmin.f32 %v2200, %v2044
      %v2202 = vmin.f32 %v2201, %v2052
      %v2203 = vmin.f32 %v2202, %v2060
      %v2204 = vmin.f32 %v2203, %v2068
      %v2205 = vmin.f32 %v2204, %v2076
      %v2206 = vmin.f32 %v2205, %v2084
      %v2207 = vrot.slane %v2206, 4
      %v2208 = vmin.f32 %v2206, %v2207
      %v2209 = vrot.slane %v2208, 2
      %v2210 = vmin.f32 %v2208, %v2209
      %v2211 = vrot.slane %v2210, 1
      %v2212 = vmin.f32 %v2210, %v2211
      %v2213 = vmin.f32 %v1965, %v1973
      %v2214 = vmin.f32 %v2213, %v1981
      %v2215 = vmin.f32 %v2214, %v1989
      %v2216 = vmin.f32 %v2215, %v1997
      %v2217 = vmin.f32 %v2216, %v2005
      %v2218 = vmin.f32 %v2217, %v2013
      %v2219 = vmin.f32 %v2218, %v2021
      %v2220 = vmin.f32 %v2219, %v2029
      %v2221 = vmin.f32 %v2220, %v2037
      %v2222 = vmin.f32 %v2221, %v2045
      %v2223 = vmin.f32 %v2222, %v2053
      %v2224 = vmin.f32 %v2223, %v2061
      %v2225 = vmin.f32 %v2224, %v2069
      %v2226 = vmin.f32 %v2225, %v2077
      %v2227 = vmin.f32 %v2226, %v2085
      %v2228 = vrot.slane %v2227, 4
      %v2229 = vmin.f32 %v2227, %v2228
      %v2230 = vrot.slane %v2229, 2
      %v2231 = vmin.f32 %v2229, %v2230
      %v2232 = vrot.slane %v2231, 1
      %v2233 = vmin.f32 %v2231, %v2232
      %v2234 = vmin.f32 %v1966, %v1974
      %v2235 = vmin.f32 %v2234, %v1982
      %v2236 = vmin.f32 %v2235, %v1990
      %v2237 = vmin.f32 %v2236, %v1998
      %v2238 = vmin.f32 %v2237, %v2006
      %v2239 = vmin.f32 %v2238, %v2014
      %v2240 = vmin.f32 %v2239, %v2022
      %v2241 = vmin.f32 %v2240, %v2030
      %v2242 = vmin.f32 %v2241, %v2038
      %v2243 = vmin.f32 %v2242, %v2046
      %v2244 = vmin.f32 %v2243, %v2054
      %v2245 = vmin.f32 %v2244, %v2062
      %v2246 = vmin.f32 %v2245, %v2070
      %v2247 = vmin.f32 %v2246, %v2078
      %v2248 = vmin.f32 %v2247, %v2086
      %v2249 = vrot.slane %v2248, 4
      %v2250 = vmin.f32 %v2248, %v2249
      %v2251 = vrot.slane %v2250, 2
      %v2252 = vmin.f32 %v2250, %v2251
      %v2253 = vrot.slane %v2252, 1
      %v2254 = vmin.f32 %v2252, %v2253
      %v2255 = vmin.f32 %v1278, %v2107
      %v2256 = vmin.f32 %v1279, %v2128
      %v2257 = vmin.f32 %v1280, %v2149
      %v2258 = vmin.f32 %v1281, %v2170
      %v2259 = vmin.f32 %v1282, %v2191
      %v2260 = vmin.f32 %v1283, %v2212
      %v2261 = vmin.f32 %v1284, %v2233
      %v2262 = vmin.f32 %v1285, %v2254
      %v2263 = vmul.f32 %v2255, -0.25
      %v2264 = vmul.f32 %v2256, -0.25
      %v2265 = vmul.f32 %v2257, -0.25
      %v2266 = vmul.f32 %v2258, -0.25
      %v2267 = vmul.f32 %v2259, -0.25
      %v2268 = vmul.f32 %v2260, -0.25
      %v2269 = vmul.f32 %v2261, -0.25
      %v2270 = vmul.f32 %v2262, -0.25
      %v2271 = vmul.f32 %v2263, 1.442695
      %v2272 = vpow.pop %v2271
      %v2273 = vmul.f32 %v2264, 1.442695
      %v2274 = vpow.pop %v2273
      %v2275 = vmul.f32 %v2265, 1.442695
      %v2276 = vpow.pop %v2275
      %v2277 = vmul.f32 %v2266, 1.442695
      %v2278 = vpow.pop %v2277
      %v2279 = vmul.f32 %v2267, 1.442695
      %v2280 = vpow.pop %v2279
      %v2281 = vmul.f32 %v2268, 1.442695
      %v2282 = vpow.pop %v2281
      %v2283 = vmul.f32 %v2269, 1.442695
      %v2284 = vpow.pop %v2283
      %v2285 = vmul.f32 %v2270, 1.442695
      %v2286 = vpow.pop %v2285
      %s2287 = scalar_lea.vmem %s217, 1
      %v2288 = vld [vmem:[%s2287] ss:$2 sm:$0xff]
      %v2297 = vcombine.low %v2272, %v2274
      %v2298 = vcombine.low %v2276, %v2278
      %v2299 = vcombine.low %v2280, %v2282
      %v2300 = vcombine.low %v2284, %v2286
      %v2302 = vunpack.c.l.s4 1966171168
      %v2303 = vunpack.c.0.s8 %v2302
      %v2304 = vlaneseq
      %v2305 = vshrl.u32 %v2304, 7
      %v2306 = vsub.s32 %v2303, %v2305
      %v2307 = vrot.slane %v2297, %v2306
      %v2309 = vunpack.c.l.s4 1966171168
      %v2310 = vunpack.c.0.s8 %v2309
      %v2311 = vlaneseq
      %v2312 = vshrl.u32 %v2311, 7
      %v2313 = vsub.s32 %v2310, %v2312
      %v2314 = vrot.slane %v2298, %v2313
      %v2316 = vunpack.c.l.s4 1966171168
      %v2317 = vunpack.c.0.s8 %v2316
      %v2318 = vlaneseq
      %v2319 = vshrl.u32 %v2318, 7
      %v2320 = vsub.s32 %v2317, %v2319
      %v2321 = vrot.slane %v2299, %v2320
      %v2323 = vunpack.c.l.s4 1966171168
      %v2324 = vunpack.c.0.s8 %v2323
      %v2325 = vlaneseq
      %v2326 = vshrl.u32 %v2325, 7
      %v2327 = vsub.s32 %v2324, %v2326
      %v2328 = vrot.slane %v2300, %v2327
      %v2329 = vcombine.low %v2307, %v2314
      %v2330 = vcombine.low %v2321, %v2328
      %v2332 = vunpack.c.l.s4 1966171168
      %v2333 = vunpack.c.0.s8 %v2332
      %v2334 = vlaneseq
      %v2335 = vshrl.u32 %v2334, 7
      %v2336 = vsub.s32 %v2333, %v2335
      %v2337 = vrot.slane %v2329, %v2336
      %v2339 = vunpack.c.l.s4 1966171168
      %v2340 = vunpack.c.0.s8 %v2339
      %v2341 = vlaneseq
      %v2342 = vshrl.u32 %v2341, 7
      %v2343 = vsub.s32 %v2340, %v2342
      %v2344 = vrot.slane %v2330, %v2343
      %v2345 = vcombine.low %v2337, %v2344
      %v2347 = vmul.f32 %v2288, %v2345
      %2348 = vst [vmem:[%s221] sm:$0xff] %v2347
      %v2349 = vld [vmem:[%s217] ss:$2 sm:$0xff]
      %v2350 = vsub.f32 %v2347, %v2349
      %v2351 = vmul.f32 %v2350, %v2350
      %v2353 = vlaneseq
      %v2354 = vshrl.u32 %v2353, 7
      %v2355 = vsub.s32 0, %v2354
      %v2356 = vrot.slane %v2351, %v2355
      %v2357 = vlaneseq
      %v2358 = vshrl.u32 %v2357, 7
      %v2359 = vsub.s32 1, %v2358
      %v2360 = vrot.slane %v2351, %v2359
      %v2361 = vlaneseq
      %v2362 = vshrl.u32 %v2361, 7
      %v2363 = vsub.s32 2, %v2362
      %v2364 = vrot.slane %v2351, %v2363
      %v2365 = vlaneseq
      %v2366 = vshrl.u32 %v2365, 7
      %v2367 = vsub.s32 3, %v2366
      %v2368 = vrot.slane %v2351, %v2367
      %v2369 = vlaneseq
      %v2370 = vshrl.u32 %v2369, 7
      %v2371 = vsub.s32 4, %v2370
      %v2372 = vrot.slane %v2351, %v2371
      %v2373 = vlaneseq
      %v2374 = vshrl.u32 %v2373, 7
      %v2375 = vsub.s32 5, %v2374
      %v2376 = vrot.slane %v2351, %v2375
      %v2377 = vlaneseq
      %v2378 = vshrl.u32 %v2377, 7
      %v2379 = vsub.s32 6, %v2378
      %v2380 = vrot.slane %v2351, %v2379
      %v2381 = vlaneseq
      %v2382 = vshrl.u32 %v2381, 7
      %v2383 = vsub.s32 7, %v2382
      %v2384 = vrot.slane %v2351, %v2383
      %vm2393 = vcmask 1040384
      %v2394 = vsel %vm2393, %v2356, 0.0
      %v2395 = vsel %vm2393, %v2360, 0.0
      %v2396 = vadd.f32 %v2394, %v2395
      %v2397 = vsel %vm2393, %v2364, 0.0
      %v2398 = vadd.f32 %v2396, %v2397
      %v2399 = vsel %vm2393, %v2368, 0.0
      %v2400 = vadd.f32 %v2398, %v2399
      %v2401 = vsel %vm2393, %v2372, 0.0
      %v2402 = vadd.f32 %v2400, %v2401
      %v2403 = vsel %vm2393, %v2376, 0.0
      %v2404 = vadd.f32 %v2402, %v2403
      %v2405 = vsel %vm2393, %v2380, 0.0
      %v2406 = vadd.f32 %v2404, %v2405
      %v2407 = vsel %vm2393, %v2384, 0.0
      %v2408 = vadd.f32 %v2406, %v2407
      %2409 = vadd.xlane.f32.xlu0 %v2408
      %v2410 = vpop.xlane.xlu0 %2409
      %v2411 = vadd.f32 %v2410, 0.0
      %vm2412 = vcmask 0
      %2413 = vst.msk [vmem:[%s224] sm:$0x1] %vm2412, %v2411
      %p2414 = scmp.lt.s32.totalorder %s16, 2
      %s2415 = scalar_select %p2414, %s16, 2
      %s2416 = smul.addr %s2415, 8
      %s2417 = scalar_lea.vmem %s3, %s2416
      %p2418 = scmp.lt.s32.totalorder %s16, 2
      %s2419 = scalar_select %p2418, %s16, 2
      %s2420 = scalar_lea.vmem %s4, %s2419
      // Predicated region
      $region33: #{forward.3} parent=31 // pred_check
        %p2421 = pneg %p107
      $region34: #{forward.3} parent=31 // pred_check_branch
        %2423 = sbr.rel (%p2421) target = $region36
      $region35: #{forward.3} parent=31 // pred_region
        _
      $region36: #{forward.3} parent=31 // pred_fallthru
        _
      // Predicated region
      $region37: #{forward.3} parent=31 // pred_check
        %p2424 = pneg %p133
      $region38: #{forward.3} parent=31 // pred_check_branch
        %2426 = sbr.rel (%p2424) target = $region40
      $region39: #{forward.3} parent=31 // pred_region
        _
      $region40: #{forward.3} parent=31 // pred_fallthru
        _
    $region32: #{forward.3} parent=5 // pred_fallthru
      _
    %p2427 = scmp.le.s32.totalorder 2, %s11
    // Predicated region
    $region41: #{forward.3} parent=5 // pred_check
      %p2428 = pneg %p2427
    $region42: #{forward.3} parent=5 // pred_check_branch
      %2430 = sbr.rel (%p2428) target = $region44
    $region43: #{forward.3} parent=5 // pred_region
      %s2431 = ssub.s32 %s11, 2
      // Predicated region
      $region45: #{forward.3} parent=43 // pred_check
        %p2432 = pneg %p113
      $region46: #{forward.3} parent=43 // pred_check_branch
        %2434 = sbr.rel (%p2432) target = $region48
      $region47: #{forward.3} parent=43 // pred_region
        %p2435 = scmp.lt.s32.totalorder %s17, 2
        %s2436 = scalar_select %p2435, %s17, 2
        %s2437 = smul.addr %s2436, 8
        %s2438 = scalar_lea.vmem %s3, %s2437
      $region48: #{forward.3} parent=43 // pred_fallthru
        _
      // Predicated region
      $region49: #{forward.3} parent=43 // pred_check
        %p2439 = pneg %p139
      $region50: #{forward.3} parent=43 // pred_check_branch
        %2441 = sbr.rel (%p2439) target = $region52
      $region51: #{forward.3} parent=43 // pred_region
        %p2442 = scmp.lt.s32.totalorder %s17, 2
        %s2443 = scalar_select %p2442, %s17, 2
        %s2444 = scalar_lea.vmem %s4, %s2443
      $region52: #{forward.3} parent=43 // pred_fallthru
        _
    $region44: #{forward.3} parent=5 // pred_fallthru
      _
  $region6: #{forward.3} parent=0 // loop_footer
    %s15 = sadd.s32 1, %s11
  $region7: #{forward.3} parent=0 // loop_footer_branch
    %10 = sbr.rel target = $region3
  $region8: #{forward.3} parent=0 // loop_exit
    _

</llo_original>
